<compile_context>
chip_gen: v7x
topology: tpu7x:2x2x1
jax: 0.10.0
libtpu: 0.0.40
codegen_flags: <defaults>
</compile_context>

<pallas_src>
import jax
import jax.numpy as jnp
from jax.experimental import pallas as pl
from jax.experimental.pallas import tpu as pltpu

IN_FEATURES = 100
K_PAD = 128                      # contraction dim padded to a dense tile
OUT_FEATURES = 32 * 300          # 9600 = 75 * 128 (lane-dense)


def _linear_kernel(x_ref, w_ref, b_ref, o_ref):
    # x_ref: (Bp, 128) f32, w_ref: (128, tn) bf16, b_ref: (1, tn) f32,
    # o_ref: (Bp, tn) f32
    x_bf = x_ref[...].astype(jnp.bfloat16)          # tiny cast on the VPU
    acc = jnp.dot(x_bf, w_ref[...], preferred_element_type=jnp.float32)
    o_ref[...] = acc + b_ref[...]


def _default_tn():
    """Output-feature tile: split only on v7x (2 TensorCores per chip)."""
    try:
        kind = jax.devices()[0].device_kind.lower()
    except Exception:
        kind = ""
    if "v7" in kind:
        return 3200              # 3 parallel steps, each 25*128 lanes wide
    return OUT_FEATURES          # v5e / v6e: single step, no step overhead


def generator_forward(x, w_t_bf, b, *, tn=None):
    """x: (B, 100) f32, w_t_bf: (128, 9600) bf16 (pre-padded, pre-transposed),
    b: (9600,) f32  ->  (B, 32, 300) f32."""
    B = x.shape[0]
    assert x.shape[1] == IN_FEATURES
    assert w_t_bf.shape == (K_PAD, OUT_FEATURES)
    assert w_t_bf.dtype == jnp.bfloat16
    if tn is None:
        tn = _default_tn()
    assert OUT_FEATURES % tn == 0 and tn % 128 == 0
    n_steps = OUT_FEATURES // tn

    # Pad batch to a multiple of 8 (dense sublane stores) and K 100 -> 128
    # (dense contraction tiles).  Zero-padding is numerically identical.
    Bp = ((B + 7) // 8) * 8
    x_p = jnp.pad(x.astype(jnp.float32),
                  ((0, Bp - B), (0, K_PAD - IN_FEATURES)))

    b2d = b.reshape(1, OUT_FEATURES).astype(jnp.float32)

    cost = pl.CostEstimate(
        flops=2 * Bp * K_PAD * OUT_FEATURES,
        transcendentals=0,
        bytes_accessed=(x_p.size * 4 + w_t_bf.size * 2 + b2d.size * 4
                        + Bp * OUT_FEATURES * 4),
    )

    y = pl.pallas_call(
        _linear_kernel,
        out_shape=jax.ShapeDtypeStruct((Bp, OUT_FEATURES), jnp.float32),
        grid_spec=pltpu.PrefetchScalarGridSpec(
            num_scalar_prefetch=0,
            grid=(n_steps,),
            in_specs=[
                # full (Bp, 128) activation tile, resident across all steps
                pl.BlockSpec((Bp, K_PAD), lambda j: (0, 0)),
                # weight tile along the output-feature axis (lane-dense)
                pl.BlockSpec((K_PAD, tn), lambda j: (0, j)),
                # bias tile
                pl.BlockSpec((1, tn), lambda j: (0, j)),
            ],
            out_specs=pl.BlockSpec((Bp, tn), lambda j: (0, j)),
        ),
        compiler_params=pltpu.CompilerParams(
            dimension_semantics=("parallel",),
        ),
        cost_estimate=cost,
    )(x_p, w_t_bf, b2d)

    # Drop batch padding, then apply the module's .view(-1, 32, 300).
    return y[:B].reshape(B, 32, 300)


def init_params(key):
    """Mimics nn.Linear default init: U(-1/sqrt(fan_in), 1/sqrt(fan_in)).

    Returns f32 'checkpoint' params: w_t (100, 9600) stored pre-transposed
    (in, out), and b (9600,)."""
    kw, kb = jax.random.split(key)
    bound = 1.0 / jnp.sqrt(jnp.float32(IN_FEATURES))
    w_t = jax.random.uniform(
        kw, (IN_FEATURES, OUT_FEATURES), jnp.float32, minval=-bound, maxval=bound
    )
    b = jax.random.uniform(
        kb, (OUT_FEATURES,), jnp.float32, minval=-bound, maxval=bound
    )
    return w_t, b


def prepare_weight(w_t_f32):
    """One-time (checkpoint-load time) weight prep: zero-pad K 100 -> 128 and
    cast to bf16.  This is deliberately NOT inside generator_forward so the
    convert never materializes as a per-call XLA op."""
    assert w_t_f32.shape == (IN_FEATURES, OUT_FEATURES)
    w_pad = jnp.pad(w_t_f32, ((0, K_PAD - IN_FEATURES), (0, 0)))
    return w_pad.astype(jnp.bfloat16)


if __name__ == "__main__":
    key = jax.random.PRNGKey(0)
    k_in, k_params = jax.random.split(key)

    B = 2
    x = jax.random.normal(k_in, (B, IN_FEATURES), jnp.float32)
    w_t_f32, b = init_params(k_params)
    w_t_bf = jax.block_until_ready(prepare_weight(w_t_f32))   # one-time prep

    fwd = jax.jit(generator_forward)
    out = fwd(x, w_t_bf, b)
    jax.block_until_ready(out)
    assert out.shape == (B, 32, 300), out.shape

    # Tight check against a reference using the same bf16-quantized operands
    # (only accumulation order differs; both accumulate in f32).
    x_q = x.astype(jnp.bfloat16).astype(jnp.float32)
    w_q = w_t_f32.astype(jnp.bfloat16).astype(jnp.float32)
    ref_q = (x_q @ w_q + b).reshape(B, 32, 300)
    assert jnp.allclose(out, ref_q, atol=2e-3, rtol=2e-3), "mismatch vs bf16 reference"

    # Loose sanity check against the full-f32 PyTorch-equivalent forward
    # (bf16 weight storage trades a little precision for ~2x less HBM traffic).
    ref_f32 = (x @ w_t_f32 + b).reshape(B, 32, 300)
    assert jnp.allclose(out, ref_f32, atol=5e-2, rtol=5e-2), "mismatch vs f32 reference"

    print("KERNEL_OK")
</pallas_src>

<mosaic_0001>
module attributes {stable_mosaic.version = 11 : i64} {
  func.func @_linear_kernel(%arg0: i32, %arg1: memref<8x128xf32, #tpu.memory_space<vmem>>, %arg2: memref<128x9600xbf16, #tpu.memory_space<vmem>>, %arg3: memref<1x9600xf32, #tpu.memory_space<vmem>>, %arg4: memref<8x9600xf32, #tpu.memory_space<vmem>>) attributes {dimension_semantics = [#tpu.dimension_semantics<parallel>], iteration_bounds = array<i64: 1>, scalar_prefetch = 0 : i64, scratch_operands = 0 : i64, tpu.core_type = #tpu.core_type<tc>, window_params = [{pipeline_mode = #tpu.pipeline_mode<synchronous>, transform_indices = @transform_0, window_bounds = array<i64: 8, 128>}, {transform_indices = @transform_1, window_bounds = array<i64: 128, 9600>}, {transform_indices = @transform_2, window_bounds = array<i64: 1, 9600>}, {transform_indices = @transform_3, window_bounds = array<i64: 8, 9600>}]} {
    %c0 = arith.constant 0 : index
    %c0_0 = arith.constant 0 : index
    %0 = vector.load %arg1[%c0, %c0_0] : memref<8x128xf32, #tpu.memory_space<vmem>>, vector<8x128xf32>
    %1 = arith.truncf %0 : vector<8x128xf32> to vector<8x128xbf16>
    %c0_1 = arith.constant 0 : index
    %c0_2 = arith.constant 0 : index
    %2 = vector.load %arg2[%c0_1, %c0_2] : memref<128x9600xbf16, #tpu.memory_space<vmem>>, vector<128x9600xbf16>
    %cst = arith.constant dense<0.000000e+00> : vector<8x9600xf32>
    %3 = tpu.matmul %1, %2, %cst {dimension_numbers = #tpu.dot_dimension_numbers<[1], [0], [0], [1], [0, 0, 1, 1], [], []>} : vector<8x128xbf16>, vector<128x9600xbf16>, vector<8x9600xf32> -> vector<8x9600xf32>
    %c0_3 = arith.constant 0 : index
    %c0_4 = arith.constant 0 : index
    %4 = vector.load %arg3[%c0_3, %c0_4] : memref<1x9600xf32, #tpu.memory_space<vmem>>, vector<1x9600xf32>
    %5 = vector.broadcast %4 : vector<1x9600xf32> to vector<8x9600xf32>
    %6 = arith.addf %3, %5 : vector<8x9600xf32>
    %c0_5 = arith.constant 0 : index
    %c0_6 = arith.constant 0 : index
    %7 = vector.load %arg4[%c0_5, %c0_6] : memref<8x9600xf32, #tpu.memory_space<vmem>>, vector<8x9600xf32>
    tpu.vector_store %arg4[%c0_5, %c0_6], %6 {strides = array<i32>} : memref<8x9600xf32, #tpu.memory_space<vmem>>, vector<8x9600xf32>,
    return
  }
  func.func @transform_0(%arg0: i32) -> (i32, i32) {
    %c0_i32 = arith.constant 0 : i32
    %c0_i32_0 = arith.constant 0 : i32
    %c0_i32_1 = arith.constant 0 : i32
    return %c0_i32, %c0_i32_0 : i32, i32
  }
  func.func @transform_1(%arg0: i32) -> (i32, i32) {
    %c0_i32 = arith.constant 0 : i32
    %c0_i32_0 = arith.constant 0 : i32
    return %c0_i32, %arg0 : i32, i32
  }
  func.func @transform_2(%arg0: i32) -> (i32, i32) {
    %c0_i32 = arith.constant 0 : i32
    %c0_i32_0 = arith.constant 0 : i32
    return %c0_i32, %arg0 : i32, i32
  }
  func.func @transform_3(%arg0: i32) -> (i32, i32) {
    %c0_i32 = arith.constant 0 : i32
    %c0_i32_0 = arith.constant 0 : i32
    return %c0_i32, %arg0 : i32, i32
  }
}

</mosaic_0001>

<llo_original>
// kernel: generator_forward.1
$region0: #{generator_forward.1}
  #allocation0 [shape = 'u32[]', space=smem, size = 0x4, offset = 0x4, fixed_abs, tag = 'smem constant byte address 0x4 - core index']
  #allocation1 [shape = 'u32[144,128]{1,0:T(1,128)}', space=vmem, size = 0x12000, scoped, tag = 'internal scratch']
  %s0 = inlined_call_operand.vmem [shape: f32[8,128], index: 0, kind: input, shape index: {}]
  %s1 = inlined_call_operand.hbm [shape: bf16[128,9600], index: 1, kind: input, shape index: {}]
  %s2 = inlined_call_operand.vmem [shape: f32[1,9600], index: 2, kind: input, shape index: {}]
  %s3 = inlined_call_operand.vmem [shape: f32[8,9600], index: 3, kind: output, shape index: {}]
  %s4 = sld [smem:[#allocation0]]
  $region26: #{generator_forward.1} parent=0
    _
  %s6 = ssub.s32 1, %s4
  %s7 = scalar_select 0, %s6, %s4
  $region1: #{generator_forward.1} parent=0
    #allocation2 [shape = 'u8[2457600]{0}', space=vmem, size = 0x258000, scoped, tag = 'input window, operand 1, single buffered']
    #allocation3 [shape = 's32[1]{0}', space=sflag, size = 0x4, scoped, tag = 'scoped memory for generator_forward.1']
    %8 = vsyncpa [#allocation3], 0
    // Predicated region
    $region2: #{generator_forward.1} parent=1 // pred_check
      _
    $region3: #{generator_forward.1} parent=1 // pred_check_branch
      %10 = sbr.rel (0) target = $region5
    $region4: #{generator_forward.1} parent=1 // pred_region
      _
    $region5: #{generator_forward.1} parent=1 // pred_fallthru
      _
    // Predicated region
    $region6: #{generator_forward.1} parent=1 // pred_check
      _
    $region7: #{generator_forward.1} parent=1 // pred_check_branch
      %12 = sbr.rel (0) target = $region9
    $region8: #{generator_forward.1} parent=1 // pred_region
      %s14 = ssub.s32 76800, 76800
      %15 = vsyncadd [#allocation3], %s14
      %s16 = sshll.u32 [#allocation2], 4
      %s17 = int_to_ptr.vmem [resolvable:$true] %s16
      %22 = dma.hbm_to_vmem [thread:$0]  %s1, 76800, %s17, [#allocation3], 4800, 4800, 300
    $region9: #{generator_forward.1} parent=1 // pred_fallthru
      _
    // Predicated region
    $region10: #{generator_forward.1} parent=1 // pred_check
      _
    $region11: #{generator_forward.1} parent=1 // pred_check_branch
      %24 = sbr.rel (0) target = $region13
    $region12: #{generator_forward.1} parent=1 // pred_region
      _
    $region13: #{generator_forward.1} parent=1 // pred_fallthru
      _
    // Predicated region
    $region14: #{generator_forward.1} parent=1 // pred_check
      _
    $region15: #{generator_forward.1} parent=1 // pred_check_branch
      %26 = sbr.rel (0) target = $region17
    $region16: #{generator_forward.1} parent=1 // pred_region
      %27 = dma.done [#allocation3], 76800
    $region17: #{generator_forward.1} parent=1 // pred_fallthru
      _
    %v29 = vld [vmem:[%s0] sm:$0xff]
    %v30 = vpack.c.bf16 %v29, %v29
    %v31 = vld [vmem:[#allocation2] sm:$0xff]
    %v32 = vld [vmem:[#allocation2 + $0x8] sm:$0xff]
    %v33 = vld [vmem:[#allocation2 + $0x10] sm:$0xff]
    %v34 = vld [vmem:[#allocation2 + $0x18] sm:$0xff]
    %v35 = vld [vmem:[#allocation2 + $0x20] sm:$0xff]
    %v36 = vld [vmem:[#allocation2 + $0x28] sm:$0xff]
    %v37 = vld [vmem:[#allocation2 + $0x30] sm:$0xff]
    %v38 = vld [vmem:[#allocation2 + $0x38] sm:$0xff]
    %v39 = vld [vmem:[#allocation2 + $0x40] sm:$0xff]
    %v40 = vld [vmem:[#allocation2 + $0x48] sm:$0xff]
    %v41 = vld [vmem:[#allocation2 + $0x50] sm:$0xff]
    %v42 = vld [vmem:[#allocation2 + $0x58] sm:$0xff]
    %v43 = vld [vmem:[#allocation2 + $0x60] sm:$0xff]
    %v44 = vld [vmem:[#allocation2 + $0x68] sm:$0xff]
    %v45 = vld [vmem:[#allocation2 + $0x70] sm:$0xff]
    %v46 = vld [vmem:[#allocation2 + $0x78] sm:$0xff]
    %v47 = vld [vmem:[#allocation2 + $0x80] sm:$0xff]
    %v48 = vld [vmem:[#allocation2 + $0x88] sm:$0xff]
    %v49 = vld [vmem:[#allocation2 + $0x90] sm:$0xff]
    %v50 = vld [vmem:[#allocation2 + $0x98] sm:$0xff]
    %v51 = vld [vmem:[#allocation2 + $0xa0] sm:$0xff]
    %v52 = vld [vmem:[#allocation2 + $0xa8] sm:$0xff]
    %v53 = vld [vmem:[#allocation2 + $0xb0] sm:$0xff]
    %v54 = vld [vmem:[#allocation2 + $0xb8] sm:$0xff]
    %v55 = vld [vmem:[#allocation2 + $0xc0] sm:$0xff]
    %v56 = vld [vmem:[#allocation2 + $0xc8] sm:$0xff]
    %v57 = vld [vmem:[#allocation2 + $0xd0] sm:$0xff]
    %v58 = vld [vmem:[#allocation2 + $0xd8] sm:$0xff]
    %v59 = vld [vmem:[#allocation2 + $0xe0] sm:$0xff]
    %v60 = vld [vmem:[#allocation2 + $0xe8] sm:$0xff]
    %v61 = vld [vmem:[#allocation2 + $0xf0] sm:$0xff]
    %v62 = vld [vmem:[#allocation2 + $0xf8] sm:$0xff]
    %v63 = vld [vmem:[#allocation2 + $0x100] sm:$0xff]
    %v64 = vld [vmem:[#allocation2 + $0x108] sm:$0xff]
    %v65 = vld [vmem:[#allocation2 + $0x110] sm:$0xff]
    %v66 = vld [vmem:[#allocation2 + $0x118] sm:$0xff]
    %v67 = vld [vmem:[#allocation2 + $0x120] sm:$0xff]
    %v68 = vld [vmem:[#allocation2 + $0x128] sm:$0xf]
    %v69 = vld [vmem:[#allocation2 + $0x12c] sm:$0xff]
    %v70 = vld [vmem:[#allocation2 + $0x134] sm:$0xff]
    %v71 = vld [vmem:[#allocation2 + $0x13c] sm:$0xff]
    %v72 = vld [vmem:[#allocation2 + $0x144] sm:$0xff]
    %v73 = vld [vmem:[#allocation2 + $0x14c] sm:$0xff]
    %v74 = vld [vmem:[#allocation2 + $0x154] sm:$0xff]
    %v75 = vld [vmem:[#allocation2 + $0x15c] sm:$0xff]
    %v76 = vld [vmem:[#allocation2 + $0x164] sm:$0xff]
    %v77 = vld [vmem:[#allocation2 + $0x16c] sm:$0xff]
    %v78 = vld [vmem:[#allocation2 + $0x174] sm:$0xff]
    %v79 = vld [vmem:[#allocation2 + $0x17c] sm:$0xff]
    %v80 = vld [vmem:[#allocation2 + $0x184] sm:$0xff]
    %v81 = vld [vmem:[#allocation2 + $0x18c] sm:$0xff]
    %v82 = vld [vmem:[#allocation2 + $0x194] sm:$0xff]
    %v83 = vld [vmem:[#allocation2 + $0x19c] sm:$0xff]
    %v84 = vld [vmem:[#allocation2 + $0x1a4] sm:$0xff]
    %v85 = vld [vmem:[#allocation2 + $0x1ac] sm:$0xff]
    %v86 = vld [vmem:[#allocation2 + $0x1b4] sm:$0xff]
    %v87 = vld [vmem:[#allocation2 + $0x1bc] sm:$0xff]
    %v88 = vld [vmem:[#allocation2 + $0x1c4] sm:$0xff]
    %v89 = vld [vmem:[#allocation2 + $0x1cc] sm:$0xff]
    %v90 = vld [vmem:[#allocation2 + $0x1d4] sm:$0xff]
    %v91 = vld [vmem:[#allocation2 + $0x1dc] sm:$0xff]
    %v92 = vld [vmem:[#allocation2 + $0x1e4] sm:$0xff]
    %v93 = vld [vmem:[#allocation2 + $0x1ec] sm:$0xff]
    %v94 = vld [vmem:[#allocation2 + $0x1f4] sm:$0xff]
    %v95 = vld [vmem:[#allocation2 + $0x1fc] sm:$0xff]
    %v96 = vld [vmem:[#allocation2 + $0x204] sm:$0xff]
    %v97 = vld [vmem:[#allocation2 + $0x20c] sm:$0xff]
    %v98 = vld [vmem:[#allocation2 + $0x214] sm:$0xff]
    %v99 = vld [vmem:[#allocation2 + $0x21c] sm:$0xff]
    %v100 = vld [vmem:[#allocation2 + $0x224] sm:$0xff]
    %v101 = vld [vmem:[#allocation2 + $0x22c] sm:$0xff]
    %v102 = vld [vmem:[#allocation2 + $0x234] sm:$0xff]
    %v103 = vld [vmem:[#allocation2 + $0x23c] sm:$0xff]
    %v104 = vld [vmem:[#allocation2 + $0x244] sm:$0xff]
    %v105 = vld [vmem:[#allocation2 + $0x24c] sm:$0xff]
    %v106 = vld [vmem:[#allocation2 + $0x254] sm:$0xf]
    %v107 = vld [vmem:[#allocation2 + $0x258] sm:$0xff]
    %v108 = vld [vmem:[#allocation2 + $0x260] sm:$0xff]
    %v109 = vld [vmem:[#allocation2 + $0x268] sm:$0xff]
    %v110 = vld [vmem:[#allocation2 + $0x270] sm:$0xff]
    %v111 = vld [vmem:[#allocation2 + $0x278] sm:$0xff]
    %v112 = vld [vmem:[#allocation2 + $0x280] sm:$0xff]
    %v113 = vld [vmem:[#allocation2 + $0x288] sm:$0xff]
    %v114 = vld [vmem:[#allocation2 + $0x290] sm:$0xff]
    %v115 = vld [vmem:[#allocation2 + $0x298] sm:$0xff]
    %v116 = vld [vmem:[#allocation2 + $0x2a0] sm:$0xff]
    %v117 = vld [vmem:[#allocation2 + $0x2a8] sm:$0xff]
    %v118 = vld [vmem:[#allocation2 + $0x2b0] sm:$0xff]
    %v119 = vld [vmem:[#allocation2 + $0x2b8] sm:$0xff]
    %v120 = vld [vmem:[#allocation2 + $0x2c0] sm:$0xff]
    %v121 = vld [vmem:[#allocation2 + $0x2c8] sm:$0xff]
    %v122 = vld [vmem:[#allocation2 + $0x2d0] sm:$0xff]
    %v123 = vld [vmem:[#allocation2 + $0x2d8] sm:$0xff]
    %v124 = vld [vmem:[#allocation2 + $0x2e0] sm:$0xff]
    %v125 = vld [vmem:[#allocation2 + $0x2e8] sm:$0xff]
    %v126 = vld [vmem:[#allocation2 + $0x2f0] sm:$0xff]
    %v127 = vld [vmem:[#allocation2 + $0x2f8] sm:$0xff]
    %v128 = vld [vmem:[#allocation2 + $0x300] sm:$0xff]
    %v129 = vld [vmem:[#allocation2 + $0x308] sm:$0xff]
    %v130 = vld [vmem:[#allocation2 + $0x310] sm:$0xff]
    %v131 = vld [vmem:[#allocation2 + $0x318] sm:$0xff]
    %v132 = vld [vmem:[#allocation2 + $0x320] sm:$0xff]
    %v133 = vld [vmem:[#allocation2 + $0x328] sm:$0xff]
    %v134 = vld [vmem:[#allocation2 + $0x330] sm:$0xff]
    %v135 = vld [vmem:[#allocation2 + $0x338] sm:$0xff]
    %v136 = vld [vmem:[#allocation2 + $0x340] sm:$0xff]
    %v137 = vld [vmem:[#allocation2 + $0x348] sm:$0xff]
    %v138 = vld [vmem:[#allocation2 + $0x350] sm:$0xff]
    %v139 = vld [vmem:[#allocation2 + $0x358] sm:$0xff]
    %v140 = vld [vmem:[#allocation2 + $0x360] sm:$0xff]
    %v141 = vld [vmem:[#allocation2 + $0x368] sm:$0xff]
    %v142 = vld [vmem:[#allocation2 + $0x370] sm:$0xff]
    %v143 = vld [vmem:[#allocation2 + $0x378] sm:$0xff]
    %v144 = vld [vmem:[#allocation2 + $0x380] sm:$0xf]
    %v145 = vld [vmem:[#allocation2 + $0x384] sm:$0xff]
    %v146 = vld [vmem:[#allocation2 + $0x38c] sm:$0xff]
    %v147 = vld [vmem:[#allocation2 + $0x394] sm:$0xff]
    %v148 = vld [vmem:[#allocation2 + $0x39c] sm:$0xff]
    %v149 = vld [vmem:[#allocation2 + $0x3a4] sm:$0xff]
    %v150 = vld [vmem:[#allocation2 + $0x3ac] sm:$0xff]
    %v151 = vld [vmem:[#allocation2 + $0x3b4] sm:$0xff]
    %v152 = vld [vmem:[#allocation2 + $0x3bc] sm:$0xff]
    %v153 = vld [vmem:[#allocation2 + $0x3c4] sm:$0xff]
    %v154 = vld [vmem:[#allocation2 + $0x3cc] sm:$0xff]
    %v155 = vld [vmem:[#allocation2 + $0x3d4] sm:$0xff]
    %v156 = vld [vmem:[#allocation2 + $0x3dc] sm:$0xff]
    %v157 = vld [vmem:[#allocation2 + $0x3e4] sm:$0xff]
    %v158 = vld [vmem:[#allocation2 + $0x3ec] sm:$0xff]
    %v159 = vld [vmem:[#allocation2 + $0x3f4] sm:$0xff]
    %v160 = vld [vmem:[#allocation2 + $0x3fc] sm:$0xff]
    %v161 = vld [vmem:[#allocation2 + $0x404] sm:$0xff]
    %v162 = vld [vmem:[#allocation2 + $0x40c] sm:$0xff]
    %v163 = vld [vmem:[#allocation2 + $0x414] sm:$0xff]
    %v164 = vld [vmem:[#allocation2 + $0x41c] sm:$0xff]
    %v165 = vld [vmem:[#allocation2 + $0x424] sm:$0xff]
    %v166 = vld [vmem:[#allocation2 + $0x42c] sm:$0xff]
    %v167 = vld [vmem:[#allocation2 + $0x434] sm:$0xff]
    %v168 = vld [vmem:[#allocation2 + $0x43c] sm:$0xff]
    %v169 = vld [vmem:[#allocation2 + $0x444] sm:$0xff]
    %v170 = vld [vmem:[#allocation2 + $0x44c] sm:$0xff]
    %v171 = vld [vmem:[#allocation2 + $0x454] sm:$0xff]
    %v172 = vld [vmem:[#allocation2 + $0x45c] sm:$0xff]
    %v173 = vld [vmem:[#allocation2 + $0x464] sm:$0xff]
    %v174 = vld [vmem:[#allocation2 + $0x46c] sm:$0xff]
    %v175 = vld [vmem:[#allocation2 + $0x474] sm:$0xff]
    %v176 = vld [vmem:[#allocation2 + $0x47c] sm:$0xff]
    %v177 = vld [vmem:[#allocation2 + $0x484] sm:$0xff]
    %v178 = vld [vmem:[#allocation2 + $0x48c] sm:$0xff]
    %v179 = vld [vmem:[#allocation2 + $0x494] sm:$0xff]
    %v180 = vld [vmem:[#allocation2 + $0x49c] sm:$0xff]
    %v181 = vld [vmem:[#allocation2 + $0x4a4] sm:$0xff]
    %v182 = vld [vmem:[#allocation2 + $0x4ac] sm:$0xf]
    %v183 = vld [vmem:[#allocation2 + $0x4b0] sm:$0xff]
    %v184 = vld [vmem:[#allocation2 + $0x4b8] sm:$0xff]
    %v185 = vld [vmem:[#allocation2 + $0x4c0] sm:$0xff]
    %v186 = vld [vmem:[#allocation2 + $0x4c8] sm:$0xff]
    %v187 = vld [vmem:[#allocation2 + $0x4d0] sm:$0xff]
    %v188 = vld [vmem:[#allocation2 + $0x4d8] sm:$0xff]
    %v189 = vld [vmem:[#allocation2 + $0x4e0] sm:$0xff]
    %v190 = vld [vmem:[#allocation2 + $0x4e8] sm:$0xff]
    %v191 = vld [vmem:[#allocation2 + $0x4f0] sm:$0xff]
    %v192 = vld [vmem:[#allocation2 + $0x4f8] sm:$0xff]
    %v193 = vld [vmem:[#allocation2 + $0x500] sm:$0xff]
    %v194 = vld [vmem:[#allocation2 + $0x508] sm:$0xff]
    %v195 = vld [vmem:[#allocation2 + $0x510] sm:$0xff]
    %v196 = vld [vmem:[#allocation2 + $0x518] sm:$0xff]
    %v197 = vld [vmem:[#allocation2 + $0x520] sm:$0xff]
    %v198 = vld [vmem:[#allocation2 + $0x528] sm:$0xff]
    %v199 = vld [vmem:[#allocation2 + $0x530] sm:$0xff]
    %v200 = vld [vmem:[#allocation2 + $0x538] sm:$0xff]
    %v201 = vld [vmem:[#allocation2 + $0x540] sm:$0xff]
    %v202 = vld [vmem:[#allocation2 + $0x548] sm:$0xff]
    %v203 = vld [vmem:[#allocation2 + $0x550] sm:$0xff]
    %v204 = vld [vmem:[#allocation2 + $0x558] sm:$0xff]
    %v205 = vld [vmem:[#allocation2 + $0x560] sm:$0xff]
    %v206 = vld [vmem:[#allocation2 + $0x568] sm:$0xff]
    %v207 = vld [vmem:[#allocation2 + $0x570] sm:$0xff]
    %v208 = vld [vmem:[#allocation2 + $0x578] sm:$0xff]
    %v209 = vld [vmem:[#allocation2 + $0x580] sm:$0xff]
    %v210 = vld [vmem:[#allocation2 + $0x588] sm:$0xff]
    %v211 = vld [vmem:[#allocation2 + $0x590] sm:$0xff]
    %v212 = vld [vmem:[#allocation2 + $0x598] sm:$0xff]
    %v213 = vld [vmem:[#allocation2 + $0x5a0] sm:$0xff]
    %v214 = vld [vmem:[#allocation2 + $0x5a8] sm:$0xff]
    %v215 = vld [vmem:[#allocation2 + $0x5b0] sm:$0xff]
    %v216 = vld [vmem:[#allocation2 + $0x5b8] sm:$0xff]
    %v217 = vld [vmem:[#allocation2 + $0x5c0] sm:$0xff]
    %v218 = vld [vmem:[#allocation2 + $0x5c8] sm:$0xff]
    %v219 = vld [vmem:[#allocation2 + $0x5d0] sm:$0xff]
    %v220 = vld [vmem:[#allocation2 + $0x5d8] sm:$0xf]
    %v221 = vld [vmem:[#allocation2 + $0x5dc] sm:$0xff]
    %v222 = vld [vmem:[#allocation2 + $0x5e4] sm:$0xff]
    %v223 = vld [vmem:[#allocation2 + $0x5ec] sm:$0xff]
    %v224 = vld [vmem:[#allocation2 + $0x5f4] sm:$0xff]
    %v225 = vld [vmem:[#allocation2 + $0x5fc] sm:$0xff]
    %v226 = vld [vmem:[#allocation2 + $0x604] sm:$0xff]
    %v227 = vld [vmem:[#allocation2 + $0x60c] sm:$0xff]
    %v228 = vld [vmem:[#allocation2 + $0x614] sm:$0xff]
    %v229 = vld [vmem:[#allocation2 + $0x61c] sm:$0xff]
    %v230 = vld [vmem:[#allocation2 + $0x624] sm:$0xff]
    %v231 = vld [vmem:[#allocation2 + $0x62c] sm:$0xff]
    %v232 = vld [vmem:[#allocation2 + $0x634] sm:$0xff]
    %v233 = vld [vmem:[#allocation2 + $0x63c] sm:$0xff]
    %v234 = vld [vmem:[#allocation2 + $0x644] sm:$0xff]
    %v235 = vld [vmem:[#allocation2 + $0x64c] sm:$0xff]
    %v236 = vld [vmem:[#allocation2 + $0x654] sm:$0xff]
    %v237 = vld [vmem:[#allocation2 + $0x65c] sm:$0xff]
    %v238 = vld [vmem:[#allocation2 + $0x664] sm:$0xff]
    %v239 = vld [vmem:[#allocation2 + $0x66c] sm:$0xff]
    %v240 = vld [vmem:[#allocation2 + $0x674] sm:$0xff]
    %v241 = vld [vmem:[#allocation2 + $0x67c] sm:$0xff]
    %v242 = vld [vmem:[#allocation2 + $0x684] sm:$0xff]
    %v243 = vld [vmem:[#allocation2 + $0x68c] sm:$0xff]
    %v244 = vld [vmem:[#allocation2 + $0x694] sm:$0xff]
    %v245 = vld [vmem:[#allocation2 + $0x69c] sm:$0xff]
    %v246 = vld [vmem:[#allocation2 + $0x6a4] sm:$0xff]
    %v247 = vld [vmem:[#allocation2 + $0x6ac] sm:$0xff]
    %v248 = vld [vmem:[#allocation2 + $0x6b4] sm:$0xff]
    %v249 = vld [vmem:[#allocation2 + $0x6bc] sm:$0xff]
    %v250 = vld [vmem:[#allocation2 + $0x6c4] sm:$0xff]
    %v251 = vld [vmem:[#allocation2 + $0x6cc] sm:$0xff]
    %v252 = vld [vmem:[#allocation2 + $0x6d4] sm:$0xff]
    %v253 = vld [vmem:[#allocation2 + $0x6dc] sm:$0xff]
    %v254 = vld [vmem:[#allocation2 + $0x6e4] sm:$0xff]
    %v255 = vld [vmem:[#allocation2 + $0x6ec] sm:$0xff]
    %v256 = vld [vmem:[#allocation2 + $0x6f4] sm:$0xff]
    %v257 = vld [vmem:[#allocation2 + $0x6fc] sm:$0xff]
    %v258 = vld [vmem:[#allocation2 + $0x704] sm:$0xf]
    %v259 = vld [vmem:[#allocation2 + $0x708] sm:$0xff]
    %v260 = vld [vmem:[#allocation2 + $0x710] sm:$0xff]
    %v261 = vld [vmem:[#allocation2 + $0x718] sm:$0xff]
    %v262 = vld [vmem:[#allocation2 + $0x720] sm:$0xff]
    %v263 = vld [vmem:[#allocation2 + $0x728] sm:$0xff]
    %v264 = vld [vmem:[#allocation2 + $0x730] sm:$0xff]
    %v265 = vld [vmem:[#allocation2 + $0x738] sm:$0xff]
    %v266 = vld [vmem:[#allocation2 + $0x740] sm:$0xff]
    %v267 = vld [vmem:[#allocation2 + $0x748] sm:$0xff]
    %v268 = vld [vmem:[#allocation2 + $0x750] sm:$0xff]
    %v269 = vld [vmem:[#allocation2 + $0x758] sm:$0xff]
    %v270 = vld [vmem:[#allocation2 + $0x760] sm:$0xff]
    %v271 = vld [vmem:[#allocation2 + $0x768] sm:$0xff]
    %v272 = vld [vmem:[#allocation2 + $0x770] sm:$0xff]
    %v273 = vld [vmem:[#allocation2 + $0x778] sm:$0xff]
    %v274 = vld [vmem:[#allocation2 + $0x780] sm:$0xff]
    %v275 = vld [vmem:[#allocation2 + $0x788] sm:$0xff]
    %v276 = vld [vmem:[#allocation2 + $0x790] sm:$0xff]
    %v277 = vld [vmem:[#allocation2 + $0x798] sm:$0xff]
    %v278 = vld [vmem:[#allocation2 + $0x7a0] sm:$0xff]
    %v279 = vld [vmem:[#allocation2 + $0x7a8] sm:$0xff]
    %v280 = vld [vmem:[#allocation2 + $0x7b0] sm:$0xff]
    %v281 = vld [vmem:[#allocation2 + $0x7b8] sm:$0xff]
    %v282 = vld [vmem:[#allocation2 + $0x7c0] sm:$0xff]
    %v283 = vld [vmem:[#allocation2 + $0x7c8] sm:$0xff]
    %v284 = vld [vmem:[#allocation2 + $0x7d0] sm:$0xff]
    %v285 = vld [vmem:[#allocation2 + $0x7d8] sm:$0xff]
    %v286 = vld [vmem:[#allocation2 + $0x7e0] sm:$0xff]
    %v287 = vld [vmem:[#allocation2 + $0x7e8] sm:$0xff]
    %v288 = vld [vmem:[#allocation2 + $0x7f0] sm:$0xff]
    %v289 = vld [vmem:[#allocation2 + $0x7f8] sm:$0xff]
    %v290 = vld [vmem:[#allocation2 + $0x800] sm:$0xff]
    %v291 = vld [vmem:[#allocation2 + $0x808] sm:$0xff]
    %v292 = vld [vmem:[#allocation2 + $0x810] sm:$0xff]
    %v293 = vld [vmem:[#allocation2 + $0x818] sm:$0xff]
    %v294 = vld [vmem:[#allocation2 + $0x820] sm:$0xff]
    %v295 = vld [vmem:[#allocation2 + $0x828] sm:$0xff]
    %v296 = vld [vmem:[#allocation2 + $0x830] sm:$0xf]
    %v297 = vld [vmem:[#allocation2 + $0x834] sm:$0xff]
    %v298 = vld [vmem:[#allocation2 + $0x83c] sm:$0xff]
    %v299 = vld [vmem:[#allocation2 + $0x844] sm:$0xff]
    %v300 = vld [vmem:[#allocation2 + $0x84c] sm:$0xff]
    %v301 = vld [vmem:[#allocation2 + $0x854] sm:$0xff]
    %v302 = vld [vmem:[#allocation2 + $0x85c] sm:$0xff]
    %v303 = vld [vmem:[#allocation2 + $0x864] sm:$0xff]
    %v304 = vld [vmem:[#allocation2 + $0x86c] sm:$0xff]
    %v305 = vld [vmem:[#allocation2 + $0x874] sm:$0xff]
    %v306 = vld [vmem:[#allocation2 + $0x87c] sm:$0xff]
    %v307 = vld [vmem:[#allocation2 + $0x884] sm:$0xff]
    %v308 = vld [vmem:[#allocation2 + $0x88c] sm:$0xff]
    %v309 = vld [vmem:[#allocation2 + $0x894] sm:$0xff]
    %v310 = vld [vmem:[#allocation2 + $0x89c] sm:$0xff]
    %v311 = vld [vmem:[#allocation2 + $0x8a4] sm:$0xff]
    %v312 = vld [vmem:[#allocation2 + $0x8ac] sm:$0xff]
    %v313 = vld [vmem:[#allocation2 + $0x8b4] sm:$0xff]
    %v314 = vld [vmem:[#allocation2 + $0x8bc] sm:$0xff]
    %v315 = vld [vmem:[#allocation2 + $0x8c4] sm:$0xff]
    %v316 = vld [vmem:[#allocation2 + $0x8cc] sm:$0xff]
    %v317 = vld [vmem:[#allocation2 + $0x8d4] sm:$0xff]
    %v318 = vld [vmem:[#allocation2 + $0x8dc] sm:$0xff]
    %v319 = vld [vmem:[#allocation2 + $0x8e4] sm:$0xff]
    %v320 = vld [vmem:[#allocation2 + $0x8ec] sm:$0xff]
    %v321 = vld [vmem:[#allocation2 + $0x8f4] sm:$0xff]
    %v322 = vld [vmem:[#allocation2 + $0x8fc] sm:$0xff]
    %v323 = vld [vmem:[#allocation2 + $0x904] sm:$0xff]
    %v324 = vld [vmem:[#allocation2 + $0x90c] sm:$0xff]
    %v325 = vld [vmem:[#allocation2 + $0x914] sm:$0xff]
    %v326 = vld [vmem:[#allocation2 + $0x91c] sm:$0xff]
    %v327 = vld [vmem:[#allocation2 + $0x924] sm:$0xff]
    %v328 = vld [vmem:[#allocation2 + $0x92c] sm:$0xff]
    %v329 = vld [vmem:[#allocation2 + $0x934] sm:$0xff]
    %v330 = vld [vmem:[#allocation2 + $0x93c] sm:$0xff]
    %v331 = vld [vmem:[#allocation2 + $0x944] sm:$0xff]
    %v332 = vld [vmem:[#allocation2 + $0x94c] sm:$0xff]
    %v333 = vld [vmem:[#allocation2 + $0x954] sm:$0xff]
    %v334 = vld [vmem:[#allocation2 + $0x95c] sm:$0xf]
    %v335 = vld [vmem:[#allocation2 + $0x960] sm:$0xff]
    %v336 = vld [vmem:[#allocation2 + $0x968] sm:$0xff]
    %v337 = vld [vmem:[#allocation2 + $0x970] sm:$0xff]
    %v338 = vld [vmem:[#allocation2 + $0x978] sm:$0xff]
    %v339 = vld [vmem:[#allocation2 + $0x980] sm:$0xff]
    %v340 = vld [vmem:[#allocation2 + $0x988] sm:$0xff]
    %v341 = vld [vmem:[#allocation2 + $0x990] sm:$0xff]
    %v342 = vld [vmem:[#allocation2 + $0x998] sm:$0xff]
    %v343 = vld [vmem:[#allocation2 + $0x9a0] sm:$0xff]
    %v344 = vld [vmem:[#allocation2 + $0x9a8] sm:$0xff]
    %v345 = vld [vmem:[#allocation2 + $0x9b0] sm:$0xff]
    %v346 = vld [vmem:[#allocation2 + $0x9b8] sm:$0xff]
    %v347 = vld [vmem:[#allocation2 + $0x9c0] sm:$0xff]
    %v348 = vld [vmem:[#allocation2 + $0x9c8] sm:$0xff]
    %v349 = vld [vmem:[#allocation2 + $0x9d0] sm:$0xff]
    %v350 = vld [vmem:[#allocation2 + $0x9d8] sm:$0xff]
    %v351 = vld [vmem:[#allocation2 + $0x9e0] sm:$0xff]
    %v352 = vld [vmem:[#allocation2 + $0x9e8] sm:$0xff]
    %v353 = vld [vmem:[#allocation2 + $0x9f0] sm:$0xff]
    %v354 = vld [vmem:[#allocation2 + $0x9f8] sm:$0xff]
    %v355 = vld [vmem:[#allocation2 + $0xa00] sm:$0xff]
    %v356 = vld [vmem:[#allocation2 + $0xa08] sm:$0xff]
    %v357 = vld [vmem:[#allocation2 + $0xa10] sm:$0xff]
    %v358 = vld [vmem:[#allocation2 + $0xa18] sm:$0xff]
    %v359 = vld [vmem:[#allocation2 + $0xa20] sm:$0xff]
    %v360 = vld [vmem:[#allocation2 + $0xa28] sm:$0xff]
    %v361 = vld [vmem:[#allocation2 + $0xa30] sm:$0xff]
    %v362 = vld [vmem:[#allocation2 + $0xa38] sm:$0xff]
    %v363 = vld [vmem:[#allocation2 + $0xa40] sm:$0xff]
    %v364 = vld [vmem:[#allocation2 + $0xa48] sm:$0xff]
    %v365 = vld [vmem:[#allocation2 + $0xa50] sm:$0xff]
    %v366 = vld [vmem:[#allocation2 + $0xa58] sm:$0xff]
    %v367 = vld [vmem:[#allocation2 + $0xa60] sm:$0xff]
    %v368 = vld [vmem:[#allocation2 + $0xa68] sm:$0xff]
    %v369 = vld [vmem:[#allocation2 + $0xa70] sm:$0xff]
    %v370 = vld [vmem:[#allocation2 + $0xa78] sm:$0xff]
    %v371 = vld [vmem:[#allocation2 + $0xa80] sm:$0xff]
    %v372 = vld [vmem:[#allocation2 + $0xa88] sm:$0xf]
    %v373 = vld [vmem:[#allocation2 + $0xa8c] sm:$0xff]
    %v374 = vld [vmem:[#allocation2 + $0xa94] sm:$0xff]
    %v375 = vld [vmem:[#allocation2 + $0xa9c] sm:$0xff]
    %v376 = vld [vmem:[#allocation2 + $0xaa4] sm:$0xff]
    %v377 = vld [vmem:[#allocation2 + $0xaac] sm:$0xff]
    %v378 = vld [vmem:[#allocation2 + $0xab4] sm:$0xff]
    %v379 = vld [vmem:[#allocation2 + $0xabc] sm:$0xff]
    %v380 = vld [vmem:[#allocation2 + $0xac4] sm:$0xff]
    %v381 = vld [vmem:[#allocation2 + $0xacc] sm:$0xff]
    %v382 = vld [vmem:[#allocation2 + $0xad4] sm:$0xff]
    %v383 = vld [vmem:[#allocation2 + $0xadc] sm:$0xff]
    %v384 = vld [vmem:[#allocation2 + $0xae4] sm:$0xff]
    %v385 = vld [vmem:[#allocation2 + $0xaec] sm:$0xff]
    %v386 = vld [vmem:[#allocation2 + $0xaf4] sm:$0xff]
    %v387 = vld [vmem:[#allocation2 + $0xafc] sm:$0xff]
    %v388 = vld [vmem:[#allocation2 + $0xb04] sm:$0xff]
    %v389 = vld [vmem:[#allocation2 + $0xb0c] sm:$0xff]
    %v390 = vld [vmem:[#allocation2 + $0xb14] sm:$0xff]
    %v391 = vld [vmem:[#allocation2 + $0xb1c] sm:$0xff]
    %v392 = vld [vmem:[#allocation2 + $0xb24] sm:$0xff]
    %v393 = vld [vmem:[#allocation2 + $0xb2c] sm:$0xff]
    %v394 = vld [vmem:[#allocation2 + $0xb34] sm:$0xff]
    %v395 = vld [vmem:[#allocation2 + $0xb3c] sm:$0xff]
    %v396 = vld [vmem:[#allocation2 + $0xb44] sm:$0xff]
    %v397 = vld [vmem:[#allocation2 + $0xb4c] sm:$0xff]
    %v398 = vld [vmem:[#allocation2 + $0xb54] sm:$0xff]
    %v399 = vld [vmem:[#allocation2 + $0xb5c] sm:$0xff]
    %v400 = vld [vmem:[#allocation2 + $0xb64] sm:$0xff]
    %v401 = vld [vmem:[#allocation2 + $0xb6c] sm:$0xff]
    %v402 = vld [vmem:[#allocation2 + $0xb74] sm:$0xff]
    %v403 = vld [vmem:[#allocation2 + $0xb7c] sm:$0xff]
    %v404 = vld [vmem:[#allocation2 + $0xb84] sm:$0xff]
    %v405 = vld [vmem:[#allocation2 + $0xb8c] sm:$0xff]
    %v406 = vld [vmem:[#allocation2 + $0xb94] sm:$0xff]
    %v407 = vld [vmem:[#allocation2 + $0xb9c] sm:$0xff]
    %v408 = vld [vmem:[#allocation2 + $0xba4] sm:$0xff]
    %v409 = vld [vmem:[#allocation2 + $0xbac] sm:$0xff]
    %v410 = vld [vmem:[#allocation2 + $0xbb4] sm:$0xf]
    %v411 = vld [vmem:[#allocation2 + $0xbb8] sm:$0xff]
    %v412 = vld [vmem:[#allocation2 + $0xbc0] sm:$0xff]
    %v413 = vld [vmem:[#allocation2 + $0xbc8] sm:$0xff]
    %v414 = vld [vmem:[#allocation2 + $0xbd0] sm:$0xff]
    %v415 = vld [vmem:[#allocation2 + $0xbd8] sm:$0xff]
    %v416 = vld [vmem:[#allocation2 + $0xbe0] sm:$0xff]
    %v417 = vld [vmem:[#allocation2 + $0xbe8] sm:$0xff]
    %v418 = vld [vmem:[#allocation2 + $0xbf0] sm:$0xff]
    %v419 = vld [vmem:[#allocation2 + $0xbf8] sm:$0xff]
    %v420 = vld [vmem:[#allocation2 + $0xc00] sm:$0xff]
    %v421 = vld [vmem:[#allocation2 + $0xc08] sm:$0xff]
    %v422 = vld [vmem:[#allocation2 + $0xc10] sm:$0xff]
    %v423 = vld [vmem:[#allocation2 + $0xc18] sm:$0xff]
    %v424 = vld [vmem:[#allocation2 + $0xc20] sm:$0xff]
    %v425 = vld [vmem:[#allocation2 + $0xc28] sm:$0xff]
    %v426 = vld [vmem:[#allocation2 + $0xc30] sm:$0xff]
    %v427 = vld [vmem:[#allocation2 + $0xc38] sm:$0xff]
    %v428 = vld [vmem:[#allocation2 + $0xc40] sm:$0xff]
    %v429 = vld [vmem:[#allocation2 + $0xc48] sm:$0xff]
    %v430 = vld [vmem:[#allocation2 + $0xc50] sm:$0xff]
    %v431 = vld [vmem:[#allocation2 + $0xc58] sm:$0xff]
    %v432 = vld [vmem:[#allocation2 + $0xc60] sm:$0xff]
    %v433 = vld [vmem:[#allocation2 + $0xc68] sm:$0xff]
    %v434 = vld [vmem:[#allocation2 + $0xc70] sm:$0xff]
    %v435 = vld [vmem:[#allocation2 + $0xc78] sm:$0xff]
    %v436 = vld [vmem:[#allocation2 + $0xc80] sm:$0xff]
    %v437 = vld [vmem:[#allocation2 + $0xc88] sm:$0xff]
    %v438 = vld [vmem:[#allocation2 + $0xc90] sm:$0xff]
    %v439 = vld [vmem:[#allocation2 + $0xc98] sm:$0xff]
    %v440 = vld [vmem:[#allocation2 + $0xca0] sm:$0xff]
    %v441 = vld [vmem:[#allocation2 + $0xca8] sm:$0xff]
    %v442 = vld [vmem:[#allocation2 + $0xcb0] sm:$0xff]
    %v443 = vld [vmem:[#allocation2 + $0xcb8] sm:$0xff]
    %v444 = vld [vmem:[#allocation2 + $0xcc0] sm:$0xff]
    %v445 = vld [vmem:[#allocation2 + $0xcc8] sm:$0xff]
    %v446 = vld [vmem:[#allocation2 + $0xcd0] sm:$0xff]
    %v447 = vld [vmem:[#allocation2 + $0xcd8] sm:$0xff]
    %v448 = vld [vmem:[#allocation2 + $0xce0] sm:$0xf]
    %v449 = vld [vmem:[#allocation2 + $0xce4] sm:$0xff]
    %v450 = vld [vmem:[#allocation2 + $0xcec] sm:$0xff]
    %v451 = vld [vmem:[#allocation2 + $0xcf4] sm:$0xff]
    %v452 = vld [vmem:[#allocation2 + $0xcfc] sm:$0xff]
    %v453 = vld [vmem:[#allocation2 + $0xd04] sm:$0xff]
    %v454 = vld [vmem:[#allocation2 + $0xd0c] sm:$0xff]
    %v455 = vld [vmem:[#allocation2 + $0xd14] sm:$0xff]
    %v456 = vld [vmem:[#allocation2 + $0xd1c] sm:$0xff]
    %v457 = vld [vmem:[#allocation2 + $0xd24] sm:$0xff]
    %v458 = vld [vmem:[#allocation2 + $0xd2c] sm:$0xff]
    %v459 = vld [vmem:[#allocation2 + $0xd34] sm:$0xff]
    %v460 = vld [vmem:[#allocation2 + $0xd3c] sm:$0xff]
    %v461 = vld [vmem:[#allocation2 + $0xd44] sm:$0xff]
    %v462 = vld [vmem:[#allocation2 + $0xd4c] sm:$0xff]
    %v463 = vld [vmem:[#allocation2 + $0xd54] sm:$0xff]
    %v464 = vld [vmem:[#allocation2 + $0xd5c] sm:$0xff]
    %v465 = vld [vmem:[#allocation2 + $0xd64] sm:$0xff]
    %v466 = vld [vmem:[#allocation2 + $0xd6c] sm:$0xff]
    %v467 = vld [vmem:[#allocation2 + $0xd74] sm:$0xff]
    %v468 = vld [vmem:[#allocation2 + $0xd7c] sm:$0xff]
    %v469 = vld [vmem:[#allocation2 + $0xd84] sm:$0xff]
    %v470 = vld [vmem:[#allocation2 + $0xd8c] sm:$0xff]
    %v471 = vld [vmem:[#allocation2 + $0xd94] sm:$0xff]
    %v472 = vld [vmem:[#allocation2 + $0xd9c] sm:$0xff]
    %v473 = vld [vmem:[#allocation2 + $0xda4] sm:$0xff]
    %v474 = vld [vmem:[#allocation2 + $0xdac] sm:$0xff]
    %v475 = vld [vmem:[#allocation2 + $0xdb4] sm:$0xff]
    %v476 = vld [vmem:[#allocation2 + $0xdbc] sm:$0xff]
    %v477 = vld [vmem:[#allocation2 + $0xdc4] sm:$0xff]
    %v478 = vld [vmem:[#allocation2 + $0xdcc] sm:$0xff]
    %v479 = vld [vmem:[#allocation2 + $0xdd4] sm:$0xff]
    %v480 = vld [vmem:[#allocation2 + $0xddc] sm:$0xff]
    %v481 = vld [vmem:[#allocation2 + $0xde4] sm:$0xff]
    %v482 = vld [vmem:[#allocation2 + $0xdec] sm:$0xff]
    %v483 = vld [vmem:[#allocation2 + $0xdf4] sm:$0xff]
    %v484 = vld [vmem:[#allocation2 + $0xdfc] sm:$0xff]
    %v485 = vld [vmem:[#allocation2 + $0xe04] sm:$0xff]
    %v486 = vld [vmem:[#allocation2 + $0xe0c] sm:$0xf]
    %v487 = vld [vmem:[#allocation2 + $0xe10] sm:$0xff]
    %v488 = vld [vmem:[#allocation2 + $0xe18] sm:$0xff]
    %v489 = vld [vmem:[#allocation2 + $0xe20] sm:$0xff]
    %v490 = vld [vmem:[#allocation2 + $0xe28] sm:$0xff]
    %v491 = vld [vmem:[#allocation2 + $0xe30] sm:$0xff]
    %v492 = vld [vmem:[#allocation2 + $0xe38] sm:$0xff]
    %v493 = vld [vmem:[#allocation2 + $0xe40] sm:$0xff]
    %v494 = vld [vmem:[#allocation2 + $0xe48] sm:$0xff]
    %v495 = vld [vmem:[#allocation2 + $0xe50] sm:$0xff]
    %v496 = vld [vmem:[#allocation2 + $0xe58] sm:$0xff]
    %v497 = vld [vmem:[#allocation2 + $0xe60] sm:$0xff]
    %v498 = vld [vmem:[#allocation2 + $0xe68] sm:$0xff]
    %v499 = vld [vmem:[#allocation2 + $0xe70] sm:$0xff]
    %v500 = vld [vmem:[#allocation2 + $0xe78] sm:$0xff]
    %v501 = vld [vmem:[#allocation2 + $0xe80] sm:$0xff]
    %v502 = vld [vmem:[#allocation2 + $0xe88] sm:$0xff]
    %v503 = vld [vmem:[#allocation2 + $0xe90] sm:$0xff]
    %v504 = vld [vmem:[#allocation2 + $0xe98] sm:$0xff]
    %v505 = vld [vmem:[#allocation2 + $0xea0] sm:$0xff]
    %v506 = vld [vmem:[#allocation2 + $0xea8] sm:$0xff]
    %v507 = vld [vmem:[#allocation2 + $0xeb0] sm:$0xff]
    %v508 = vld [vmem:[#allocation2 + $0xeb8] sm:$0xff]
    %v509 = vld [vmem:[#allocation2 + $0xec0] sm:$0xff]
    %v510 = vld [vmem:[#allocation2 + $0xec8] sm:$0xff]
    %v511 = vld [vmem:[#allocation2 + $0xed0] sm:$0xff]
    %v512 = vld [vmem:[#allocation2 + $0xed8] sm:$0xff]
    %v513 = vld [vmem:[#allocation2 + $0xee0] sm:$0xff]
    %v514 = vld [vmem:[#allocation2 + $0xee8] sm:$0xff]
    %v515 = vld [vmem:[#allocation2 + $0xef0] sm:$0xff]
    %v516 = vld [vmem:[#allocation2 + $0xef8] sm:$0xff]
    %v517 = vld [vmem:[#allocation2 + $0xf00] sm:$0xff]
    %v518 = vld [vmem:[#allocation2 + $0xf08] sm:$0xff]
    %v519 = vld [vmem:[#allocation2 + $0xf10] sm:$0xff]
    %v520 = vld [vmem:[#allocation2 + $0xf18] sm:$0xff]
    %v521 = vld [vmem:[#allocation2 + $0xf20] sm:$0xff]
    %v522 = vld [vmem:[#allocation2 + $0xf28] sm:$0xff]
    %v523 = vld [vmem:[#allocation2 + $0xf30] sm:$0xff]
    %v524 = vld [vmem:[#allocation2 + $0xf38] sm:$0xf]
    %v525 = vld [vmem:[#allocation2 + $0xf3c] sm:$0xff]
    %v526 = vld [vmem:[#allocation2 + $0xf44] sm:$0xff]
    %v527 = vld [vmem:[#allocation2 + $0xf4c] sm:$0xff]
    %v528 = vld [vmem:[#allocation2 + $0xf54] sm:$0xff]
    %v529 = vld [vmem:[#allocation2 + $0xf5c] sm:$0xff]
    %v530 = vld [vmem:[#allocation2 + $0xf64] sm:$0xff]
    %v531 = vld [vmem:[#allocation2 + $0xf6c] sm:$0xff]
    %v532 = vld [vmem:[#allocation2 + $0xf74] sm:$0xff]
    %v533 = vld [vmem:[#allocation2 + $0xf7c] sm:$0xff]
    %v534 = vld [vmem:[#allocation2 + $0xf84] sm:$0xff]
    %v535 = vld [vmem:[#allocation2 + $0xf8c] sm:$0xff]
    %v536 = vld [vmem:[#allocation2 + $0xf94] sm:$0xff]
    %v537 = vld [vmem:[#allocation2 + $0xf9c] sm:$0xff]
    %v538 = vld [vmem:[#allocation2 + $0xfa4] sm:$0xff]
    %v539 = vld [vmem:[#allocation2 + $0xfac] sm:$0xff]
    %v540 = vld [vmem:[#allocation2 + $0xfb4] sm:$0xff]
    %v541 = vld [vmem:[#allocation2 + $0xfbc] sm:$0xff]
    %v542 = vld [vmem:[#allocation2 + $0xfc4] sm:$0xff]
    %v543 = vld [vmem:[#allocation2 + $0xfcc] sm:$0xff]
    %v544 = vld [vmem:[#allocation2 + $0xfd4] sm:$0xff]
    %v545 = vld [vmem:[#allocation2 + $0xfdc] sm:$0xff]
    %v546 = vld [vmem:[#allocation2 + $0xfe4] sm:$0xff]
    %v547 = vld [vmem:[#allocation2 + $0xfec] sm:$0xff]
    %v548 = vld [vmem:[#allocation2 + $0xff4] sm:$0xff]
    %v549 = vld [vmem:[#allocation2 + $0xffc] sm:$0xff]
    %v550 = vld [vmem:[#allocation2 + $0x1004] sm:$0xff]
    %v551 = vld [vmem:[#allocation2 + $0x100c] sm:$0xff]
    %v552 = vld [vmem:[#allocation2 + $0x1014] sm:$0xff]
    %v553 = vld [vmem:[#allocation2 + $0x101c] sm:$0xff]
    %v554 = vld [vmem:[#allocation2 + $0x1024] sm:$0xff]
    %v555 = vld [vmem:[#allocation2 + $0x102c] sm:$0xff]
    %v556 = vld [vmem:[#allocation2 + $0x1034] sm:$0xff]
    %v557 = vld [vmem:[#allocation2 + $0x103c] sm:$0xff]
    %v558 = vld [vmem:[#allocation2 + $0x1044] sm:$0xff]
    %v559 = vld [vmem:[#allocation2 + $0x104c] sm:$0xff]
    %v560 = vld [vmem:[#allocation2 + $0x1054] sm:$0xff]
    %v561 = vld [vmem:[#allocation2 + $0x105c] sm:$0xff]
    %v562 = vld [vmem:[#allocation2 + $0x1064] sm:$0xf]
    %v563 = vld [vmem:[#allocation2 + $0x1068] sm:$0xff]
    %v564 = vld [vmem:[#allocation2 + $0x1070] sm:$0xff]
    %v565 = vld [vmem:[#allocation2 + $0x1078] sm:$0xff]
    %v566 = vld [vmem:[#allocation2 + $0x1080] sm:$0xff]
    %v567 = vld [vmem:[#allocation2 + $0x1088] sm:$0xff]
    %v568 = vld [vmem:[#allocation2 + $0x1090] sm:$0xff]
    %v569 = vld [vmem:[#allocation2 + $0x1098] sm:$0xff]
    %v570 = vld [vmem:[#allocation2 + $0x10a0] sm:$0xff]
    %v571 = vld [vmem:[#allocation2 + $0x10a8] sm:$0xff]
    %v572 = vld [vmem:[#allocation2 + $0x10b0] sm:$0xff]
    %v573 = vld [vmem:[#allocation2 + $0x10b8] sm:$0xff]
    %v574 = vld [vmem:[#allocation2 + $0x10c0] sm:$0xff]
    %v575 = vld [vmem:[#allocation2 + $0x10c8] sm:$0xff]
    %v576 = vld [vmem:[#allocation2 + $0x10d0] sm:$0xff]
    %v577 = vld [vmem:[#allocation2 + $0x10d8] sm:$0xff]
    %v578 = vld [vmem:[#allocation2 + $0x10e0] sm:$0xff]
    %v579 = vld [vmem:[#allocation2 + $0x10e8] sm:$0xff]
    %v580 = vld [vmem:[#allocation2 + $0x10f0] sm:$0xff]
    %v581 = vld [vmem:[#allocation2 + $0x10f8] sm:$0xff]
    %v582 = vld [vmem:[#allocation2 + $0x1100] sm:$0xff]
    %v583 = vld [vmem:[#allocation2 + $0x1108] sm:$0xff]
    %v584 = vld [vmem:[#allocation2 + $0x1110] sm:$0xff]
    %v585 = vld [vmem:[#allocation2 + $0x1118] sm:$0xff]
    %v586 = vld [vmem:[#allocation2 + $0x1120] sm:$0xff]
    %v587 = vld [vmem:[#allocation2 + $0x1128] sm:$0xff]
    %v588 = vld [vmem:[#allocation2 + $0x1130] sm:$0xff]
    %v589 = vld [vmem:[#allocation2 + $0x1138] sm:$0xff]
    %v590 = vld [vmem:[#allocation2 + $0x1140] sm:$0xff]
    %v591 = vld [vmem:[#allocation2 + $0x1148] sm:$0xff]
    %v592 = vld [vmem:[#allocation2 + $0x1150] sm:$0xff]
    %v593 = vld [vmem:[#allocation2 + $0x1158] sm:$0xff]
    %v594 = vld [vmem:[#allocation2 + $0x1160] sm:$0xff]
    %v595 = vld [vmem:[#allocation2 + $0x1168] sm:$0xff]
    %v596 = vld [vmem:[#allocation2 + $0x1170] sm:$0xff]
    %v597 = vld [vmem:[#allocation2 + $0x1178] sm:$0xff]
    %v598 = vld [vmem:[#allocation2 + $0x1180] sm:$0xff]
    %v599 = vld [vmem:[#allocation2 + $0x1188] sm:$0xff]
    %v600 = vld [vmem:[#allocation2 + $0x1190] sm:$0xf]
    %v601 = vld [vmem:[#allocation2 + $0x1194] sm:$0xff]
    %v602 = vld [vmem:[#allocation2 + $0x119c] sm:$0xff]
    %v603 = vld [vmem:[#allocation2 + $0x11a4] sm:$0xff]
    %v604 = vld [vmem:[#allocation2 + $0x11ac] sm:$0xff]
    %v605 = vld [vmem:[#allocation2 + $0x11b4] sm:$0xff]
    %v606 = vld [vmem:[#allocation2 + $0x11bc] sm:$0xff]
    %v607 = vld [vmem:[#allocation2 + $0x11c4] sm:$0xff]
    %v608 = vld [vmem:[#allocation2 + $0x11cc] sm:$0xff]
    %v609 = vld [vmem:[#allocation2 + $0x11d4] sm:$0xff]
    %v610 = vld [vmem:[#allocation2 + $0x11dc] sm:$0xff]
    %v611 = vld [vmem:[#allocation2 + $0x11e4] sm:$0xff]
    %v612 = vld [vmem:[#allocation2 + $0x11ec] sm:$0xff]
    %v613 = vld [vmem:[#allocation2 + $0x11f4] sm:$0xff]
    %v614 = vld [vmem:[#allocation2 + $0x11fc] sm:$0xff]
    %v615 = vld [vmem:[#allocation2 + $0x1204] sm:$0xff]
    %v616 = vld [vmem:[#allocation2 + $0x120c] sm:$0xff]
    %v617 = vld [vmem:[#allocation2 + $0x1214] sm:$0xff]
    %v618 = vld [vmem:[#allocation2 + $0x121c] sm:$0xff]
    %v619 = vld [vmem:[#allocation2 + $0x1224] sm:$0xff]
    %v620 = vld [vmem:[#allocation2 + $0x122c] sm:$0xff]
    %v621 = vld [vmem:[#allocation2 + $0x1234] sm:$0xff]
    %v622 = vld [vmem:[#allocation2 + $0x123c] sm:$0xff]
    %v623 = vld [vmem:[#allocation2 + $0x1244] sm:$0xff]
    %v624 = vld [vmem:[#allocation2 + $0x124c] sm:$0xff]
    %v625 = vld [vmem:[#allocation2 + $0x1254] sm:$0xff]
    %v626 = vld [vmem:[#allocation2 + $0x125c] sm:$0xff]
    %v627 = vld [vmem:[#allocation2 + $0x1264] sm:$0xff]
    %v628 = vld [vmem:[#allocation2 + $0x126c] sm:$0xff]
    %v629 = vld [vmem:[#allocation2 + $0x1274] sm:$0xff]
    %v630 = vld [vmem:[#allocation2 + $0x127c] sm:$0xff]
    %v631 = vld [vmem:[#allocation2 + $0x1284] sm:$0xff]
    %v632 = vld [vmem:[#allocation2 + $0x128c] sm:$0xff]
    %v633 = vld [vmem:[#allocation2 + $0x1294] sm:$0xff]
    %v634 = vld [vmem:[#allocation2 + $0x129c] sm:$0xff]
    %v635 = vld [vmem:[#allocation2 + $0x12a4] sm:$0xff]
    %v636 = vld [vmem:[#allocation2 + $0x12ac] sm:$0xff]
    %v637 = vld [vmem:[#allocation2 + $0x12b4] sm:$0xff]
    %v638 = vld [vmem:[#allocation2 + $0x12bc] sm:$0xf]
    %v639 = vld [vmem:[%s2] sm:$0xff]
    %v640 = vld [vmem:[%s2 + $0x8] sm:$0xff]
    %v641 = vld [vmem:[%s2 + $0x10] sm:$0xff]
    %v642 = vld [vmem:[%s2 + $0x18] sm:$0xff]
    %v643 = vld [vmem:[%s2 + $0x20] sm:$0xff]
    %v644 = vld [vmem:[%s2 + $0x28] sm:$0xff]
    %v645 = vld [vmem:[%s2 + $0x30] sm:$0xff]
    %v646 = vld [vmem:[%s2 + $0x38] sm:$0xff]
    %v647 = vld [vmem:[%s2 + $0x40] sm:$0xff]
    %v648 = vld [vmem:[%s2 + $0x48] sm:$0x7]
    %v659 = vlaneseq
    %v660 = vshrl.u32 %v659, 7
    %v661 = vsub.s32 0, %v660
    %v662 = vrot.slane %v639, %v661
    %v663 = vlaneseq
    %v664 = vshrl.u32 %v663, 7
    %v665 = vsub.s32 1, %v664
    %v666 = vrot.slane %v639, %v665
    %v667 = vlaneseq
    %v668 = vshrl.u32 %v667, 7
    %v669 = vsub.s32 2, %v668
    %v670 = vrot.slane %v639, %v669
    %v671 = vlaneseq
    %v672 = vshrl.u32 %v671, 7
    %v673 = vsub.s32 3, %v672
    %v674 = vrot.slane %v639, %v673
    %v675 = vlaneseq
    %v676 = vshrl.u32 %v675, 7
    %v677 = vsub.s32 4, %v676
    %v678 = vrot.slane %v639, %v677
    %v679 = vlaneseq
    %v680 = vshrl.u32 %v679, 7
    %v681 = vsub.s32 5, %v680
    %v682 = vrot.slane %v639, %v681
    %v683 = vlaneseq
    %v684 = vshrl.u32 %v683, 7
    %v685 = vsub.s32 6, %v684
    %v686 = vrot.slane %v639, %v685
    %v687 = vlaneseq
    %v688 = vshrl.u32 %v687, 7
    %v689 = vsub.s32 7, %v688
    %v690 = vrot.slane %v639, %v689
    %v691 = vlaneseq
    %v692 = vshrl.u32 %v691, 7
    %v693 = vsub.s32 0, %v692
    %v694 = vrot.slane %v640, %v693
    %v695 = vlaneseq
    %v696 = vshrl.u32 %v695, 7
    %v697 = vsub.s32 1, %v696
    %v698 = vrot.slane %v640, %v697
    %v699 = vlaneseq
    %v700 = vshrl.u32 %v699, 7
    %v701 = vsub.s32 2, %v700
    %v702 = vrot.slane %v640, %v701
    %v703 = vlaneseq
    %v704 = vshrl.u32 %v703, 7
    %v705 = vsub.s32 3, %v704
    %v706 = vrot.slane %v640, %v705
    %v707 = vlaneseq
    %v708 = vshrl.u32 %v707, 7
    %v709 = vsub.s32 4, %v708
    %v710 = vrot.slane %v640, %v709
    %v711 = vlaneseq
    %v712 = vshrl.u32 %v711, 7
    %v713 = vsub.s32 5, %v712
    %v714 = vrot.slane %v640, %v713
    %v715 = vlaneseq
    %v716 = vshrl.u32 %v715, 7
    %v717 = vsub.s32 6, %v716
    %v718 = vrot.slane %v640, %v717
    %v719 = vlaneseq
    %v720 = vshrl.u32 %v719, 7
    %v721 = vsub.s32 7, %v720
    %v722 = vrot.slane %v640, %v721
    %v723 = vlaneseq
    %v724 = vshrl.u32 %v723, 7
    %v725 = vsub.s32 0, %v724
    %v726 = vrot.slane %v641, %v725
    %v727 = vlaneseq
    %v728 = vshrl.u32 %v727, 7
    %v729 = vsub.s32 1, %v728
    %v730 = vrot.slane %v641, %v729
    %v731 = vlaneseq
    %v732 = vshrl.u32 %v731, 7
    %v733 = vsub.s32 2, %v732
    %v734 = vrot.slane %v641, %v733
    %v735 = vlaneseq
    %v736 = vshrl.u32 %v735, 7
    %v737 = vsub.s32 3, %v736
    %v738 = vrot.slane %v641, %v737
    %v739 = vlaneseq
    %v740 = vshrl.u32 %v739, 7
    %v741 = vsub.s32 4, %v740
    %v742 = vrot.slane %v641, %v741
    %v743 = vlaneseq
    %v744 = vshrl.u32 %v743, 7
    %v745 = vsub.s32 5, %v744
    %v746 = vrot.slane %v641, %v745
    %v747 = vlaneseq
    %v748 = vshrl.u32 %v747, 7
    %v749 = vsub.s32 6, %v748
    %v750 = vrot.slane %v641, %v749
    %v751 = vlaneseq
    %v752 = vshrl.u32 %v751, 7
    %v753 = vsub.s32 7, %v752
    %v754 = vrot.slane %v641, %v753
    %v755 = vlaneseq
    %v756 = vshrl.u32 %v755, 7
    %v757 = vsub.s32 0, %v756
    %v758 = vrot.slane %v642, %v757
    %v759 = vlaneseq
    %v760 = vshrl.u32 %v759, 7
    %v761 = vsub.s32 1, %v760
    %v762 = vrot.slane %v642, %v761
    %v763 = vlaneseq
    %v764 = vshrl.u32 %v763, 7
    %v765 = vsub.s32 2, %v764
    %v766 = vrot.slane %v642, %v765
    %v767 = vlaneseq
    %v768 = vshrl.u32 %v767, 7
    %v769 = vsub.s32 3, %v768
    %v770 = vrot.slane %v642, %v769
    %v771 = vlaneseq
    %v772 = vshrl.u32 %v771, 7
    %v773 = vsub.s32 4, %v772
    %v774 = vrot.slane %v642, %v773
    %v775 = vlaneseq
    %v776 = vshrl.u32 %v775, 7
    %v777 = vsub.s32 5, %v776
    %v778 = vrot.slane %v642, %v777
    %v779 = vlaneseq
    %v780 = vshrl.u32 %v779, 7
    %v781 = vsub.s32 6, %v780
    %v782 = vrot.slane %v642, %v781
    %v783 = vlaneseq
    %v784 = vshrl.u32 %v783, 7
    %v785 = vsub.s32 7, %v784
    %v786 = vrot.slane %v642, %v785
    %v787 = vlaneseq
    %v788 = vshrl.u32 %v787, 7
    %v789 = vsub.s32 0, %v788
    %v790 = vrot.slane %v643, %v789
    %v791 = vlaneseq
    %v792 = vshrl.u32 %v791, 7
    %v793 = vsub.s32 1, %v792
    %v794 = vrot.slane %v643, %v793
    %v795 = vlaneseq
    %v796 = vshrl.u32 %v795, 7
    %v797 = vsub.s32 2, %v796
    %v798 = vrot.slane %v643, %v797
    %v799 = vlaneseq
    %v800 = vshrl.u32 %v799, 7
    %v801 = vsub.s32 3, %v800
    %v802 = vrot.slane %v643, %v801
    %v803 = vlaneseq
    %v804 = vshrl.u32 %v803, 7
    %v805 = vsub.s32 4, %v804
    %v806 = vrot.slane %v643, %v805
    %v807 = vlaneseq
    %v808 = vshrl.u32 %v807, 7
    %v809 = vsub.s32 5, %v808
    %v810 = vrot.slane %v643, %v809
    %v811 = vlaneseq
    %v812 = vshrl.u32 %v811, 7
    %v813 = vsub.s32 6, %v812
    %v814 = vrot.slane %v643, %v813
    %v815 = vlaneseq
    %v816 = vshrl.u32 %v815, 7
    %v817 = vsub.s32 7, %v816
    %v818 = vrot.slane %v643, %v817
    %v819 = vlaneseq
    %v820 = vshrl.u32 %v819, 7
    %v821 = vsub.s32 0, %v820
    %v822 = vrot.slane %v644, %v821
    %v823 = vlaneseq
    %v824 = vshrl.u32 %v823, 7
    %v825 = vsub.s32 1, %v824
    %v826 = vrot.slane %v644, %v825
    %v827 = vlaneseq
    %v828 = vshrl.u32 %v827, 7
    %v829 = vsub.s32 2, %v828
    %v830 = vrot.slane %v644, %v829
    %v831 = vlaneseq
    %v832 = vshrl.u32 %v831, 7
    %v833 = vsub.s32 3, %v832
    %v834 = vrot.slane %v644, %v833
    %v835 = vlaneseq
    %v836 = vshrl.u32 %v835, 7
    %v837 = vsub.s32 4, %v836
    %v838 = vrot.slane %v644, %v837
    %v839 = vlaneseq
    %v840 = vshrl.u32 %v839, 7
    %v841 = vsub.s32 5, %v840
    %v842 = vrot.slane %v644, %v841
    %v843 = vlaneseq
    %v844 = vshrl.u32 %v843, 7
    %v845 = vsub.s32 6, %v844
    %v846 = vrot.slane %v644, %v845
    %v847 = vlaneseq
    %v848 = vshrl.u32 %v847, 7
    %v849 = vsub.s32 7, %v848
    %v850 = vrot.slane %v644, %v849
    %v851 = vlaneseq
    %v852 = vshrl.u32 %v851, 7
    %v853 = vsub.s32 0, %v852
    %v854 = vrot.slane %v645, %v853
    %v855 = vlaneseq
    %v856 = vshrl.u32 %v855, 7
    %v857 = vsub.s32 1, %v856
    %v858 = vrot.slane %v645, %v857
    %v859 = vlaneseq
    %v860 = vshrl.u32 %v859, 7
    %v861 = vsub.s32 2, %v860
    %v862 = vrot.slane %v645, %v861
    %v863 = vlaneseq
    %v864 = vshrl.u32 %v863, 7
    %v865 = vsub.s32 3, %v864
    %v866 = vrot.slane %v645, %v865
    %v867 = vlaneseq
    %v868 = vshrl.u32 %v867, 7
    %v869 = vsub.s32 4, %v868
    %v870 = vrot.slane %v645, %v869
    %v871 = vlaneseq
    %v872 = vshrl.u32 %v871, 7
    %v873 = vsub.s32 5, %v872
    %v874 = vrot.slane %v645, %v873
    %v875 = vlaneseq
    %v876 = vshrl.u32 %v875, 7
    %v877 = vsub.s32 6, %v876
    %v878 = vrot.slane %v645, %v877
    %v879 = vlaneseq
    %v880 = vshrl.u32 %v879, 7
    %v881 = vsub.s32 7, %v880
    %v882 = vrot.slane %v645, %v881
    %v883 = vlaneseq
    %v884 = vshrl.u32 %v883, 7
    %v885 = vsub.s32 0, %v884
    %v886 = vrot.slane %v646, %v885
    %v887 = vlaneseq
    %v888 = vshrl.u32 %v887, 7
    %v889 = vsub.s32 1, %v888
    %v890 = vrot.slane %v646, %v889
    %v891 = vlaneseq
    %v892 = vshrl.u32 %v891, 7
    %v893 = vsub.s32 2, %v892
    %v894 = vrot.slane %v646, %v893
    %v895 = vlaneseq
    %v896 = vshrl.u32 %v895, 7
    %v897 = vsub.s32 3, %v896
    %v898 = vrot.slane %v646, %v897
    %v899 = vlaneseq
    %v900 = vshrl.u32 %v899, 7
    %v901 = vsub.s32 4, %v900
    %v902 = vrot.slane %v646, %v901
    %v903 = vlaneseq
    %v904 = vshrl.u32 %v903, 7
    %v905 = vsub.s32 5, %v904
    %v906 = vrot.slane %v646, %v905
    %v907 = vlaneseq
    %v908 = vshrl.u32 %v907, 7
    %v909 = vsub.s32 6, %v908
    %v910 = vrot.slane %v646, %v909
    %v911 = vlaneseq
    %v912 = vshrl.u32 %v911, 7
    %v913 = vsub.s32 7, %v912
    %v914 = vrot.slane %v646, %v913
    %v915 = vlaneseq
    %v916 = vshrl.u32 %v915, 7
    %v917 = vsub.s32 0, %v916
    %v918 = vrot.slane %v647, %v917
    %v919 = vlaneseq
    %v920 = vshrl.u32 %v919, 7
    %v921 = vsub.s32 1, %v920
    %v922 = vrot.slane %v647, %v921
    %v923 = vlaneseq
    %v924 = vshrl.u32 %v923, 7
    %v925 = vsub.s32 2, %v924
    %v926 = vrot.slane %v647, %v925
    %v927 = vlaneseq
    %v928 = vshrl.u32 %v927, 7
    %v929 = vsub.s32 3, %v928
    %v930 = vrot.slane %v647, %v929
    %v931 = vlaneseq
    %v932 = vshrl.u32 %v931, 7
    %v933 = vsub.s32 4, %v932
    %v934 = vrot.slane %v647, %v933
    %v935 = vlaneseq
    %v936 = vshrl.u32 %v935, 7
    %v937 = vsub.s32 5, %v936
    %v938 = vrot.slane %v647, %v937
    %v939 = vlaneseq
    %v940 = vshrl.u32 %v939, 7
    %v941 = vsub.s32 6, %v940
    %v942 = vrot.slane %v647, %v941
    %v943 = vlaneseq
    %v944 = vshrl.u32 %v943, 7
    %v945 = vsub.s32 7, %v944
    %v946 = vrot.slane %v647, %v945
    %v947 = vlaneseq
    %v948 = vshrl.u32 %v947, 7
    %v949 = vsub.s32 0, %v948
    %v950 = vrot.slane %v648, %v949
    %v951 = vlaneseq
    %v952 = vshrl.u32 %v951, 7
    %v953 = vsub.s32 1, %v952
    %v954 = vrot.slane %v648, %v953
    %v955 = vlaneseq
    %v956 = vshrl.u32 %v955, 7
    %v957 = vsub.s32 2, %v956
    %v958 = vrot.slane %v648, %v957
    %v1642 = vunpack.c.l.b16 %v31
    %v1643 = vunpack.c.h.b16 %v31
    %v1644 = vunpack.c.l.b16 %v32
    %v1645 = vunpack.c.h.b16 %v32
    %v1646 = vunpack.c.l.b16 %v33
    %v1647 = vunpack.c.h.b16 %v33
    %v1648 = vunpack.c.l.b16 %v34
    %v1649 = vunpack.c.h.b16 %v34
    %v1650 = vunpack.c.l.b16 %v35
    %v1651 = vunpack.c.h.b16 %v35
    %v1652 = vunpack.c.l.b16 %v36
    %v1653 = vunpack.c.h.b16 %v36
    %v1654 = vunpack.c.l.b16 %v37
    %v1655 = vunpack.c.h.b16 %v37
    %v1656 = vunpack.c.l.b16 %v38
    %v1657 = vunpack.c.h.b16 %v38
    %v1658 = vunpack.c.l.b16 %v39
    %v1659 = vunpack.c.h.b16 %v39
    %v1660 = vunpack.c.l.b16 %v40
    %v1661 = vunpack.c.h.b16 %v40
    %v1662 = vunpack.c.l.b16 %v41
    %v1663 = vunpack.c.h.b16 %v41
    %v1664 = vunpack.c.l.b16 %v42
    %v1665 = vunpack.c.h.b16 %v42
    %v1666 = vunpack.c.l.b16 %v43
    %v1667 = vunpack.c.h.b16 %v43
    %v1668 = vunpack.c.l.b16 %v44
    %v1669 = vunpack.c.h.b16 %v44
    %v1670 = vunpack.c.l.b16 %v45
    %v1671 = vunpack.c.h.b16 %v45
    %v1672 = vunpack.c.l.b16 %v46
    %v1673 = vunpack.c.h.b16 %v46
    %v1674 = vunpack.c.l.b16 %v47
    %v1675 = vunpack.c.h.b16 %v47
    %v1676 = vunpack.c.l.b16 %v48
    %v1677 = vunpack.c.h.b16 %v48
    %v1678 = vunpack.c.l.b16 %v49
    %v1679 = vunpack.c.h.b16 %v49
    %v1680 = vunpack.c.l.b16 %v50
    %v1681 = vunpack.c.h.b16 %v50
    %v1682 = vunpack.c.l.b16 %v51
    %v1683 = vunpack.c.h.b16 %v51
    %v1684 = vunpack.c.l.b16 %v52
    %v1685 = vunpack.c.h.b16 %v52
    %v1686 = vunpack.c.l.b16 %v53
    %v1687 = vunpack.c.h.b16 %v53
    %v1688 = vunpack.c.l.b16 %v54
    %v1689 = vunpack.c.h.b16 %v54
    %v1690 = vunpack.c.l.b16 %v55
    %v1691 = vunpack.c.h.b16 %v55
    %v1692 = vunpack.c.l.b16 %v56
    %v1693 = vunpack.c.h.b16 %v56
    %v1694 = vunpack.c.l.b16 %v57
    %v1695 = vunpack.c.h.b16 %v57
    %v1696 = vunpack.c.l.b16 %v58
    %v1697 = vunpack.c.h.b16 %v58
    %v1698 = vunpack.c.l.b16 %v59
    %v1699 = vunpack.c.h.b16 %v59
    %v1700 = vunpack.c.l.b16 %v60
    %v1701 = vunpack.c.h.b16 %v60
    %v1702 = vunpack.c.l.b16 %v61
    %v1703 = vunpack.c.h.b16 %v61
    %v1704 = vunpack.c.l.b16 %v62
    %v1705 = vunpack.c.h.b16 %v62
    %v1706 = vunpack.c.l.b16 %v63
    %v1707 = vunpack.c.h.b16 %v63
    %v1708 = vunpack.c.l.b16 %v64
    %v1709 = vunpack.c.h.b16 %v64
    %v1710 = vunpack.c.l.b16 %v65
    %v1711 = vunpack.c.h.b16 %v65
    %v1712 = vunpack.c.l.b16 %v66
    %v1713 = vunpack.c.h.b16 %v66
    %v1714 = vunpack.c.l.b16 %v67
    %v1715 = vunpack.c.h.b16 %v67
    %v1716 = vunpack.c.l.b16 %v68
    %v1717 = vunpack.c.l.b16 %v69
    %v1718 = vunpack.c.h.b16 %v69
    %v1719 = vunpack.c.l.b16 %v70
    %v1720 = vunpack.c.h.b16 %v70
    %v1721 = vunpack.c.l.b16 %v71
    %v1722 = vunpack.c.h.b16 %v71
    %v1723 = vunpack.c.l.b16 %v72
    %v1724 = vunpack.c.h.b16 %v72
    %v1725 = vunpack.c.l.b16 %v73
    %v1726 = vunpack.c.h.b16 %v73
    %v1727 = vunpack.c.l.b16 %v74
    %v1728 = vunpack.c.h.b16 %v74
    %v1729 = vunpack.c.l.b16 %v75
    %v1730 = vunpack.c.h.b16 %v75
    %v1731 = vunpack.c.l.b16 %v76
    %v1732 = vunpack.c.h.b16 %v76
    %v1733 = vunpack.c.l.b16 %v77
    %v1734 = vunpack.c.h.b16 %v77
    %v1735 = vunpack.c.l.b16 %v78
    %v1736 = vunpack.c.h.b16 %v78
    %v1737 = vunpack.c.l.b16 %v79
    %v1738 = vunpack.c.h.b16 %v79
    %v1739 = vunpack.c.l.b16 %v80
    %v1740 = vunpack.c.h.b16 %v80
    %v1741 = vunpack.c.l.b16 %v81
    %v1742 = vunpack.c.h.b16 %v81
    %v1743 = vunpack.c.l.b16 %v82
    %v1744 = vunpack.c.h.b16 %v82
    %v1745 = vunpack.c.l.b16 %v83
    %v1746 = vunpack.c.h.b16 %v83
    %v1747 = vunpack.c.l.b16 %v84
    %v1748 = vunpack.c.h.b16 %v84
    %v1749 = vunpack.c.l.b16 %v85
    %v1750 = vunpack.c.h.b16 %v85
    %v1751 = vunpack.c.l.b16 %v86
    %v1752 = vunpack.c.h.b16 %v86
    %v1753 = vunpack.c.l.b16 %v87
    %v1754 = vunpack.c.h.b16 %v87
    %v1755 = vunpack.c.l.b16 %v88
    %v1756 = vunpack.c.h.b16 %v88
    %v1757 = vunpack.c.l.b16 %v89
    %v1758 = vunpack.c.h.b16 %v89
    %v1759 = vunpack.c.l.b16 %v90
    %v1760 = vunpack.c.h.b16 %v90
    %v1761 = vunpack.c.l.b16 %v91
    %v1762 = vunpack.c.h.b16 %v91
    %v1763 = vunpack.c.l.b16 %v92
    %v1764 = vunpack.c.h.b16 %v92
    %v1765 = vunpack.c.l.b16 %v93
    %v1766 = vunpack.c.h.b16 %v93
    %v1767 = vunpack.c.l.b16 %v94
    %v1768 = vunpack.c.h.b16 %v94
    %v1769 = vunpack.c.l.b16 %v95
    %v1770 = vunpack.c.h.b16 %v95
    %v1771 = vunpack.c.l.b16 %v96
    %v1772 = vunpack.c.h.b16 %v96
    %v1773 = vunpack.c.l.b16 %v97
    %v1774 = vunpack.c.h.b16 %v97
    %v1775 = vunpack.c.l.b16 %v98
    %v1776 = vunpack.c.h.b16 %v98
    %v1777 = vunpack.c.l.b16 %v99
    %v1778 = vunpack.c.h.b16 %v99
    %v1779 = vunpack.c.l.b16 %v100
    %v1780 = vunpack.c.h.b16 %v100
    %v1781 = vunpack.c.l.b16 %v101
    %v1782 = vunpack.c.h.b16 %v101
    %v1783 = vunpack.c.l.b16 %v102
    %v1784 = vunpack.c.h.b16 %v102
    %v1785 = vunpack.c.l.b16 %v103
    %v1786 = vunpack.c.h.b16 %v103
    %v1787 = vunpack.c.l.b16 %v104
    %v1788 = vunpack.c.h.b16 %v104
    %v1789 = vunpack.c.l.b16 %v105
    %v1790 = vunpack.c.h.b16 %v105
    %v1791 = vunpack.c.l.b16 %v106
    %v1792 = vunpack.c.l.b16 %v107
    %v1793 = vunpack.c.h.b16 %v107
    %v1794 = vunpack.c.l.b16 %v108
    %v1795 = vunpack.c.h.b16 %v108
    %v1796 = vunpack.c.l.b16 %v109
    %v1797 = vunpack.c.h.b16 %v109
    %v1798 = vunpack.c.l.b16 %v110
    %v1799 = vunpack.c.h.b16 %v110
    %v1800 = vunpack.c.l.b16 %v111
    %v1801 = vunpack.c.h.b16 %v111
    %v1802 = vunpack.c.l.b16 %v112
    %v1803 = vunpack.c.h.b16 %v112
    %v1804 = vunpack.c.l.b16 %v113
    %v1805 = vunpack.c.h.b16 %v113
    %v1806 = vunpack.c.l.b16 %v114
    %v1807 = vunpack.c.h.b16 %v114
    %v1808 = vunpack.c.l.b16 %v115
    %v1809 = vunpack.c.h.b16 %v115
    %v1810 = vunpack.c.l.b16 %v116
    %v1811 = vunpack.c.h.b16 %v116
    %v1812 = vunpack.c.l.b16 %v117
    %v1813 = vunpack.c.h.b16 %v117
    %v1814 = vunpack.c.l.b16 %v118
    %v1815 = vunpack.c.h.b16 %v118
    %v1816 = vunpack.c.l.b16 %v119
    %v1817 = vunpack.c.h.b16 %v119
    %v1818 = vunpack.c.l.b16 %v120
    %v1819 = vunpack.c.h.b16 %v120
    %v1820 = vunpack.c.l.b16 %v121
    %v1821 = vunpack.c.h.b16 %v121
    %v1822 = vunpack.c.l.b16 %v122
    %v1823 = vunpack.c.h.b16 %v122
    %v1824 = vunpack.c.l.b16 %v123
    %v1825 = vunpack.c.h.b16 %v123
    %v1826 = vunpack.c.l.b16 %v124
    %v1827 = vunpack.c.h.b16 %v124
    %v1828 = vunpack.c.l.b16 %v125
    %v1829 = vunpack.c.h.b16 %v125
    %v1830 = vunpack.c.l.b16 %v126
    %v1831 = vunpack.c.h.b16 %v126
    %v1832 = vunpack.c.l.b16 %v127
    %v1833 = vunpack.c.h.b16 %v127
    %v1834 = vunpack.c.l.b16 %v128
    %v1835 = vunpack.c.h.b16 %v128
    %v1836 = vunpack.c.l.b16 %v129
    %v1837 = vunpack.c.h.b16 %v129
    %v1838 = vunpack.c.l.b16 %v130
    %v1839 = vunpack.c.h.b16 %v130
    %v1840 = vunpack.c.l.b16 %v131
    %v1841 = vunpack.c.h.b16 %v131
    %v1842 = vunpack.c.l.b16 %v132
    %v1843 = vunpack.c.h.b16 %v132
    %v1844 = vunpack.c.l.b16 %v133
    %v1845 = vunpack.c.h.b16 %v133
    %v1846 = vunpack.c.l.b16 %v134
    %v1847 = vunpack.c.h.b16 %v134
    %v1848 = vunpack.c.l.b16 %v135
    %v1849 = vunpack.c.h.b16 %v135
    %v1850 = vunpack.c.l.b16 %v136
    %v1851 = vunpack.c.h.b16 %v136
    %v1852 = vunpack.c.l.b16 %v137
    %v1853 = vunpack.c.h.b16 %v137
    %v1854 = vunpack.c.l.b16 %v138
    %v1855 = vunpack.c.h.b16 %v138
    %v1856 = vunpack.c.l.b16 %v139
    %v1857 = vunpack.c.h.b16 %v139
    %v1858 = vunpack.c.l.b16 %v140
    %v1859 = vunpack.c.h.b16 %v140
    %v1860 = vunpack.c.l.b16 %v141
    %v1861 = vunpack.c.h.b16 %v141
    %v1862 = vunpack.c.l.b16 %v142
    %v1863 = vunpack.c.h.b16 %v142
    %v1864 = vunpack.c.l.b16 %v143
    %v1865 = vunpack.c.h.b16 %v143
    %v1866 = vunpack.c.l.b16 %v144
    %v1867 = vunpack.c.l.b16 %v145
    %v1868 = vunpack.c.h.b16 %v145
    %v1869 = vunpack.c.l.b16 %v146
    %v1870 = vunpack.c.h.b16 %v146
    %v1871 = vunpack.c.l.b16 %v147
    %v1872 = vunpack.c.h.b16 %v147
    %v1873 = vunpack.c.l.b16 %v148
    %v1874 = vunpack.c.h.b16 %v148
    %v1875 = vunpack.c.l.b16 %v149
    %v1876 = vunpack.c.h.b16 %v149
    %v1877 = vunpack.c.l.b16 %v150
    %v1878 = vunpack.c.h.b16 %v150
    %v1879 = vunpack.c.l.b16 %v151
    %v1880 = vunpack.c.h.b16 %v151
    %v1881 = vunpack.c.l.b16 %v152
    %v1882 = vunpack.c.h.b16 %v152
    %v1883 = vunpack.c.l.b16 %v153
    %v1884 = vunpack.c.h.b16 %v153
    %v1885 = vunpack.c.l.b16 %v154
    %v1886 = vunpack.c.h.b16 %v154
    %v1887 = vunpack.c.l.b16 %v155
    %v1888 = vunpack.c.h.b16 %v155
    %v1889 = vunpack.c.l.b16 %v156
    %v1890 = vunpack.c.h.b16 %v156
    %v1891 = vunpack.c.l.b16 %v157
    %v1892 = vunpack.c.h.b16 %v157
    %v1893 = vunpack.c.l.b16 %v158
    %v1894 = vunpack.c.h.b16 %v158
    %v1895 = vunpack.c.l.b16 %v159
    %v1896 = vunpack.c.h.b16 %v159
    %v1897 = vunpack.c.l.b16 %v160
    %v1898 = vunpack.c.h.b16 %v160
    %v1899 = vunpack.c.l.b16 %v161
    %v1900 = vunpack.c.h.b16 %v161
    %v1901 = vunpack.c.l.b16 %v162
    %v1902 = vunpack.c.h.b16 %v162
    %v1903 = vunpack.c.l.b16 %v163
    %v1904 = vunpack.c.h.b16 %v163
    %v1905 = vunpack.c.l.b16 %v164
    %v1906 = vunpack.c.h.b16 %v164
    %v1907 = vunpack.c.l.b16 %v165
    %v1908 = vunpack.c.h.b16 %v165
    %v1909 = vunpack.c.l.b16 %v166
    %v1910 = vunpack.c.h.b16 %v166
    %v1911 = vunpack.c.l.b16 %v167
    %v1912 = vunpack.c.h.b16 %v167
    %v1913 = vunpack.c.l.b16 %v168
    %v1914 = vunpack.c.h.b16 %v168
    %v1915 = vunpack.c.l.b16 %v169
    %v1916 = vunpack.c.h.b16 %v169
    %v1917 = vunpack.c.l.b16 %v170
    %v1918 = vunpack.c.h.b16 %v170
    %v1919 = vunpack.c.l.b16 %v171
    %v1920 = vunpack.c.h.b16 %v171
    %v1921 = vunpack.c.l.b16 %v172
    %v1922 = vunpack.c.h.b16 %v172
    %v1923 = vunpack.c.l.b16 %v173
    %v1924 = vunpack.c.h.b16 %v173
    %v1925 = vunpack.c.l.b16 %v174
    %v1926 = vunpack.c.h.b16 %v174
    %v1927 = vunpack.c.l.b16 %v175
    %v1928 = vunpack.c.h.b16 %v175
    %v1929 = vunpack.c.l.b16 %v176
    %v1930 = vunpack.c.h.b16 %v176
    %v1931 = vunpack.c.l.b16 %v177
    %v1932 = vunpack.c.h.b16 %v177
    %v1933 = vunpack.c.l.b16 %v178
    %v1934 = vunpack.c.h.b16 %v178
    %v1935 = vunpack.c.l.b16 %v179
    %v1936 = vunpack.c.h.b16 %v179
    %v1937 = vunpack.c.l.b16 %v180
    %v1938 = vunpack.c.h.b16 %v180
    %v1939 = vunpack.c.l.b16 %v181
    %v1940 = vunpack.c.h.b16 %v181
    %v1941 = vunpack.c.l.b16 %v182
    %v1942 = vunpack.c.l.b16 %v183
    %v1943 = vunpack.c.h.b16 %v183
    %v1944 = vunpack.c.l.b16 %v184
    %v1945 = vunpack.c.h.b16 %v184
    %v1946 = vunpack.c.l.b16 %v185
    %v1947 = vunpack.c.h.b16 %v185
    %v1948 = vunpack.c.l.b16 %v186
    %v1949 = vunpack.c.h.b16 %v186
    %v1950 = vunpack.c.l.b16 %v187
    %v1951 = vunpack.c.h.b16 %v187
    %v1952 = vunpack.c.l.b16 %v188
    %v1953 = vunpack.c.h.b16 %v188
    %v1954 = vunpack.c.l.b16 %v189
    %v1955 = vunpack.c.h.b16 %v189
    %v1956 = vunpack.c.l.b16 %v190
    %v1957 = vunpack.c.h.b16 %v190
    %v1958 = vunpack.c.l.b16 %v191
    %v1959 = vunpack.c.h.b16 %v191
    %v1960 = vunpack.c.l.b16 %v192
    %v1961 = vunpack.c.h.b16 %v192
    %v1962 = vunpack.c.l.b16 %v193
    %v1963 = vunpack.c.h.b16 %v193
    %v1964 = vunpack.c.l.b16 %v194
    %v1965 = vunpack.c.h.b16 %v194
    %v1966 = vunpack.c.l.b16 %v195
    %v1967 = vunpack.c.h.b16 %v195
    %v1968 = vunpack.c.l.b16 %v196
    %v1969 = vunpack.c.h.b16 %v196
    %v1970 = vunpack.c.l.b16 %v197
    %v1971 = vunpack.c.h.b16 %v197
    %v1972 = vunpack.c.l.b16 %v198
    %v1973 = vunpack.c.h.b16 %v198
    %v1974 = vunpack.c.l.b16 %v199
    %v1975 = vunpack.c.h.b16 %v199
    %v1976 = vunpack.c.l.b16 %v200
    %v1977 = vunpack.c.h.b16 %v200
    %v1978 = vunpack.c.l.b16 %v201
    %v1979 = vunpack.c.h.b16 %v201
    %v1980 = vunpack.c.l.b16 %v202
    %v1981 = vunpack.c.h.b16 %v202
    %v1982 = vunpack.c.l.b16 %v203
    %v1983 = vunpack.c.h.b16 %v203
    %v1984 = vunpack.c.l.b16 %v204
    %v1985 = vunpack.c.h.b16 %v204
    %v1986 = vunpack.c.l.b16 %v205
    %v1987 = vunpack.c.h.b16 %v205
    %v1988 = vunpack.c.l.b16 %v206
    %v1989 = vunpack.c.h.b16 %v206
    %v1990 = vunpack.c.l.b16 %v207
    %v1991 = vunpack.c.h.b16 %v207
    %v1992 = vunpack.c.l.b16 %v208
    %v1993 = vunpack.c.h.b16 %v208
    %v1994 = vunpack.c.l.b16 %v209
    %v1995 = vunpack.c.h.b16 %v209
    %v1996 = vunpack.c.l.b16 %v210
    %v1997 = vunpack.c.h.b16 %v210
    %v1998 = vunpack.c.l.b16 %v211
    %v1999 = vunpack.c.h.b16 %v211
    %v2000 = vunpack.c.l.b16 %v212
    %v2001 = vunpack.c.h.b16 %v212
    %v2002 = vunpack.c.l.b16 %v213
    %v2003 = vunpack.c.h.b16 %v213
    %v2004 = vunpack.c.l.b16 %v214
    %v2005 = vunpack.c.h.b16 %v214
    %v2006 = vunpack.c.l.b16 %v215
    %v2007 = vunpack.c.h.b16 %v215
    %v2008 = vunpack.c.l.b16 %v216
    %v2009 = vunpack.c.h.b16 %v216
    %v2010 = vunpack.c.l.b16 %v217
    %v2011 = vunpack.c.h.b16 %v217
    %v2012 = vunpack.c.l.b16 %v218
    %v2013 = vunpack.c.h.b16 %v218
    %v2014 = vunpack.c.l.b16 %v219
    %v2015 = vunpack.c.h.b16 %v219
    %v2016 = vunpack.c.l.b16 %v220
    %v2017 = vunpack.c.l.b16 %v221
    %v2018 = vunpack.c.h.b16 %v221
    %v2019 = vunpack.c.l.b16 %v222
    %v2020 = vunpack.c.h.b16 %v222
    %v2021 = vunpack.c.l.b16 %v223
    %v2022 = vunpack.c.h.b16 %v223
    %v2023 = vunpack.c.l.b16 %v224
    %v2024 = vunpack.c.h.b16 %v224
    %v2025 = vunpack.c.l.b16 %v225
    %v2026 = vunpack.c.h.b16 %v225
    %v2027 = vunpack.c.l.b16 %v226
    %v2028 = vunpack.c.h.b16 %v226
    %v2029 = vunpack.c.l.b16 %v227
    %v2030 = vunpack.c.h.b16 %v227
    %v2031 = vunpack.c.l.b16 %v228
    %v2032 = vunpack.c.h.b16 %v228
    %v2033 = vunpack.c.l.b16 %v229
    %v2034 = vunpack.c.h.b16 %v229
    %v2035 = vunpack.c.l.b16 %v230
    %v2036 = vunpack.c.h.b16 %v230
    %v2037 = vunpack.c.l.b16 %v231
    %v2038 = vunpack.c.h.b16 %v231
    %v2039 = vunpack.c.l.b16 %v232
    %v2040 = vunpack.c.h.b16 %v232
    %v2041 = vunpack.c.l.b16 %v233
    %v2042 = vunpack.c.h.b16 %v233
    %v2043 = vunpack.c.l.b16 %v234
    %v2044 = vunpack.c.h.b16 %v234
    %v2045 = vunpack.c.l.b16 %v235
    %v2046 = vunpack.c.h.b16 %v235
    %v2047 = vunpack.c.l.b16 %v236
    %v2048 = vunpack.c.h.b16 %v236
    %v2049 = vunpack.c.l.b16 %v237
    %v2050 = vunpack.c.h.b16 %v237
    %v2051 = vunpack.c.l.b16 %v238
    %v2052 = vunpack.c.h.b16 %v238
    %v2053 = vunpack.c.l.b16 %v239
    %v2054 = vunpack.c.h.b16 %v239
    %v2055 = vunpack.c.l.b16 %v240
    %v2056 = vunpack.c.h.b16 %v240
    %v2057 = vunpack.c.l.b16 %v241
    %v2058 = vunpack.c.h.b16 %v241
    %v2059 = vunpack.c.l.b16 %v242
    %v2060 = vunpack.c.h.b16 %v242
    %v2061 = vunpack.c.l.b16 %v243
    %v2062 = vunpack.c.h.b16 %v243
    %v2063 = vunpack.c.l.b16 %v244
    %v2064 = vunpack.c.h.b16 %v244
    %v2065 = vunpack.c.l.b16 %v245
    %v2066 = vunpack.c.h.b16 %v245
    %v2067 = vunpack.c.l.b16 %v246
    %v2068 = vunpack.c.h.b16 %v246
    %v2069 = vunpack.c.l.b16 %v247
    %v2070 = vunpack.c.h.b16 %v247
    %v2071 = vunpack.c.l.b16 %v248
    %v2072 = vunpack.c.h.b16 %v248
    %v2073 = vunpack.c.l.b16 %v249
    %v2074 = vunpack.c.h.b16 %v249
    %v2075 = vunpack.c.l.b16 %v250
    %v2076 = vunpack.c.h.b16 %v250
    %v2077 = vunpack.c.l.b16 %v251
    %v2078 = vunpack.c.h.b16 %v251
    %v2079 = vunpack.c.l.b16 %v252
    %v2080 = vunpack.c.h.b16 %v252
    %v2081 = vunpack.c.l.b16 %v253
    %v2082 = vunpack.c.h.b16 %v253
    %v2083 = vunpack.c.l.b16 %v254
    %v2084 = vunpack.c.h.b16 %v254
    %v2085 = vunpack.c.l.b16 %v255
    %v2086 = vunpack.c.h.b16 %v255
    %v2087 = vunpack.c.l.b16 %v256
    %v2088 = vunpack.c.h.b16 %v256
    %v2089 = vunpack.c.l.b16 %v257
    %v2090 = vunpack.c.h.b16 %v257
    %v2091 = vunpack.c.l.b16 %v258
    %v2092 = vunpack.c.l.b16 %v259
    %v2093 = vunpack.c.h.b16 %v259
    %v2094 = vunpack.c.l.b16 %v260
    %v2095 = vunpack.c.h.b16 %v260
    %v2096 = vunpack.c.l.b16 %v261
    %v2097 = vunpack.c.h.b16 %v261
    %v2098 = vunpack.c.l.b16 %v262
    %v2099 = vunpack.c.h.b16 %v262
    %v2100 = vunpack.c.l.b16 %v263
    %v2101 = vunpack.c.h.b16 %v263
    %v2102 = vunpack.c.l.b16 %v264
    %v2103 = vunpack.c.h.b16 %v264
    %v2104 = vunpack.c.l.b16 %v265
    %v2105 = vunpack.c.h.b16 %v265
    %v2106 = vunpack.c.l.b16 %v266
    %v2107 = vunpack.c.h.b16 %v266
    %v2108 = vunpack.c.l.b16 %v267
    %v2109 = vunpack.c.h.b16 %v267
    %v2110 = vunpack.c.l.b16 %v268
    %v2111 = vunpack.c.h.b16 %v268
    %v2112 = vunpack.c.l.b16 %v269
    %v2113 = vunpack.c.h.b16 %v269
    %v2114 = vunpack.c.l.b16 %v270
    %v2115 = vunpack.c.h.b16 %v270
    %v2116 = vunpack.c.l.b16 %v271
    %v2117 = vunpack.c.h.b16 %v271
    %v2118 = vunpack.c.l.b16 %v272
    %v2119 = vunpack.c.h.b16 %v272
    %v2120 = vunpack.c.l.b16 %v273
    %v2121 = vunpack.c.h.b16 %v273
    %v2122 = vunpack.c.l.b16 %v274
    %v2123 = vunpack.c.h.b16 %v274
    %v2124 = vunpack.c.l.b16 %v275
    %v2125 = vunpack.c.h.b16 %v275
    %v2126 = vunpack.c.l.b16 %v276
    %v2127 = vunpack.c.h.b16 %v276
    %v2128 = vunpack.c.l.b16 %v277
    %v2129 = vunpack.c.h.b16 %v277
    %v2130 = vunpack.c.l.b16 %v278
    %v2131 = vunpack.c.h.b16 %v278
    %v2132 = vunpack.c.l.b16 %v279
    %v2133 = vunpack.c.h.b16 %v279
    %v2134 = vunpack.c.l.b16 %v280
    %v2135 = vunpack.c.h.b16 %v280
    %v2136 = vunpack.c.l.b16 %v281
    %v2137 = vunpack.c.h.b16 %v281
    %v2138 = vunpack.c.l.b16 %v282
    %v2139 = vunpack.c.h.b16 %v282
    %v2140 = vunpack.c.l.b16 %v283
    %v2141 = vunpack.c.h.b16 %v283
    %v2142 = vunpack.c.l.b16 %v284
    %v2143 = vunpack.c.h.b16 %v284
    %v2144 = vunpack.c.l.b16 %v285
    %v2145 = vunpack.c.h.b16 %v285
    %v2146 = vunpack.c.l.b16 %v286
    %v2147 = vunpack.c.h.b16 %v286
    %v2148 = vunpack.c.l.b16 %v287
    %v2149 = vunpack.c.h.b16 %v287
    %v2150 = vunpack.c.l.b16 %v288
    %v2151 = vunpack.c.h.b16 %v288
    %v2152 = vunpack.c.l.b16 %v289
    %v2153 = vunpack.c.h.b16 %v289
    %v2154 = vunpack.c.l.b16 %v290
    %v2155 = vunpack.c.h.b16 %v290
    %v2156 = vunpack.c.l.b16 %v291
    %v2157 = vunpack.c.h.b16 %v291
    %v2158 = vunpack.c.l.b16 %v292
    %v2159 = vunpack.c.h.b16 %v292
    %v2160 = vunpack.c.l.b16 %v293
    %v2161 = vunpack.c.h.b16 %v293
    %v2162 = vunpack.c.l.b16 %v294
    %v2163 = vunpack.c.h.b16 %v294
    %v2164 = vunpack.c.l.b16 %v295
    %v2165 = vunpack.c.h.b16 %v295
    %v2166 = vunpack.c.l.b16 %v296
    %v2167 = vunpack.c.l.b16 %v297
    %v2168 = vunpack.c.h.b16 %v297
    %v2169 = vunpack.c.l.b16 %v298
    %v2170 = vunpack.c.h.b16 %v298
    %v2171 = vunpack.c.l.b16 %v299
    %v2172 = vunpack.c.h.b16 %v299
    %v2173 = vunpack.c.l.b16 %v300
    %v2174 = vunpack.c.h.b16 %v300
    %v2175 = vunpack.c.l.b16 %v301
    %v2176 = vunpack.c.h.b16 %v301
    %v2177 = vunpack.c.l.b16 %v302
    %v2178 = vunpack.c.h.b16 %v302
    %v2179 = vunpack.c.l.b16 %v303
    %v2180 = vunpack.c.h.b16 %v303
    %v2181 = vunpack.c.l.b16 %v304
    %v2182 = vunpack.c.h.b16 %v304
    %v2183 = vunpack.c.l.b16 %v305
    %v2184 = vunpack.c.h.b16 %v305
    %v2185 = vunpack.c.l.b16 %v306
    %v2186 = vunpack.c.h.b16 %v306
    %v2187 = vunpack.c.l.b16 %v307
    %v2188 = vunpack.c.h.b16 %v307
    %v2189 = vunpack.c.l.b16 %v308
    %v2190 = vunpack.c.h.b16 %v308
    %v2191 = vunpack.c.l.b16 %v309
    %v2192 = vunpack.c.h.b16 %v309
    %v2193 = vunpack.c.l.b16 %v310
    %v2194 = vunpack.c.h.b16 %v310
    %v2195 = vunpack.c.l.b16 %v311
    %v2196 = vunpack.c.h.b16 %v311
    %v2197 = vunpack.c.l.b16 %v312
    %v2198 = vunpack.c.h.b16 %v312
    %v2199 = vunpack.c.l.b16 %v313
    %v2200 = vunpack.c.h.b16 %v313
    %v2201 = vunpack.c.l.b16 %v314
    %v2202 = vunpack.c.h.b16 %v314
    %v2203 = vunpack.c.l.b16 %v315
    %v2204 = vunpack.c.h.b16 %v315
    %v2205 = vunpack.c.l.b16 %v316
    %v2206 = vunpack.c.h.b16 %v316
    %v2207 = vunpack.c.l.b16 %v317
    %v2208 = vunpack.c.h.b16 %v317
    %v2209 = vunpack.c.l.b16 %v318
    %v2210 = vunpack.c.h.b16 %v318
    %v2211 = vunpack.c.l.b16 %v319
    %v2212 = vunpack.c.h.b16 %v319
    %v2213 = vunpack.c.l.b16 %v320
    %v2214 = vunpack.c.h.b16 %v320
    %v2215 = vunpack.c.l.b16 %v321
    %v2216 = vunpack.c.h.b16 %v321
    %v2217 = vunpack.c.l.b16 %v322
    %v2218 = vunpack.c.h.b16 %v322
    %v2219 = vunpack.c.l.b16 %v323
    %v2220 = vunpack.c.h.b16 %v323
    %v2221 = vunpack.c.l.b16 %v324
    %v2222 = vunpack.c.h.b16 %v324
    %v2223 = vunpack.c.l.b16 %v325
    %v2224 = vunpack.c.h.b16 %v325
    %v2225 = vunpack.c.l.b16 %v326
    %v2226 = vunpack.c.h.b16 %v326
    %v2227 = vunpack.c.l.b16 %v327
    %v2228 = vunpack.c.h.b16 %v327
    %v2229 = vunpack.c.l.b16 %v328
    %v2230 = vunpack.c.h.b16 %v328
    %v2231 = vunpack.c.l.b16 %v329
    %v2232 = vunpack.c.h.b16 %v329
    %v2233 = vunpack.c.l.b16 %v330
    %v2234 = vunpack.c.h.b16 %v330
    %v2235 = vunpack.c.l.b16 %v331
    %v2236 = vunpack.c.h.b16 %v331
    %v2237 = vunpack.c.l.b16 %v332
    %v2238 = vunpack.c.h.b16 %v332
    %v2239 = vunpack.c.l.b16 %v333
    %v2240 = vunpack.c.h.b16 %v333
    %v2241 = vunpack.c.l.b16 %v334
    %v2242 = vunpack.c.l.b16 %v335
    %v2243 = vunpack.c.h.b16 %v335
    %v2244 = vunpack.c.l.b16 %v336
    %v2245 = vunpack.c.h.b16 %v336
    %v2246 = vunpack.c.l.b16 %v337
    %v2247 = vunpack.c.h.b16 %v337
    %v2248 = vunpack.c.l.b16 %v338
    %v2249 = vunpack.c.h.b16 %v338
    %v2250 = vunpack.c.l.b16 %v339
    %v2251 = vunpack.c.h.b16 %v339
    %v2252 = vunpack.c.l.b16 %v340
    %v2253 = vunpack.c.h.b16 %v340
    %v2254 = vunpack.c.l.b16 %v341
    %v2255 = vunpack.c.h.b16 %v341
    %v2256 = vunpack.c.l.b16 %v342
    %v2257 = vunpack.c.h.b16 %v342
    %v2258 = vunpack.c.l.b16 %v343
    %v2259 = vunpack.c.h.b16 %v343
    %v2260 = vunpack.c.l.b16 %v344
    %v2261 = vunpack.c.h.b16 %v344
    %v2262 = vunpack.c.l.b16 %v345
    %v2263 = vunpack.c.h.b16 %v345
    %v2264 = vunpack.c.l.b16 %v346
    %v2265 = vunpack.c.h.b16 %v346
    %v2266 = vunpack.c.l.b16 %v347
    %v2267 = vunpack.c.h.b16 %v347
    %v2268 = vunpack.c.l.b16 %v348
    %v2269 = vunpack.c.h.b16 %v348
    %v2270 = vunpack.c.l.b16 %v349
    %v2271 = vunpack.c.h.b16 %v349
    %v2272 = vunpack.c.l.b16 %v350
    %v2273 = vunpack.c.h.b16 %v350
    %v2274 = vunpack.c.l.b16 %v351
    %v2275 = vunpack.c.h.b16 %v351
    %v2276 = vunpack.c.l.b16 %v352
    %v2277 = vunpack.c.h.b16 %v352
    %v2278 = vunpack.c.l.b16 %v353
    %v2279 = vunpack.c.h.b16 %v353
    %v2280 = vunpack.c.l.b16 %v354
    %v2281 = vunpack.c.h.b16 %v354
    %v2282 = vunpack.c.l.b16 %v355
    %v2283 = vunpack.c.h.b16 %v355
    %v2284 = vunpack.c.l.b16 %v356
    %v2285 = vunpack.c.h.b16 %v356
    %v2286 = vunpack.c.l.b16 %v357
    %v2287 = vunpack.c.h.b16 %v357
    %v2288 = vunpack.c.l.b16 %v358
    %v2289 = vunpack.c.h.b16 %v358
    %v2290 = vunpack.c.l.b16 %v359
    %v2291 = vunpack.c.h.b16 %v359
    %v2292 = vunpack.c.l.b16 %v360
    %v2293 = vunpack.c.h.b16 %v360
    %v2294 = vunpack.c.l.b16 %v361
    %v2295 = vunpack.c.h.b16 %v361
    %v2296 = vunpack.c.l.b16 %v362
    %v2297 = vunpack.c.h.b16 %v362
    %v2298 = vunpack.c.l.b16 %v363
    %v2299 = vunpack.c.h.b16 %v363
    %v2300 = vunpack.c.l.b16 %v364
    %v2301 = vunpack.c.h.b16 %v364
    %v2302 = vunpack.c.l.b16 %v365
    %v2303 = vunpack.c.h.b16 %v365
    %v2304 = vunpack.c.l.b16 %v366
    %v2305 = vunpack.c.h.b16 %v366
    %v2306 = vunpack.c.l.b16 %v367
    %v2307 = vunpack.c.h.b16 %v367
    %v2308 = vunpack.c.l.b16 %v368
    %v2309 = vunpack.c.h.b16 %v368
    %v2310 = vunpack.c.l.b16 %v369
    %v2311 = vunpack.c.h.b16 %v369
    %v2312 = vunpack.c.l.b16 %v370
    %v2313 = vunpack.c.h.b16 %v370
    %v2314 = vunpack.c.l.b16 %v371
    %v2315 = vunpack.c.h.b16 %v371
    %v2316 = vunpack.c.l.b16 %v372
    %v2317 = vunpack.c.l.b16 %v373
    %v2318 = vunpack.c.h.b16 %v373
    %v2319 = vunpack.c.l.b16 %v374
    %v2320 = vunpack.c.h.b16 %v374
    %v2321 = vunpack.c.l.b16 %v375
    %v2322 = vunpack.c.h.b16 %v375
    %v2323 = vunpack.c.l.b16 %v376
    %v2324 = vunpack.c.h.b16 %v376
    %v2325 = vunpack.c.l.b16 %v377
    %v2326 = vunpack.c.h.b16 %v377
    %v2327 = vunpack.c.l.b16 %v378
    %v2328 = vunpack.c.h.b16 %v378
    %v2329 = vunpack.c.l.b16 %v379
    %v2330 = vunpack.c.h.b16 %v379
    %v2331 = vunpack.c.l.b16 %v380
    %v2332 = vunpack.c.h.b16 %v380
    %v2333 = vunpack.c.l.b16 %v381
    %v2334 = vunpack.c.h.b16 %v381
    %v2335 = vunpack.c.l.b16 %v382
    %v2336 = vunpack.c.h.b16 %v382
    %v2337 = vunpack.c.l.b16 %v383
    %v2338 = vunpack.c.h.b16 %v383
    %v2339 = vunpack.c.l.b16 %v384
    %v2340 = vunpack.c.h.b16 %v384
    %v2341 = vunpack.c.l.b16 %v385
    %v2342 = vunpack.c.h.b16 %v385
    %v2343 = vunpack.c.l.b16 %v386
    %v2344 = vunpack.c.h.b16 %v386
    %v2345 = vunpack.c.l.b16 %v387
    %v2346 = vunpack.c.h.b16 %v387
    %v2347 = vunpack.c.l.b16 %v388
    %v2348 = vunpack.c.h.b16 %v388
    %v2349 = vunpack.c.l.b16 %v389
    %v2350 = vunpack.c.h.b16 %v389
    %v2351 = vunpack.c.l.b16 %v390
    %v2352 = vunpack.c.h.b16 %v390
    %v2353 = vunpack.c.l.b16 %v391
    %v2354 = vunpack.c.h.b16 %v391
    %v2355 = vunpack.c.l.b16 %v392
    %v2356 = vunpack.c.h.b16 %v392
    %v2357 = vunpack.c.l.b16 %v393
    %v2358 = vunpack.c.h.b16 %v393
    %v2359 = vunpack.c.l.b16 %v394
    %v2360 = vunpack.c.h.b16 %v394
    %v2361 = vunpack.c.l.b16 %v395
    %v2362 = vunpack.c.h.b16 %v395
    %v2363 = vunpack.c.l.b16 %v396
    %v2364 = vunpack.c.h.b16 %v396
    %v2365 = vunpack.c.l.b16 %v397
    %v2366 = vunpack.c.h.b16 %v397
    %v2367 = vunpack.c.l.b16 %v398
    %v2368 = vunpack.c.h.b16 %v398
    %v2369 = vunpack.c.l.b16 %v399
    %v2370 = vunpack.c.h.b16 %v399
    %v2371 = vunpack.c.l.b16 %v400
    %v2372 = vunpack.c.h.b16 %v400
    %v2373 = vunpack.c.l.b16 %v401
    %v2374 = vunpack.c.h.b16 %v401
    %v2375 = vunpack.c.l.b16 %v402
    %v2376 = vunpack.c.h.b16 %v402
    %v2377 = vunpack.c.l.b16 %v403
    %v2378 = vunpack.c.h.b16 %v403
    %v2379 = vunpack.c.l.b16 %v404
    %v2380 = vunpack.c.h.b16 %v404
    %v2381 = vunpack.c.l.b16 %v405
    %v2382 = vunpack.c.h.b16 %v405
    %v2383 = vunpack.c.l.b16 %v406
    %v2384 = vunpack.c.h.b16 %v406
    %v2385 = vunpack.c.l.b16 %v407
    %v2386 = vunpack.c.h.b16 %v407
    %v2387 = vunpack.c.l.b16 %v408
    %v2388 = vunpack.c.h.b16 %v408
    %v2389 = vunpack.c.l.b16 %v409
    %v2390 = vunpack.c.h.b16 %v409
    %v2391 = vunpack.c.l.b16 %v410
    %v2392 = vunpack.c.l.b16 %v411
    %v2393 = vunpack.c.h.b16 %v411
    %v2394 = vunpack.c.l.b16 %v412
    %v2395 = vunpack.c.h.b16 %v412
    %v2396 = vunpack.c.l.b16 %v413
    %v2397 = vunpack.c.h.b16 %v413
    %v2398 = vunpack.c.l.b16 %v414
    %v2399 = vunpack.c.h.b16 %v414
    %v2400 = vunpack.c.l.b16 %v415
    %v2401 = vunpack.c.h.b16 %v415
    %v2402 = vunpack.c.l.b16 %v416
    %v2403 = vunpack.c.h.b16 %v416
    %v2404 = vunpack.c.l.b16 %v417
    %v2405 = vunpack.c.h.b16 %v417
    %v2406 = vunpack.c.l.b16 %v418
    %v2407 = vunpack.c.h.b16 %v418
    %v2408 = vunpack.c.l.b16 %v419
    %v2409 = vunpack.c.h.b16 %v419
    %v2410 = vunpack.c.l.b16 %v420
    %v2411 = vunpack.c.h.b16 %v420
    %v2412 = vunpack.c.l.b16 %v421
    %v2413 = vunpack.c.h.b16 %v421
    %v2414 = vunpack.c.l.b16 %v422
    %v2415 = vunpack.c.h.b16 %v422
    %v2416 = vunpack.c.l.b16 %v423
    %v2417 = vunpack.c.h.b16 %v423
    %v2418 = vunpack.c.l.b16 %v424
    %v2419 = vunpack.c.h.b16 %v424
    %v2420 = vunpack.c.l.b16 %v425
    %v2421 = vunpack.c.h.b16 %v425
    %v2422 = vunpack.c.l.b16 %v426
    %v2423 = vunpack.c.h.b16 %v426
    %v2424 = vunpack.c.l.b16 %v427
    %v2425 = vunpack.c.h.b16 %v427
    %v2426 = vunpack.c.l.b16 %v428
    %v2427 = vunpack.c.h.b16 %v428
    %v2428 = vunpack.c.l.b16 %v429
    %v2429 = vunpack.c.h.b16 %v429
    %v2430 = vunpack.c.l.b16 %v430
    %v2431 = vunpack.c.h.b16 %v430
    %v2432 = vunpack.c.l.b16 %v431
    %v2433 = vunpack.c.h.b16 %v431
    %v2434 = vunpack.c.l.b16 %v432
    %v2435 = vunpack.c.h.b16 %v432
    %v2436 = vunpack.c.l.b16 %v433
    %v2437 = vunpack.c.h.b16 %v433
    %v2438 = vunpack.c.l.b16 %v434
    %v2439 = vunpack.c.h.b16 %v434
    %v2440 = vunpack.c.l.b16 %v435
    %v2441 = vunpack.c.h.b16 %v435
    %v2442 = vunpack.c.l.b16 %v436
    %v2443 = vunpack.c.h.b16 %v436
    %v2444 = vunpack.c.l.b16 %v437
    %v2445 = vunpack.c.h.b16 %v437
    %v2446 = vunpack.c.l.b16 %v438
    %v2447 = vunpack.c.h.b16 %v438
    %v2448 = vunpack.c.l.b16 %v439
    %v2449 = vunpack.c.h.b16 %v439
    %v2450 = vunpack.c.l.b16 %v440
    %v2451 = vunpack.c.h.b16 %v440
    %v2452 = vunpack.c.l.b16 %v441
    %v2453 = vunpack.c.h.b16 %v441
    %v2454 = vunpack.c.l.b16 %v442
    %v2455 = vunpack.c.h.b16 %v442
    %v2456 = vunpack.c.l.b16 %v443
    %v2457 = vunpack.c.h.b16 %v443
    %v2458 = vunpack.c.l.b16 %v444
    %v2459 = vunpack.c.h.b16 %v444
    %v2460 = vunpack.c.l.b16 %v445
    %v2461 = vunpack.c.h.b16 %v445
    %v2462 = vunpack.c.l.b16 %v446
    %v2463 = vunpack.c.h.b16 %v446
    %v2464 = vunpack.c.l.b16 %v447
    %v2465 = vunpack.c.h.b16 %v447
    %v2466 = vunpack.c.l.b16 %v448
    %v2467 = vunpack.c.l.b16 %v449
    %v2468 = vunpack.c.h.b16 %v449
    %v2469 = vunpack.c.l.b16 %v450
    %v2470 = vunpack.c.h.b16 %v450
    %v2471 = vunpack.c.l.b16 %v451
    %v2472 = vunpack.c.h.b16 %v451
    %v2473 = vunpack.c.l.b16 %v452
    %v2474 = vunpack.c.h.b16 %v452
    %v2475 = vunpack.c.l.b16 %v453
    %v2476 = vunpack.c.h.b16 %v453
    %v2477 = vunpack.c.l.b16 %v454
    %v2478 = vunpack.c.h.b16 %v454
    %v2479 = vunpack.c.l.b16 %v455
    %v2480 = vunpack.c.h.b16 %v455
    %v2481 = vunpack.c.l.b16 %v456
    %v2482 = vunpack.c.h.b16 %v456
    %v2483 = vunpack.c.l.b16 %v457
    %v2484 = vunpack.c.h.b16 %v457
    %v2485 = vunpack.c.l.b16 %v458
    %v2486 = vunpack.c.h.b16 %v458
    %v2487 = vunpack.c.l.b16 %v459
    %v2488 = vunpack.c.h.b16 %v459
    %v2489 = vunpack.c.l.b16 %v460
    %v2490 = vunpack.c.h.b16 %v460
    %v2491 = vunpack.c.l.b16 %v461
    %v2492 = vunpack.c.h.b16 %v461
    %v2493 = vunpack.c.l.b16 %v462
    %v2494 = vunpack.c.h.b16 %v462
    %v2495 = vunpack.c.l.b16 %v463
    %v2496 = vunpack.c.h.b16 %v463
    %v2497 = vunpack.c.l.b16 %v464
    %v2498 = vunpack.c.h.b16 %v464
    %v2499 = vunpack.c.l.b16 %v465
    %v2500 = vunpack.c.h.b16 %v465
    %v2501 = vunpack.c.l.b16 %v466
    %v2502 = vunpack.c.h.b16 %v466
    %v2503 = vunpack.c.l.b16 %v467
    %v2504 = vunpack.c.h.b16 %v467
    %v2505 = vunpack.c.l.b16 %v468
    %v2506 = vunpack.c.h.b16 %v468
    %v2507 = vunpack.c.l.b16 %v469
    %v2508 = vunpack.c.h.b16 %v469
    %v2509 = vunpack.c.l.b16 %v470
    %v2510 = vunpack.c.h.b16 %v470
    %v2511 = vunpack.c.l.b16 %v471
    %v2512 = vunpack.c.h.b16 %v471
    %v2513 = vunpack.c.l.b16 %v472
    %v2514 = vunpack.c.h.b16 %v472
    %v2515 = vunpack.c.l.b16 %v473
    %v2516 = vunpack.c.h.b16 %v473
    %v2517 = vunpack.c.l.b16 %v474
    %v2518 = vunpack.c.h.b16 %v474
    %v2519 = vunpack.c.l.b16 %v475
    %v2520 = vunpack.c.h.b16 %v475
    %v2521 = vunpack.c.l.b16 %v476
    %v2522 = vunpack.c.h.b16 %v476
    %v2523 = vunpack.c.l.b16 %v477
    %v2524 = vunpack.c.h.b16 %v477
    %v2525 = vunpack.c.l.b16 %v478
    %v2526 = vunpack.c.h.b16 %v478
    %v2527 = vunpack.c.l.b16 %v479
    %v2528 = vunpack.c.h.b16 %v479
    %v2529 = vunpack.c.l.b16 %v480
    %v2530 = vunpack.c.h.b16 %v480
    %v2531 = vunpack.c.l.b16 %v481
    %v2532 = vunpack.c.h.b16 %v481
    %v2533 = vunpack.c.l.b16 %v482
    %v2534 = vunpack.c.h.b16 %v482
    %v2535 = vunpack.c.l.b16 %v483
    %v2536 = vunpack.c.h.b16 %v483
    %v2537 = vunpack.c.l.b16 %v484
    %v2538 = vunpack.c.h.b16 %v484
    %v2539 = vunpack.c.l.b16 %v485
    %v2540 = vunpack.c.h.b16 %v485
    %v2541 = vunpack.c.l.b16 %v486
    %v2542 = vunpack.c.l.b16 %v487
    %v2543 = vunpack.c.h.b16 %v487
    %v2544 = vunpack.c.l.b16 %v488
    %v2545 = vunpack.c.h.b16 %v488
    %v2546 = vunpack.c.l.b16 %v489
    %v2547 = vunpack.c.h.b16 %v489
    %v2548 = vunpack.c.l.b16 %v490
    %v2549 = vunpack.c.h.b16 %v490
    %v2550 = vunpack.c.l.b16 %v491
    %v2551 = vunpack.c.h.b16 %v491
    %v2552 = vunpack.c.l.b16 %v492
    %v2553 = vunpack.c.h.b16 %v492
    %v2554 = vunpack.c.l.b16 %v493
    %v2555 = vunpack.c.h.b16 %v493
    %v2556 = vunpack.c.l.b16 %v494
    %v2557 = vunpack.c.h.b16 %v494
    %v2558 = vunpack.c.l.b16 %v495
    %v2559 = vunpack.c.h.b16 %v495
    %v2560 = vunpack.c.l.b16 %v496
    %v2561 = vunpack.c.h.b16 %v496
    %v2562 = vunpack.c.l.b16 %v497
    %v2563 = vunpack.c.h.b16 %v497
    %v2564 = vunpack.c.l.b16 %v498
    %v2565 = vunpack.c.h.b16 %v498
    %v2566 = vunpack.c.l.b16 %v499
    %v2567 = vunpack.c.h.b16 %v499
    %v2568 = vunpack.c.l.b16 %v500
    %v2569 = vunpack.c.h.b16 %v500
    %v2570 = vunpack.c.l.b16 %v501
    %v2571 = vunpack.c.h.b16 %v501
    %v2572 = vunpack.c.l.b16 %v502
    %v2573 = vunpack.c.h.b16 %v502
    %v2574 = vunpack.c.l.b16 %v503
    %v2575 = vunpack.c.h.b16 %v503
    %v2576 = vunpack.c.l.b16 %v504
    %v2577 = vunpack.c.h.b16 %v504
    %v2578 = vunpack.c.l.b16 %v505
    %v2579 = vunpack.c.h.b16 %v505
    %v2580 = vunpack.c.l.b16 %v506
    %v2581 = vunpack.c.h.b16 %v506
    %v2582 = vunpack.c.l.b16 %v507
    %v2583 = vunpack.c.h.b16 %v507
    %v2584 = vunpack.c.l.b16 %v508
    %v2585 = vunpack.c.h.b16 %v508
    %v2586 = vunpack.c.l.b16 %v509
    %v2587 = vunpack.c.h.b16 %v509
    %v2588 = vunpack.c.l.b16 %v510
    %v2589 = vunpack.c.h.b16 %v510
    %v2590 = vunpack.c.l.b16 %v511
    %v2591 = vunpack.c.h.b16 %v511
    %v2592 = vunpack.c.l.b16 %v512
    %v2593 = vunpack.c.h.b16 %v512
    %v2594 = vunpack.c.l.b16 %v513
    %v2595 = vunpack.c.h.b16 %v513
    %v2596 = vunpack.c.l.b16 %v514
    %v2597 = vunpack.c.h.b16 %v514
    %v2598 = vunpack.c.l.b16 %v515
    %v2599 = vunpack.c.h.b16 %v515
    %v2600 = vunpack.c.l.b16 %v516
    %v2601 = vunpack.c.h.b16 %v516
    %v2602 = vunpack.c.l.b16 %v517
    %v2603 = vunpack.c.h.b16 %v517
    %v2604 = vunpack.c.l.b16 %v518
    %v2605 = vunpack.c.h.b16 %v518
    %v2606 = vunpack.c.l.b16 %v519
    %v2607 = vunpack.c.h.b16 %v519
    %v2608 = vunpack.c.l.b16 %v520
    %v2609 = vunpack.c.h.b16 %v520
    %v2610 = vunpack.c.l.b16 %v521
    %v2611 = vunpack.c.h.b16 %v521
    %v2612 = vunpack.c.l.b16 %v522
    %v2613 = vunpack.c.h.b16 %v522
    %v2614 = vunpack.c.l.b16 %v523
    %v2615 = vunpack.c.h.b16 %v523
    %v2616 = vunpack.c.l.b16 %v524
    %v2617 = vunpack.c.l.b16 %v525
    %v2618 = vunpack.c.h.b16 %v525
    %v2619 = vunpack.c.l.b16 %v526
    %v2620 = vunpack.c.h.b16 %v526
    %v2621 = vunpack.c.l.b16 %v527
    %v2622 = vunpack.c.h.b16 %v527
    %v2623 = vunpack.c.l.b16 %v528
    %v2624 = vunpack.c.h.b16 %v528
    %v2625 = vunpack.c.l.b16 %v529
    %v2626 = vunpack.c.h.b16 %v529
    %v2627 = vunpack.c.l.b16 %v530
    %v2628 = vunpack.c.h.b16 %v530
    %v2629 = vunpack.c.l.b16 %v531
    %v2630 = vunpack.c.h.b16 %v531
    %v2631 = vunpack.c.l.b16 %v532
    %v2632 = vunpack.c.h.b16 %v532
    %v2633 = vunpack.c.l.b16 %v533
    %v2634 = vunpack.c.h.b16 %v533
    %v2635 = vunpack.c.l.b16 %v534
    %v2636 = vunpack.c.h.b16 %v534
    %v2637 = vunpack.c.l.b16 %v535
    %v2638 = vunpack.c.h.b16 %v535
    %v2639 = vunpack.c.l.b16 %v536
    %v2640 = vunpack.c.h.b16 %v536
    %v2641 = vunpack.c.l.b16 %v537
    %v2642 = vunpack.c.h.b16 %v537
    %v2643 = vunpack.c.l.b16 %v538
    %v2644 = vunpack.c.h.b16 %v538
    %v2645 = vunpack.c.l.b16 %v539
    %v2646 = vunpack.c.h.b16 %v539
    %v2647 = vunpack.c.l.b16 %v540
    %v2648 = vunpack.c.h.b16 %v540
    %v2649 = vunpack.c.l.b16 %v541
    %v2650 = vunpack.c.h.b16 %v541
    %v2651 = vunpack.c.l.b16 %v542
    %v2652 = vunpack.c.h.b16 %v542
    %v2653 = vunpack.c.l.b16 %v543
    %v2654 = vunpack.c.h.b16 %v543
    %v2655 = vunpack.c.l.b16 %v544
    %v2656 = vunpack.c.h.b16 %v544
    %v2657 = vunpack.c.l.b16 %v545
    %v2658 = vunpack.c.h.b16 %v545
    %v2659 = vunpack.c.l.b16 %v546
    %v2660 = vunpack.c.h.b16 %v546
    %v2661 = vunpack.c.l.b16 %v547
    %v2662 = vunpack.c.h.b16 %v547
    %v2663 = vunpack.c.l.b16 %v548
    %v2664 = vunpack.c.h.b16 %v548
    %v2665 = vunpack.c.l.b16 %v549
    %v2666 = vunpack.c.h.b16 %v549
    %v2667 = vunpack.c.l.b16 %v550
    %v2668 = vunpack.c.h.b16 %v550
    %v2669 = vunpack.c.l.b16 %v551
    %v2670 = vunpack.c.h.b16 %v551
    %v2671 = vunpack.c.l.b16 %v552
    %v2672 = vunpack.c.h.b16 %v552
    %v2673 = vunpack.c.l.b16 %v553
    %v2674 = vunpack.c.h.b16 %v553
    %v2675 = vunpack.c.l.b16 %v554
    %v2676 = vunpack.c.h.b16 %v554
    %v2677 = vunpack.c.l.b16 %v555
    %v2678 = vunpack.c.h.b16 %v555
    %v2679 = vunpack.c.l.b16 %v556
    %v2680 = vunpack.c.h.b16 %v556
    %v2681 = vunpack.c.l.b16 %v557
    %v2682 = vunpack.c.h.b16 %v557
    %v2683 = vunpack.c.l.b16 %v558
    %v2684 = vunpack.c.h.b16 %v558
    %v2685 = vunpack.c.l.b16 %v559
    %v2686 = vunpack.c.h.b16 %v559
    %v2687 = vunpack.c.l.b16 %v560
    %v2688 = vunpack.c.h.b16 %v560
    %v2689 = vunpack.c.l.b16 %v561
    %v2690 = vunpack.c.h.b16 %v561
    %v2691 = vunpack.c.l.b16 %v562
    %v2692 = vunpack.c.l.b16 %v563
    %v2693 = vunpack.c.h.b16 %v563
    %v2694 = vunpack.c.l.b16 %v564
    %v2695 = vunpack.c.h.b16 %v564
    %v2696 = vunpack.c.l.b16 %v565
    %v2697 = vunpack.c.h.b16 %v565
    %v2698 = vunpack.c.l.b16 %v566
    %v2699 = vunpack.c.h.b16 %v566
    %v2700 = vunpack.c.l.b16 %v567
    %v2701 = vunpack.c.h.b16 %v567
    %v2702 = vunpack.c.l.b16 %v568
    %v2703 = vunpack.c.h.b16 %v568
    %v2704 = vunpack.c.l.b16 %v569
    %v2705 = vunpack.c.h.b16 %v569
    %v2706 = vunpack.c.l.b16 %v570
    %v2707 = vunpack.c.h.b16 %v570
    %v2708 = vunpack.c.l.b16 %v571
    %v2709 = vunpack.c.h.b16 %v571
    %v2710 = vunpack.c.l.b16 %v572
    %v2711 = vunpack.c.h.b16 %v572
    %v2712 = vunpack.c.l.b16 %v573
    %v2713 = vunpack.c.h.b16 %v573
    %v2714 = vunpack.c.l.b16 %v574
    %v2715 = vunpack.c.h.b16 %v574
    %v2716 = vunpack.c.l.b16 %v575
    %v2717 = vunpack.c.h.b16 %v575
    %v2718 = vunpack.c.l.b16 %v576
    %v2719 = vunpack.c.h.b16 %v576
    %v2720 = vunpack.c.l.b16 %v577
    %v2721 = vunpack.c.h.b16 %v577
    %v2722 = vunpack.c.l.b16 %v578
    %v2723 = vunpack.c.h.b16 %v578
    %v2724 = vunpack.c.l.b16 %v579
    %v2725 = vunpack.c.h.b16 %v579
    %v2726 = vunpack.c.l.b16 %v580
    %v2727 = vunpack.c.h.b16 %v580
    %v2728 = vunpack.c.l.b16 %v581
    %v2729 = vunpack.c.h.b16 %v581
    %v2730 = vunpack.c.l.b16 %v582
    %v2731 = vunpack.c.h.b16 %v582
    %v2732 = vunpack.c.l.b16 %v583
    %v2733 = vunpack.c.h.b16 %v583
    %v2734 = vunpack.c.l.b16 %v584
    %v2735 = vunpack.c.h.b16 %v584
    %v2736 = vunpack.c.l.b16 %v585
    %v2737 = vunpack.c.h.b16 %v585
    %v2738 = vunpack.c.l.b16 %v586
    %v2739 = vunpack.c.h.b16 %v586
    %v2740 = vunpack.c.l.b16 %v587
    %v2741 = vunpack.c.h.b16 %v587
    %v2742 = vunpack.c.l.b16 %v588
    %v2743 = vunpack.c.h.b16 %v588
    %v2744 = vunpack.c.l.b16 %v589
    %v2745 = vunpack.c.h.b16 %v589
    %v2746 = vunpack.c.l.b16 %v590
    %v2747 = vunpack.c.h.b16 %v590
    %v2748 = vunpack.c.l.b16 %v591
    %v2749 = vunpack.c.h.b16 %v591
    %v2750 = vunpack.c.l.b16 %v592
    %v2751 = vunpack.c.h.b16 %v592
    %v2752 = vunpack.c.l.b16 %v593
    %v2753 = vunpack.c.h.b16 %v593
    %v2754 = vunpack.c.l.b16 %v594
    %v2755 = vunpack.c.h.b16 %v594
    %v2756 = vunpack.c.l.b16 %v595
    %v2757 = vunpack.c.h.b16 %v595
    %v2758 = vunpack.c.l.b16 %v596
    %v2759 = vunpack.c.h.b16 %v596
    %v2760 = vunpack.c.l.b16 %v597
    %v2761 = vunpack.c.h.b16 %v597
    %v2762 = vunpack.c.l.b16 %v598
    %v2763 = vunpack.c.h.b16 %v598
    %v2764 = vunpack.c.l.b16 %v599
    %v2765 = vunpack.c.h.b16 %v599
    %v2766 = vunpack.c.l.b16 %v600
    %v2767 = vunpack.c.l.b16 %v601
    %v2768 = vunpack.c.h.b16 %v601
    %v2769 = vunpack.c.l.b16 %v602
    %v2770 = vunpack.c.h.b16 %v602
    %v2771 = vunpack.c.l.b16 %v603
    %v2772 = vunpack.c.h.b16 %v603
    %v2773 = vunpack.c.l.b16 %v604
    %v2774 = vunpack.c.h.b16 %v604
    %v2775 = vunpack.c.l.b16 %v605
    %v2776 = vunpack.c.h.b16 %v605
    %v2777 = vunpack.c.l.b16 %v606
    %v2778 = vunpack.c.h.b16 %v606
    %v2779 = vunpack.c.l.b16 %v607
    %v2780 = vunpack.c.h.b16 %v607
    %v2781 = vunpack.c.l.b16 %v608
    %v2782 = vunpack.c.h.b16 %v608
    %v2783 = vunpack.c.l.b16 %v609
    %v2784 = vunpack.c.h.b16 %v609
    %v2785 = vunpack.c.l.b16 %v610
    %v2786 = vunpack.c.h.b16 %v610
    %v2787 = vunpack.c.l.b16 %v611
    %v2788 = vunpack.c.h.b16 %v611
    %v2789 = vunpack.c.l.b16 %v612
    %v2790 = vunpack.c.h.b16 %v612
    %v2791 = vunpack.c.l.b16 %v613
    %v2792 = vunpack.c.h.b16 %v613
    %v2793 = vunpack.c.l.b16 %v614
    %v2794 = vunpack.c.h.b16 %v614
    %v2795 = vunpack.c.l.b16 %v615
    %v2796 = vunpack.c.h.b16 %v615
    %v2797 = vunpack.c.l.b16 %v616
    %v2798 = vunpack.c.h.b16 %v616
    %v2799 = vunpack.c.l.b16 %v617
    %v2800 = vunpack.c.h.b16 %v617
    %v2801 = vunpack.c.l.b16 %v618
    %v2802 = vunpack.c.h.b16 %v618
    %v2803 = vunpack.c.l.b16 %v619
    %v2804 = vunpack.c.h.b16 %v619
    %v2805 = vunpack.c.l.b16 %v620
    %v2806 = vunpack.c.h.b16 %v620
    %v2807 = vunpack.c.l.b16 %v621
    %v2808 = vunpack.c.h.b16 %v621
    %v2809 = vunpack.c.l.b16 %v622
    %v2810 = vunpack.c.h.b16 %v622
    %v2811 = vunpack.c.l.b16 %v623
    %v2812 = vunpack.c.h.b16 %v623
    %v2813 = vunpack.c.l.b16 %v624
    %v2814 = vunpack.c.h.b16 %v624
    %v2815 = vunpack.c.l.b16 %v625
    %v2816 = vunpack.c.h.b16 %v625
    %v2817 = vunpack.c.l.b16 %v626
    %v2818 = vunpack.c.h.b16 %v626
    %v2819 = vunpack.c.l.b16 %v627
    %v2820 = vunpack.c.h.b16 %v627
    %v2821 = vunpack.c.l.b16 %v628
    %v2822 = vunpack.c.h.b16 %v628
    %v2823 = vunpack.c.l.b16 %v629
    %v2824 = vunpack.c.h.b16 %v629
    %v2825 = vunpack.c.l.b16 %v630
    %v2826 = vunpack.c.h.b16 %v630
    %v2827 = vunpack.c.l.b16 %v631
    %v2828 = vunpack.c.h.b16 %v631
    %v2829 = vunpack.c.l.b16 %v632
    %v2830 = vunpack.c.h.b16 %v632
    %v2831 = vunpack.c.l.b16 %v633
    %v2832 = vunpack.c.h.b16 %v633
    %v2833 = vunpack.c.l.b16 %v634
    %v2834 = vunpack.c.h.b16 %v634
    %v2835 = vunpack.c.l.b16 %v635
    %v2836 = vunpack.c.h.b16 %v635
    %v2837 = vunpack.c.l.b16 %v636
    %v2838 = vunpack.c.h.b16 %v636
    %v2839 = vunpack.c.l.b16 %v637
    %v2840 = vunpack.c.h.b16 %v637
    %v2841 = vunpack.c.l.b16 %v638
    %v2842 = vpack.c.b16 %v1717, %v1642
    %v2843 = vpack.c.b16 %v1718, %v1643
    %v2844 = vpack.c.b16 %v1719, %v1644
    %v2845 = vpack.c.b16 %v1720, %v1645
    %v2846 = vpack.c.b16 %v1721, %v1646
    %v2847 = vpack.c.b16 %v1722, %v1647
    %v2848 = vpack.c.b16 %v1723, %v1648
    %v2849 = vpack.c.b16 %v1724, %v1649
    %v2850 = vpack.c.b16 %v1725, %v1650
    %v2851 = vpack.c.b16 %v1726, %v1651
    %v2852 = vpack.c.b16 %v1727, %v1652
    %v2853 = vpack.c.b16 %v1728, %v1653
    %v2854 = vpack.c.b16 %v1729, %v1654
    %v2855 = vpack.c.b16 %v1730, %v1655
    %v2856 = vpack.c.b16 %v1731, %v1656
    %v2857 = vpack.c.b16 %v1732, %v1657
    %v2858 = vpack.c.b16 %v1733, %v1658
    %v2859 = vpack.c.b16 %v1734, %v1659
    %v2860 = vpack.c.b16 %v1735, %v1660
    %v2861 = vpack.c.b16 %v1736, %v1661
    %v2862 = vpack.c.b16 %v1737, %v1662
    %v2863 = vpack.c.b16 %v1738, %v1663
    %v2864 = vpack.c.b16 %v1739, %v1664
    %v2865 = vpack.c.b16 %v1740, %v1665
    %v2866 = vpack.c.b16 %v1741, %v1666
    %v2867 = vpack.c.b16 %v1742, %v1667
    %v2868 = vpack.c.b16 %v1743, %v1668
    %v2869 = vpack.c.b16 %v1744, %v1669
    %v2870 = vpack.c.b16 %v1745, %v1670
    %v2871 = vpack.c.b16 %v1746, %v1671
    %v2872 = vpack.c.b16 %v1747, %v1672
    %v2873 = vpack.c.b16 %v1748, %v1673
    %v2874 = vpack.c.b16 %v1749, %v1674
    %v2875 = vpack.c.b16 %v1750, %v1675
    %v2876 = vpack.c.b16 %v1751, %v1676
    %v2877 = vpack.c.b16 %v1752, %v1677
    %v2878 = vpack.c.b16 %v1753, %v1678
    %v2879 = vpack.c.b16 %v1754, %v1679
    %v2880 = vpack.c.b16 %v1755, %v1680
    %v2881 = vpack.c.b16 %v1756, %v1681
    %v2882 = vpack.c.b16 %v1757, %v1682
    %v2883 = vpack.c.b16 %v1758, %v1683
    %v2884 = vpack.c.b16 %v1759, %v1684
    %v2885 = vpack.c.b16 %v1760, %v1685
    %v2886 = vpack.c.b16 %v1761, %v1686
    %v2887 = vpack.c.b16 %v1762, %v1687
    %v2888 = vpack.c.b16 %v1763, %v1688
    %v2889 = vpack.c.b16 %v1764, %v1689
    %v2890 = vpack.c.b16 %v1765, %v1690
    %v2891 = vpack.c.b16 %v1766, %v1691
    %v2892 = vpack.c.b16 %v1767, %v1692
    %v2893 = vpack.c.b16 %v1768, %v1693
    %v2894 = vpack.c.b16 %v1769, %v1694
    %v2895 = vpack.c.b16 %v1770, %v1695
    %v2896 = vpack.c.b16 %v1771, %v1696
    %v2897 = vpack.c.b16 %v1772, %v1697
    %v2898 = vpack.c.b16 %v1773, %v1698
    %v2899 = vpack.c.b16 %v1774, %v1699
    %v2900 = vpack.c.b16 %v1775, %v1700
    %v2901 = vpack.c.b16 %v1776, %v1701
    %v2902 = vpack.c.b16 %v1777, %v1702
    %v2903 = vpack.c.b16 %v1778, %v1703
    %v2904 = vpack.c.b16 %v1779, %v1704
    %v2905 = vpack.c.b16 %v1780, %v1705
    %v2906 = vpack.c.b16 %v1781, %v1706
    %v2907 = vpack.c.b16 %v1782, %v1707
    %v2908 = vpack.c.b16 %v1783, %v1708
    %v2909 = vpack.c.b16 %v1784, %v1709
    %v2910 = vpack.c.b16 %v1785, %v1710
    %v2911 = vpack.c.b16 %v1786, %v1711
    %v2912 = vpack.c.b16 %v1787, %v1712
    %v2913 = vpack.c.b16 %v1788, %v1713
    %v2914 = vpack.c.b16 %v1789, %v1714
    %v2915 = vpack.c.b16 %v1790, %v1715
    %v2916 = vpack.c.b16 %v1791, %v1716
    %v2917 = vpack.c.b16 %v1867, %v1792
    %v2918 = vpack.c.b16 %v1868, %v1793
    %v2919 = vpack.c.b16 %v1869, %v1794
    %v2920 = vpack.c.b16 %v1870, %v1795
    %v2921 = vpack.c.b16 %v1871, %v1796
    %v2922 = vpack.c.b16 %v1872, %v1797
    %v2923 = vpack.c.b16 %v1873, %v1798
    %v2924 = vpack.c.b16 %v1874, %v1799
    %v2925 = vpack.c.b16 %v1875, %v1800
    %v2926 = vpack.c.b16 %v1876, %v1801
    %v2927 = vpack.c.b16 %v1877, %v1802
    %v2928 = vpack.c.b16 %v1878, %v1803
    %v2929 = vpack.c.b16 %v1879, %v1804
    %v2930 = vpack.c.b16 %v1880, %v1805
    %v2931 = vpack.c.b16 %v1881, %v1806
    %v2932 = vpack.c.b16 %v1882, %v1807
    %v2933 = vpack.c.b16 %v1883, %v1808
    %v2934 = vpack.c.b16 %v1884, %v1809
    %v2935 = vpack.c.b16 %v1885, %v1810
    %v2936 = vpack.c.b16 %v1886, %v1811
    %v2937 = vpack.c.b16 %v1887, %v1812
    %v2938 = vpack.c.b16 %v1888, %v1813
    %v2939 = vpack.c.b16 %v1889, %v1814
    %v2940 = vpack.c.b16 %v1890, %v1815
    %v2941 = vpack.c.b16 %v1891, %v1816
    %v2942 = vpack.c.b16 %v1892, %v1817
    %v2943 = vpack.c.b16 %v1893, %v1818
    %v2944 = vpack.c.b16 %v1894, %v1819
    %v2945 = vpack.c.b16 %v1895, %v1820
    %v2946 = vpack.c.b16 %v1896, %v1821
    %v2947 = vpack.c.b16 %v1897, %v1822
    %v2948 = vpack.c.b16 %v1898, %v1823
    %v2949 = vpack.c.b16 %v1899, %v1824
    %v2950 = vpack.c.b16 %v1900, %v1825
    %v2951 = vpack.c.b16 %v1901, %v1826
    %v2952 = vpack.c.b16 %v1902, %v1827
    %v2953 = vpack.c.b16 %v1903, %v1828
    %v2954 = vpack.c.b16 %v1904, %v1829
    %v2955 = vpack.c.b16 %v1905, %v1830
    %v2956 = vpack.c.b16 %v1906, %v1831
    %v2957 = vpack.c.b16 %v1907, %v1832
    %v2958 = vpack.c.b16 %v1908, %v1833
    %v2959 = vpack.c.b16 %v1909, %v1834
    %v2960 = vpack.c.b16 %v1910, %v1835
    %v2961 = vpack.c.b16 %v1911, %v1836
    %v2962 = vpack.c.b16 %v1912, %v1837
    %v2963 = vpack.c.b16 %v1913, %v1838
    %v2964 = vpack.c.b16 %v1914, %v1839
    %v2965 = vpack.c.b16 %v1915, %v1840
    %v2966 = vpack.c.b16 %v1916, %v1841
    %v2967 = vpack.c.b16 %v1917, %v1842
    %v2968 = vpack.c.b16 %v1918, %v1843
    %v2969 = vpack.c.b16 %v1919, %v1844
    %v2970 = vpack.c.b16 %v1920, %v1845
    %v2971 = vpack.c.b16 %v1921, %v1846
    %v2972 = vpack.c.b16 %v1922, %v1847
    %v2973 = vpack.c.b16 %v1923, %v1848
    %v2974 = vpack.c.b16 %v1924, %v1849
    %v2975 = vpack.c.b16 %v1925, %v1850
    %v2976 = vpack.c.b16 %v1926, %v1851
    %v2977 = vpack.c.b16 %v1927, %v1852
    %v2978 = vpack.c.b16 %v1928, %v1853
    %v2979 = vpack.c.b16 %v1929, %v1854
    %v2980 = vpack.c.b16 %v1930, %v1855
    %v2981 = vpack.c.b16 %v1931, %v1856
    %v2982 = vpack.c.b16 %v1932, %v1857
    %v2983 = vpack.c.b16 %v1933, %v1858
    %v2984 = vpack.c.b16 %v1934, %v1859
    %v2985 = vpack.c.b16 %v1935, %v1860
    %v2986 = vpack.c.b16 %v1936, %v1861
    %v2987 = vpack.c.b16 %v1937, %v1862
    %v2988 = vpack.c.b16 %v1938, %v1863
    %v2989 = vpack.c.b16 %v1939, %v1864
    %v2990 = vpack.c.b16 %v1940, %v1865
    %v2991 = vpack.c.b16 %v1941, %v1866
    %v2992 = vpack.c.b16 %v2017, %v1942
    %v2993 = vpack.c.b16 %v2018, %v1943
    %v2994 = vpack.c.b16 %v2019, %v1944
    %v2995 = vpack.c.b16 %v2020, %v1945
    %v2996 = vpack.c.b16 %v2021, %v1946
    %v2997 = vpack.c.b16 %v2022, %v1947
    %v2998 = vpack.c.b16 %v2023, %v1948
    %v2999 = vpack.c.b16 %v2024, %v1949
    %v3000 = vpack.c.b16 %v2025, %v1950
    %v3001 = vpack.c.b16 %v2026, %v1951
    %v3002 = vpack.c.b16 %v2027, %v1952
    %v3003 = vpack.c.b16 %v2028, %v1953
    %v3004 = vpack.c.b16 %v2029, %v1954
    %v3005 = vpack.c.b16 %v2030, %v1955
    %v3006 = vpack.c.b16 %v2031, %v1956
    %v3007 = vpack.c.b16 %v2032, %v1957
    %v3008 = vpack.c.b16 %v2033, %v1958
    %v3009 = vpack.c.b16 %v2034, %v1959
    %v3010 = vpack.c.b16 %v2035, %v1960
    %v3011 = vpack.c.b16 %v2036, %v1961
    %v3012 = vpack.c.b16 %v2037, %v1962
    %v3013 = vpack.c.b16 %v2038, %v1963
    %v3014 = vpack.c.b16 %v2039, %v1964
    %v3015 = vpack.c.b16 %v2040, %v1965
    %v3016 = vpack.c.b16 %v2041, %v1966
    %v3017 = vpack.c.b16 %v2042, %v1967
    %v3018 = vpack.c.b16 %v2043, %v1968
    %v3019 = vpack.c.b16 %v2044, %v1969
    %v3020 = vpack.c.b16 %v2045, %v1970
    %v3021 = vpack.c.b16 %v2046, %v1971
    %v3022 = vpack.c.b16 %v2047, %v1972
    %v3023 = vpack.c.b16 %v2048, %v1973
    %v3024 = vpack.c.b16 %v2049, %v1974
    %v3025 = vpack.c.b16 %v2050, %v1975
    %v3026 = vpack.c.b16 %v2051, %v1976
    %v3027 = vpack.c.b16 %v2052, %v1977
    %v3028 = vpack.c.b16 %v2053, %v1978
    %v3029 = vpack.c.b16 %v2054, %v1979
    %v3030 = vpack.c.b16 %v2055, %v1980
    %v3031 = vpack.c.b16 %v2056, %v1981
    %v3032 = vpack.c.b16 %v2057, %v1982
    %v3033 = vpack.c.b16 %v2058, %v1983
    %v3034 = vpack.c.b16 %v2059, %v1984
    %v3035 = vpack.c.b16 %v2060, %v1985
    %v3036 = vpack.c.b16 %v2061, %v1986
    %v3037 = vpack.c.b16 %v2062, %v1987
    %v3038 = vpack.c.b16 %v2063, %v1988
    %v3039 = vpack.c.b16 %v2064, %v1989
    %v3040 = vpack.c.b16 %v2065, %v1990
    %v3041 = vpack.c.b16 %v2066, %v1991
    %v3042 = vpack.c.b16 %v2067, %v1992
    %v3043 = vpack.c.b16 %v2068, %v1993
    %v3044 = vpack.c.b16 %v2069, %v1994
    %v3045 = vpack.c.b16 %v2070, %v1995
    %v3046 = vpack.c.b16 %v2071, %v1996
    %v3047 = vpack.c.b16 %v2072, %v1997
    %v3048 = vpack.c.b16 %v2073, %v1998
    %v3049 = vpack.c.b16 %v2074, %v1999
    %v3050 = vpack.c.b16 %v2075, %v2000
    %v3051 = vpack.c.b16 %v2076, %v2001
    %v3052 = vpack.c.b16 %v2077, %v2002
    %v3053 = vpack.c.b16 %v2078, %v2003
    %v3054 = vpack.c.b16 %v2079, %v2004
    %v3055 = vpack.c.b16 %v2080, %v2005
    %v3056 = vpack.c.b16 %v2081, %v2006
    %v3057 = vpack.c.b16 %v2082, %v2007
    %v3058 = vpack.c.b16 %v2083, %v2008
    %v3059 = vpack.c.b16 %v2084, %v2009
    %v3060 = vpack.c.b16 %v2085, %v2010
    %v3061 = vpack.c.b16 %v2086, %v2011
    %v3062 = vpack.c.b16 %v2087, %v2012
    %v3063 = vpack.c.b16 %v2088, %v2013
    %v3064 = vpack.c.b16 %v2089, %v2014
    %v3065 = vpack.c.b16 %v2090, %v2015
    %v3066 = vpack.c.b16 %v2091, %v2016
    %v3067 = vpack.c.b16 %v2167, %v2092
    %v3068 = vpack.c.b16 %v2168, %v2093
    %v3069 = vpack.c.b16 %v2169, %v2094
    %v3070 = vpack.c.b16 %v2170, %v2095
    %v3071 = vpack.c.b16 %v2171, %v2096
    %v3072 = vpack.c.b16 %v2172, %v2097
    %v3073 = vpack.c.b16 %v2173, %v2098
    %v3074 = vpack.c.b16 %v2174, %v2099
    %v3075 = vpack.c.b16 %v2175, %v2100
    %v3076 = vpack.c.b16 %v2176, %v2101
    %v3077 = vpack.c.b16 %v2177, %v2102
    %v3078 = vpack.c.b16 %v2178, %v2103
    %v3079 = vpack.c.b16 %v2179, %v2104
    %v3080 = vpack.c.b16 %v2180, %v2105
    %v3081 = vpack.c.b16 %v2181, %v2106
    %v3082 = vpack.c.b16 %v2182, %v2107
    %v3083 = vpack.c.b16 %v2183, %v2108
    %v3084 = vpack.c.b16 %v2184, %v2109
    %v3085 = vpack.c.b16 %v2185, %v2110
    %v3086 = vpack.c.b16 %v2186, %v2111
    %v3087 = vpack.c.b16 %v2187, %v2112
    %v3088 = vpack.c.b16 %v2188, %v2113
    %v3089 = vpack.c.b16 %v2189, %v2114
    %v3090 = vpack.c.b16 %v2190, %v2115
    %v3091 = vpack.c.b16 %v2191, %v2116
    %v3092 = vpack.c.b16 %v2192, %v2117
    %v3093 = vpack.c.b16 %v2193, %v2118
    %v3094 = vpack.c.b16 %v2194, %v2119
    %v3095 = vpack.c.b16 %v2195, %v2120
    %v3096 = vpack.c.b16 %v2196, %v2121
    %v3097 = vpack.c.b16 %v2197, %v2122
    %v3098 = vpack.c.b16 %v2198, %v2123
    %v3099 = vpack.c.b16 %v2199, %v2124
    %v3100 = vpack.c.b16 %v2200, %v2125
    %v3101 = vpack.c.b16 %v2201, %v2126
    %v3102 = vpack.c.b16 %v2202, %v2127
    %v3103 = vpack.c.b16 %v2203, %v2128
    %v3104 = vpack.c.b16 %v2204, %v2129
    %v3105 = vpack.c.b16 %v2205, %v2130
    %v3106 = vpack.c.b16 %v2206, %v2131
    %v3107 = vpack.c.b16 %v2207, %v2132
    %v3108 = vpack.c.b16 %v2208, %v2133
    %v3109 = vpack.c.b16 %v2209, %v2134
    %v3110 = vpack.c.b16 %v2210, %v2135
    %v3111 = vpack.c.b16 %v2211, %v2136
    %v3112 = vpack.c.b16 %v2212, %v2137
    %v3113 = vpack.c.b16 %v2213, %v2138
    %v3114 = vpack.c.b16 %v2214, %v2139
    %v3115 = vpack.c.b16 %v2215, %v2140
    %v3116 = vpack.c.b16 %v2216, %v2141
    %v3117 = vpack.c.b16 %v2217, %v2142
    %v3118 = vpack.c.b16 %v2218, %v2143
    %v3119 = vpack.c.b16 %v2219, %v2144
    %v3120 = vpack.c.b16 %v2220, %v2145
    %v3121 = vpack.c.b16 %v2221, %v2146
    %v3122 = vpack.c.b16 %v2222, %v2147
    %v3123 = vpack.c.b16 %v2223, %v2148
    %v3124 = vpack.c.b16 %v2224, %v2149
    %v3125 = vpack.c.b16 %v2225, %v2150
    %v3126 = vpack.c.b16 %v2226, %v2151
    %v3127 = vpack.c.b16 %v2227, %v2152
    %v3128 = vpack.c.b16 %v2228, %v2153
    %v3129 = vpack.c.b16 %v2229, %v2154
    %v3130 = vpack.c.b16 %v2230, %v2155
    %v3131 = vpack.c.b16 %v2231, %v2156
    %v3132 = vpack.c.b16 %v2232, %v2157
    %v3133 = vpack.c.b16 %v2233, %v2158
    %v3134 = vpack.c.b16 %v2234, %v2159
    %v3135 = vpack.c.b16 %v2235, %v2160
    %v3136 = vpack.c.b16 %v2236, %v2161
    %v3137 = vpack.c.b16 %v2237, %v2162
    %v3138 = vpack.c.b16 %v2238, %v2163
    %v3139 = vpack.c.b16 %v2239, %v2164
    %v3140 = vpack.c.b16 %v2240, %v2165
    %v3141 = vpack.c.b16 %v2241, %v2166
    %v3142 = vpack.c.b16 %v2317, %v2242
    %v3143 = vpack.c.b16 %v2318, %v2243
    %v3144 = vpack.c.b16 %v2319, %v2244
    %v3145 = vpack.c.b16 %v2320, %v2245
    %v3146 = vpack.c.b16 %v2321, %v2246
    %v3147 = vpack.c.b16 %v2322, %v2247
    %v3148 = vpack.c.b16 %v2323, %v2248
    %v3149 = vpack.c.b16 %v2324, %v2249
    %v3150 = vpack.c.b16 %v2325, %v2250
    %v3151 = vpack.c.b16 %v2326, %v2251
    %v3152 = vpack.c.b16 %v2327, %v2252
    %v3153 = vpack.c.b16 %v2328, %v2253
    %v3154 = vpack.c.b16 %v2329, %v2254
    %v3155 = vpack.c.b16 %v2330, %v2255
    %v3156 = vpack.c.b16 %v2331, %v2256
    %v3157 = vpack.c.b16 %v2332, %v2257
    %v3158 = vpack.c.b16 %v2333, %v2258
    %v3159 = vpack.c.b16 %v2334, %v2259
    %v3160 = vpack.c.b16 %v2335, %v2260
    %v3161 = vpack.c.b16 %v2336, %v2261
    %v3162 = vpack.c.b16 %v2337, %v2262
    %v3163 = vpack.c.b16 %v2338, %v2263
    %v3164 = vpack.c.b16 %v2339, %v2264
    %v3165 = vpack.c.b16 %v2340, %v2265
    %v3166 = vpack.c.b16 %v2341, %v2266
    %v3167 = vpack.c.b16 %v2342, %v2267
    %v3168 = vpack.c.b16 %v2343, %v2268
    %v3169 = vpack.c.b16 %v2344, %v2269
    %v3170 = vpack.c.b16 %v2345, %v2270
    %v3171 = vpack.c.b16 %v2346, %v2271
    %v3172 = vpack.c.b16 %v2347, %v2272
    %v3173 = vpack.c.b16 %v2348, %v2273
    %v3174 = vpack.c.b16 %v2349, %v2274
    %v3175 = vpack.c.b16 %v2350, %v2275
    %v3176 = vpack.c.b16 %v2351, %v2276
    %v3177 = vpack.c.b16 %v2352, %v2277
    %v3178 = vpack.c.b16 %v2353, %v2278
    %v3179 = vpack.c.b16 %v2354, %v2279
    %v3180 = vpack.c.b16 %v2355, %v2280
    %v3181 = vpack.c.b16 %v2356, %v2281
    %v3182 = vpack.c.b16 %v2357, %v2282
    %v3183 = vpack.c.b16 %v2358, %v2283
    %v3184 = vpack.c.b16 %v2359, %v2284
    %v3185 = vpack.c.b16 %v2360, %v2285
    %v3186 = vpack.c.b16 %v2361, %v2286
    %v3187 = vpack.c.b16 %v2362, %v2287
    %v3188 = vpack.c.b16 %v2363, %v2288
    %v3189 = vpack.c.b16 %v2364, %v2289
    %v3190 = vpack.c.b16 %v2365, %v2290
    %v3191 = vpack.c.b16 %v2366, %v2291
    %v3192 = vpack.c.b16 %v2367, %v2292
    %v3193 = vpack.c.b16 %v2368, %v2293
    %v3194 = vpack.c.b16 %v2369, %v2294
    %v3195 = vpack.c.b16 %v2370, %v2295
    %v3196 = vpack.c.b16 %v2371, %v2296
    %v3197 = vpack.c.b16 %v2372, %v2297
    %v3198 = vpack.c.b16 %v2373, %v2298
    %v3199 = vpack.c.b16 %v2374, %v2299
    %v3200 = vpack.c.b16 %v2375, %v2300
    %v3201 = vpack.c.b16 %v2376, %v2301
    %v3202 = vpack.c.b16 %v2377, %v2302
    %v3203 = vpack.c.b16 %v2378, %v2303
    %v3204 = vpack.c.b16 %v2379, %v2304
    %v3205 = vpack.c.b16 %v2380, %v2305
    %v3206 = vpack.c.b16 %v2381, %v2306
    %v3207 = vpack.c.b16 %v2382, %v2307
    %v3208 = vpack.c.b16 %v2383, %v2308
    %v3209 = vpack.c.b16 %v2384, %v2309
    %v3210 = vpack.c.b16 %v2385, %v2310
    %v3211 = vpack.c.b16 %v2386, %v2311
    %v3212 = vpack.c.b16 %v2387, %v2312
    %v3213 = vpack.c.b16 %v2388, %v2313
    %v3214 = vpack.c.b16 %v2389, %v2314
    %v3215 = vpack.c.b16 %v2390, %v2315
    %v3216 = vpack.c.b16 %v2391, %v2316
    %v3217 = vpack.c.b16 %v2467, %v2392
    %v3218 = vpack.c.b16 %v2468, %v2393
    %v3219 = vpack.c.b16 %v2469, %v2394
    %v3220 = vpack.c.b16 %v2470, %v2395
    %v3221 = vpack.c.b16 %v2471, %v2396
    %v3222 = vpack.c.b16 %v2472, %v2397
    %v3223 = vpack.c.b16 %v2473, %v2398
    %v3224 = vpack.c.b16 %v2474, %v2399
    %v3225 = vpack.c.b16 %v2475, %v2400
    %v3226 = vpack.c.b16 %v2476, %v2401
    %v3227 = vpack.c.b16 %v2477, %v2402
    %v3228 = vpack.c.b16 %v2478, %v2403
    %v3229 = vpack.c.b16 %v2479, %v2404
    %v3230 = vpack.c.b16 %v2480, %v2405
    %v3231 = vpack.c.b16 %v2481, %v2406
    %v3232 = vpack.c.b16 %v2482, %v2407
    %v3233 = vpack.c.b16 %v2483, %v2408
    %v3234 = vpack.c.b16 %v2484, %v2409
    %v3235 = vpack.c.b16 %v2485, %v2410
    %v3236 = vpack.c.b16 %v2486, %v2411
    %v3237 = vpack.c.b16 %v2487, %v2412
    %v3238 = vpack.c.b16 %v2488, %v2413
    %v3239 = vpack.c.b16 %v2489, %v2414
    %v3240 = vpack.c.b16 %v2490, %v2415
    %v3241 = vpack.c.b16 %v2491, %v2416
    %v3242 = vpack.c.b16 %v2492, %v2417
    %v3243 = vpack.c.b16 %v2493, %v2418
    %v3244 = vpack.c.b16 %v2494, %v2419
    %v3245 = vpack.c.b16 %v2495, %v2420
    %v3246 = vpack.c.b16 %v2496, %v2421
    %v3247 = vpack.c.b16 %v2497, %v2422
    %v3248 = vpack.c.b16 %v2498, %v2423
    %v3249 = vpack.c.b16 %v2499, %v2424
    %v3250 = vpack.c.b16 %v2500, %v2425
    %v3251 = vpack.c.b16 %v2501, %v2426
    %v3252 = vpack.c.b16 %v2502, %v2427
    %v3253 = vpack.c.b16 %v2503, %v2428
    %v3254 = vpack.c.b16 %v2504, %v2429
    %v3255 = vpack.c.b16 %v2505, %v2430
    %v3256 = vpack.c.b16 %v2506, %v2431
    %v3257 = vpack.c.b16 %v2507, %v2432
    %v3258 = vpack.c.b16 %v2508, %v2433
    %v3259 = vpack.c.b16 %v2509, %v2434
    %v3260 = vpack.c.b16 %v2510, %v2435
    %v3261 = vpack.c.b16 %v2511, %v2436
    %v3262 = vpack.c.b16 %v2512, %v2437
    %v3263 = vpack.c.b16 %v2513, %v2438
    %v3264 = vpack.c.b16 %v2514, %v2439
    %v3265 = vpack.c.b16 %v2515, %v2440
    %v3266 = vpack.c.b16 %v2516, %v2441
    %v3267 = vpack.c.b16 %v2517, %v2442
    %v3268 = vpack.c.b16 %v2518, %v2443
    %v3269 = vpack.c.b16 %v2519, %v2444
    %v3270 = vpack.c.b16 %v2520, %v2445
    %v3271 = vpack.c.b16 %v2521, %v2446
    %v3272 = vpack.c.b16 %v2522, %v2447
    %v3273 = vpack.c.b16 %v2523, %v2448
    %v3274 = vpack.c.b16 %v2524, %v2449
    %v3275 = vpack.c.b16 %v2525, %v2450
    %v3276 = vpack.c.b16 %v2526, %v2451
    %v3277 = vpack.c.b16 %v2527, %v2452
    %v3278 = vpack.c.b16 %v2528, %v2453
    %v3279 = vpack.c.b16 %v2529, %v2454
    %v3280 = vpack.c.b16 %v2530, %v2455
    %v3281 = vpack.c.b16 %v2531, %v2456
    %v3282 = vpack.c.b16 %v2532, %v2457
    %v3283 = vpack.c.b16 %v2533, %v2458
    %v3284 = vpack.c.b16 %v2534, %v2459
    %v3285 = vpack.c.b16 %v2535, %v2460
    %v3286 = vpack.c.b16 %v2536, %v2461
    %v3287 = vpack.c.b16 %v2537, %v2462
    %v3288 = vpack.c.b16 %v2538, %v2463
    %v3289 = vpack.c.b16 %v2539, %v2464
    %v3290 = vpack.c.b16 %v2540, %v2465
    %v3291 = vpack.c.b16 %v2541, %v2466
    %v3292 = vpack.c.b16 %v2617, %v2542
    %v3293 = vpack.c.b16 %v2618, %v2543
    %v3294 = vpack.c.b16 %v2619, %v2544
    %v3295 = vpack.c.b16 %v2620, %v2545
    %v3296 = vpack.c.b16 %v2621, %v2546
    %v3297 = vpack.c.b16 %v2622, %v2547
    %v3298 = vpack.c.b16 %v2623, %v2548
    %v3299 = vpack.c.b16 %v2624, %v2549
    %v3300 = vpack.c.b16 %v2625, %v2550
    %v3301 = vpack.c.b16 %v2626, %v2551
    %v3302 = vpack.c.b16 %v2627, %v2552
    %v3303 = vpack.c.b16 %v2628, %v2553
    %v3304 = vpack.c.b16 %v2629, %v2554
    %v3305 = vpack.c.b16 %v2630, %v2555
    %v3306 = vpack.c.b16 %v2631, %v2556
    %v3307 = vpack.c.b16 %v2632, %v2557
    %v3308 = vpack.c.b16 %v2633, %v2558
    %v3309 = vpack.c.b16 %v2634, %v2559
    %v3310 = vpack.c.b16 %v2635, %v2560
    %v3311 = vpack.c.b16 %v2636, %v2561
    %v3312 = vpack.c.b16 %v2637, %v2562
    %v3313 = vpack.c.b16 %v2638, %v2563
    %v3314 = vpack.c.b16 %v2639, %v2564
    %v3315 = vpack.c.b16 %v2640, %v2565
    %v3316 = vpack.c.b16 %v2641, %v2566
    %v3317 = vpack.c.b16 %v2642, %v2567
    %v3318 = vpack.c.b16 %v2643, %v2568
    %v3319 = vpack.c.b16 %v2644, %v2569
    %v3320 = vpack.c.b16 %v2645, %v2570
    %v3321 = vpack.c.b16 %v2646, %v2571
    %v3322 = vpack.c.b16 %v2647, %v2572
    %v3323 = vpack.c.b16 %v2648, %v2573
    %v3324 = vpack.c.b16 %v2649, %v2574
    %v3325 = vpack.c.b16 %v2650, %v2575
    %v3326 = vpack.c.b16 %v2651, %v2576
    %v3327 = vpack.c.b16 %v2652, %v2577
    %v3328 = vpack.c.b16 %v2653, %v2578
    %v3329 = vpack.c.b16 %v2654, %v2579
    %v3330 = vpack.c.b16 %v2655, %v2580
    %v3331 = vpack.c.b16 %v2656, %v2581
    %v3332 = vpack.c.b16 %v2657, %v2582
    %v3333 = vpack.c.b16 %v2658, %v2583
    %v3334 = vpack.c.b16 %v2659, %v2584
    %v3335 = vpack.c.b16 %v2660, %v2585
    %v3336 = vpack.c.b16 %v2661, %v2586
    %v3337 = vpack.c.b16 %v2662, %v2587
    %v3338 = vpack.c.b16 %v2663, %v2588
    %v3339 = vpack.c.b16 %v2664, %v2589
    %v3340 = vpack.c.b16 %v2665, %v2590
    %v3341 = vpack.c.b16 %v2666, %v2591
    %v3342 = vpack.c.b16 %v2667, %v2592
    %v3343 = vpack.c.b16 %v2668, %v2593
    %v3344 = vpack.c.b16 %v2669, %v2594
    %v3345 = vpack.c.b16 %v2670, %v2595
    %v3346 = vpack.c.b16 %v2671, %v2596
    %v3347 = vpack.c.b16 %v2672, %v2597
    %v3348 = vpack.c.b16 %v2673, %v2598
    %v3349 = vpack.c.b16 %v2674, %v2599
    %v3350 = vpack.c.b16 %v2675, %v2600
    %v3351 = vpack.c.b16 %v2676, %v2601
    %v3352 = vpack.c.b16 %v2677, %v2602
    %v3353 = vpack.c.b16 %v2678, %v2603
    %v3354 = vpack.c.b16 %v2679, %v2604
    %v3355 = vpack.c.b16 %v2680, %v2605
    %v3356 = vpack.c.b16 %v2681, %v2606
    %v3357 = vpack.c.b16 %v2682, %v2607
    %v3358 = vpack.c.b16 %v2683, %v2608
    %v3359 = vpack.c.b16 %v2684, %v2609
    %v3360 = vpack.c.b16 %v2685, %v2610
    %v3361 = vpack.c.b16 %v2686, %v2611
    %v3362 = vpack.c.b16 %v2687, %v2612
    %v3363 = vpack.c.b16 %v2688, %v2613
    %v3364 = vpack.c.b16 %v2689, %v2614
    %v3365 = vpack.c.b16 %v2690, %v2615
    %v3366 = vpack.c.b16 %v2691, %v2616
    %v3367 = vpack.c.b16 %v2767, %v2692
    %v3368 = vpack.c.b16 %v2768, %v2693
    %v3369 = vpack.c.b16 %v2769, %v2694
    %v3370 = vpack.c.b16 %v2770, %v2695
    %v3371 = vpack.c.b16 %v2771, %v2696
    %v3372 = vpack.c.b16 %v2772, %v2697
    %v3373 = vpack.c.b16 %v2773, %v2698
    %v3374 = vpack.c.b16 %v2774, %v2699
    %v3375 = vpack.c.b16 %v2775, %v2700
    %v3376 = vpack.c.b16 %v2776, %v2701
    %v3377 = vpack.c.b16 %v2777, %v2702
    %v3378 = vpack.c.b16 %v2778, %v2703
    %v3379 = vpack.c.b16 %v2779, %v2704
    %v3380 = vpack.c.b16 %v2780, %v2705
    %v3381 = vpack.c.b16 %v2781, %v2706
    %v3382 = vpack.c.b16 %v2782, %v2707
    %v3383 = vpack.c.b16 %v2783, %v2708
    %v3384 = vpack.c.b16 %v2784, %v2709
    %v3385 = vpack.c.b16 %v2785, %v2710
    %v3386 = vpack.c.b16 %v2786, %v2711
    %v3387 = vpack.c.b16 %v2787, %v2712
    %v3388 = vpack.c.b16 %v2788, %v2713
    %v3389 = vpack.c.b16 %v2789, %v2714
    %v3390 = vpack.c.b16 %v2790, %v2715
    %v3391 = vpack.c.b16 %v2791, %v2716
    %v3392 = vpack.c.b16 %v2792, %v2717
    %v3393 = vpack.c.b16 %v2793, %v2718
    %v3394 = vpack.c.b16 %v2794, %v2719
    %v3395 = vpack.c.b16 %v2795, %v2720
    %v3396 = vpack.c.b16 %v2796, %v2721
    %v3397 = vpack.c.b16 %v2797, %v2722
    %v3398 = vpack.c.b16 %v2798, %v2723
    %v3399 = vpack.c.b16 %v2799, %v2724
    %v3400 = vpack.c.b16 %v2800, %v2725
    %v3401 = vpack.c.b16 %v2801, %v2726
    %v3402 = vpack.c.b16 %v2802, %v2727
    %v3403 = vpack.c.b16 %v2803, %v2728
    %v3404 = vpack.c.b16 %v2804, %v2729
    %v3405 = vpack.c.b16 %v2805, %v2730
    %v3406 = vpack.c.b16 %v2806, %v2731
    %v3407 = vpack.c.b16 %v2807, %v2732
    %v3408 = vpack.c.b16 %v2808, %v2733
    %v3409 = vpack.c.b16 %v2809, %v2734
    %v3410 = vpack.c.b16 %v2810, %v2735
    %v3411 = vpack.c.b16 %v2811, %v2736
    %v3412 = vpack.c.b16 %v2812, %v2737
    %v3413 = vpack.c.b16 %v2813, %v2738
    %v3414 = vpack.c.b16 %v2814, %v2739
    %v3415 = vpack.c.b16 %v2815, %v2740
    %v3416 = vpack.c.b16 %v2816, %v2741
    %v3417 = vpack.c.b16 %v2817, %v2742
    %v3418 = vpack.c.b16 %v2818, %v2743
    %v3419 = vpack.c.b16 %v2819, %v2744
    %v3420 = vpack.c.b16 %v2820, %v2745
    %v3421 = vpack.c.b16 %v2821, %v2746
    %v3422 = vpack.c.b16 %v2822, %v2747
    %v3423 = vpack.c.b16 %v2823, %v2748
    %v3424 = vpack.c.b16 %v2824, %v2749
    %v3425 = vpack.c.b16 %v2825, %v2750
    %v3426 = vpack.c.b16 %v2826, %v2751
    %v3427 = vpack.c.b16 %v2827, %v2752
    %v3428 = vpack.c.b16 %v2828, %v2753
    %v3429 = vpack.c.b16 %v2829, %v2754
    %v3430 = vpack.c.b16 %v2830, %v2755
    %v3431 = vpack.c.b16 %v2831, %v2756
    %v3432 = vpack.c.b16 %v2832, %v2757
    %v3433 = vpack.c.b16 %v2833, %v2758
    %v3434 = vpack.c.b16 %v2834, %v2759
    %v3435 = vpack.c.b16 %v2835, %v2760
    %v3436 = vpack.c.b16 %v2836, %v2761
    %v3437 = vpack.c.b16 %v2837, %v2762
    %v3438 = vpack.c.b16 %v2838, %v2763
    %v3439 = vpack.c.b16 %v2839, %v2764
    %v3440 = vpack.c.b16 %v2840, %v2765
    %v3441 = vpack.c.b16 %v2841, %v2766
    %4042 = vmatprep.subr.bf16.mxu0 %v2843
    %4043 = vmatpush1.bf16.msra.mxu0 %v2842
    %4044 = vmatprep.subr.bf16.mxu0 %v2918
    %4045 = vmatpush1.bf16.msra.mxu0 %v2917
    %4046 = vmatprep.subr.bf16.mxu0 %v2993
    %4047 = vmatpush1.bf16.msra.mxu0 %v2992
    %4048 = vmatprep.subr.bf16.mxu0 %v3068
    %4049 = vmatpush1.bf16.msra.mxu0 %v3067
    %4050 = vmatprep.subr.bf16.mxu0 %v3143
    %4051 = vmatpush1.bf16.msra.mxu0 %v3142
    %4052 = vmatprep.subr.bf16.mxu0 %v3218
    %4053 = vmatpush1.bf16.msra.mxu0 %v3217
    %4054 = vmatprep.subr.bf16.mxu0 %v3293
    %4055 = vmatpush1.bf16.msra.mxu0 %v3292
    %4056 = vmatprep.subr.bf16.mxu0 %v3368
    %4057 = vmatpush1.bf16.msra.mxu0 %v3367
    %4058 = vmatprep.subr.bf16.mxu0 0
    %4059 = vmatpush1.bf16.msra.mxu0 0
    %4060 = vmatprep.subr.bf16.mxu0 0
    %4061 = vmatpush1.bf16.msra.mxu0 0
    %4062 = vmatprep.subr.bf16.mxu0 0
    %4063 = vmatpush1.bf16.msra.mxu0 0
    %4064 = vmatprep.subr.bf16.mxu0 0
    %4065 = vmatpush1.bf16.msra.mxu0 0
    %4066 = vmatprep.subr.bf16.mxu0 0
    %4067 = vmatpush1.bf16.msra.mxu0 0
    %4068 = vmatprep.subr.bf16.mxu0 0
    %4069 = vmatpush1.bf16.msra.mxu0 0
    %4070 = vmatprep.subr.bf16.mxu0 0
    %4071 = vmatpush1.bf16.msra.mxu0 0
    %4072 = vmatprep.subr.bf16.mxu0 0
    %4073 = vmatpush1.bf16.msra.mxu0 0
    %4074 = vmatprep.mubr.bf16.mxu0 0
    %4075 = vmatmul.mubr.bf16.gmra.mrb[0].mxu0 %v30
    %v4076 = vpop.f32.mrb[0].mxu0
    %v4077 = vadd.f32 %v662, %v4076
    %v4078 = vpop.f32.mrb[0].mxu0
    %v4079 = vadd.f32 %v666, %v4078
    %v4080 = vpop.f32.mrb[0].mxu0
    %v4081 = vpop.f32.mrb[0].mxu0
    %4082 = vdwg.mxu0
    %4083 = vmatprep.subr.bf16.mxu0 %v2845
    %4084 = vmatpush1.bf16.msra.mxu0 %v2844
    %4085 = vmatprep.subr.bf16.mxu0 %v2920
    %4086 = vmatpush1.bf16.msra.mxu0 %v2919
    %4087 = vmatprep.subr.bf16.mxu0 %v2995
    %4088 = vmatpush1.bf16.msra.mxu0 %v2994
    %4089 = vmatprep.subr.bf16.mxu0 %v3070
    %4090 = vmatpush1.bf16.msra.mxu0 %v3069
    %4091 = vmatprep.subr.bf16.mxu0 %v3145
    %4092 = vmatpush1.bf16.msra.mxu0 %v3144
    %4093 = vmatprep.subr.bf16.mxu0 %v3220
    %4094 = vmatpush1.bf16.msra.mxu0 %v3219
    %4095 = vmatprep.subr.bf16.mxu0 %v3295
    %4096 = vmatpush1.bf16.msra.mxu0 %v3294
    %4097 = vmatprep.subr.bf16.mxu0 %v3370
    %4098 = vmatpush1.bf16.msra.mxu0 %v3369
    %4099 = vmatprep.subr.bf16.mxu0 0
    %4100 = vmatpush1.bf16.msra.mxu0 0
    %4101 = vmatprep.subr.bf16.mxu0 0
    %4102 = vmatpush1.bf16.msra.mxu0 0
    %4103 = vmatprep.subr.bf16.mxu0 0
    %4104 = vmatpush1.bf16.msra.mxu0 0
    %4105 = vmatprep.subr.bf16.mxu0 0
    %4106 = vmatpush1.bf16.msra.mxu0 0
    %4107 = vmatprep.subr.bf16.mxu0 0
    %4108 = vmatpush1.bf16.msra.mxu0 0
    %4109 = vmatprep.subr.bf16.mxu0 0
    %4110 = vmatpush1.bf16.msra.mxu0 0
    %4111 = vmatprep.subr.bf16.mxu0 0
    %4112 = vmatpush1.bf16.msra.mxu0 0
    %4113 = vmatprep.subr.bf16.mxu0 0
    %4114 = vmatpush1.bf16.msra.mxu0 0
    %4115 = vmatprep.mubr.bf16.mxu0 0
    %4116 = vmatmul.mubr.bf16.gmra.mrb[0].mxu0 %v30
    %v4117 = vpop.f32.mrb[0].mxu0
    %v4118 = vadd.f32 %v670, %v4117
    %v4119 = vpop.f32.mrb[0].mxu0
    %v4120 = vadd.f32 %v674, %v4119
    %v4121 = vpop.f32.mrb[0].mxu0
    %v4122 = vpop.f32.mrb[0].mxu0
    %4123 = vdwg.mxu0
    %4124 = vmatprep.subr.bf16.mxu0 %v2847
    %4125 = vmatpush1.bf16.msra.mxu0 %v2846
    %4126 = vmatprep.subr.bf16.mxu0 %v2922
    %4127 = vmatpush1.bf16.msra.mxu0 %v2921
    %4128 = vmatprep.subr.bf16.mxu0 %v2997
    %4129 = vmatpush1.bf16.msra.mxu0 %v2996
    %4130 = vmatprep.subr.bf16.mxu0 %v3072
    %4131 = vmatpush1.bf16.msra.mxu0 %v3071
    %4132 = vmatprep.subr.bf16.mxu0 %v3147
    %4133 = vmatpush1.bf16.msra.mxu0 %v3146
    %4134 = vmatprep.subr.bf16.mxu0 %v3222
    %4135 = vmatpush1.bf16.msra.mxu0 %v3221
    %4136 = vmatprep.subr.bf16.mxu0 %v3297
    %4137 = vmatpush1.bf16.msra.mxu0 %v3296
    %4138 = vmatprep.subr.bf16.mxu0 %v3372
    %4139 = vmatpush1.bf16.msra.mxu0 %v3371
    %4140 = vmatprep.subr.bf16.mxu0 0
    %4141 = vmatpush1.bf16.msra.mxu0 0
    %4142 = vmatprep.subr.bf16.mxu0 0
    %4143 = vmatpush1.bf16.msra.mxu0 0
    %4144 = vmatprep.subr.bf16.mxu0 0
    %4145 = vmatpush1.bf16.msra.mxu0 0
    %4146 = vmatprep.subr.bf16.mxu0 0
    %4147 = vmatpush1.bf16.msra.mxu0 0
    %4148 = vmatprep.subr.bf16.mxu0 0
    %4149 = vmatpush1.bf16.msra.mxu0 0
    %4150 = vmatprep.subr.bf16.mxu0 0
    %4151 = vmatpush1.bf16.msra.mxu0 0
    %4152 = vmatprep.subr.bf16.mxu0 0
    %4153 = vmatpush1.bf16.msra.mxu0 0
    %4154 = vmatprep.subr.bf16.mxu0 0
    %4155 = vmatpush1.bf16.msra.mxu0 0
    %4156 = vmatprep.mubr.bf16.mxu0 0
    %4157 = vmatmul.mubr.bf16.gmra.mrb[0].mxu0 %v30
    %v4158 = vpop.f32.mrb[0].mxu0
    %v4159 = vadd.f32 %v678, %v4158
    %v4160 = vpop.f32.mrb[0].mxu0
    %v4161 = vadd.f32 %v682, %v4160
    %v4162 = vpop.f32.mrb[0].mxu0
    %v4163 = vpop.f32.mrb[0].mxu0
    %4164 = vdwg.mxu0
    %4165 = vmatprep.subr.bf16.mxu0 %v2849
    %4166 = vmatpush1.bf16.msra.mxu0 %v2848
    %4167 = vmatprep.subr.bf16.mxu0 %v2924
    %4168 = vmatpush1.bf16.msra.mxu0 %v2923
    %4169 = vmatprep.subr.bf16.mxu0 %v2999
    %4170 = vmatpush1.bf16.msra.mxu0 %v2998
    %4171 = vmatprep.subr.bf16.mxu0 %v3074
    %4172 = vmatpush1.bf16.msra.mxu0 %v3073
    %4173 = vmatprep.subr.bf16.mxu0 %v3149
    %4174 = vmatpush1.bf16.msra.mxu0 %v3148
    %4175 = vmatprep.subr.bf16.mxu0 %v3224
    %4176 = vmatpush1.bf16.msra.mxu0 %v3223
    %4177 = vmatprep.subr.bf16.mxu0 %v3299
    %4178 = vmatpush1.bf16.msra.mxu0 %v3298
    %4179 = vmatprep.subr.bf16.mxu0 %v3374
    %4180 = vmatpush1.bf16.msra.mxu0 %v3373
    %4181 = vmatprep.subr.bf16.mxu0 0
    %4182 = vmatpush1.bf16.msra.mxu0 0
    %4183 = vmatprep.subr.bf16.mxu0 0
    %4184 = vmatpush1.bf16.msra.mxu0 0
    %4185 = vmatprep.subr.bf16.mxu0 0
    %4186 = vmatpush1.bf16.msra.mxu0 0
    %4187 = vmatprep.subr.bf16.mxu0 0
    %4188 = vmatpush1.bf16.msra.mxu0 0
    %4189 = vmatprep.subr.bf16.mxu0 0
    %4190 = vmatpush1.bf16.msra.mxu0 0
    %4191 = vmatprep.subr.bf16.mxu0 0
    %4192 = vmatpush1.bf16.msra.mxu0 0
    %4193 = vmatprep.subr.bf16.mxu0 0
    %4194 = vmatpush1.bf16.msra.mxu0 0
    %4195 = vmatprep.subr.bf16.mxu0 0
    %4196 = vmatpush1.bf16.msra.mxu0 0
    %4197 = vmatprep.mubr.bf16.mxu0 0
    %4198 = vmatmul.mubr.bf16.gmra.mrb[0].mxu0 %v30
    %v4199 = vpop.f32.mrb[0].mxu0
    %v4200 = vadd.f32 %v686, %v4199
    %v4201 = vpop.f32.mrb[0].mxu0
    %v4202 = vadd.f32 %v690, %v4201
    %v4203 = vpop.f32.mrb[0].mxu0
    %v4204 = vpop.f32.mrb[0].mxu0
    %4205 = vdwg.mxu0
    %4206 = vmatprep.subr.bf16.mxu0 %v2851
    %4207 = vmatpush1.bf16.msra.mxu0 %v2850
    %4208 = vmatprep.subr.bf16.mxu0 %v2926
    %4209 = vmatpush1.bf16.msra.mxu0 %v2925
    %4210 = vmatprep.subr.bf16.mxu0 %v3001
    %4211 = vmatpush1.bf16.msra.mxu0 %v3000
    %4212 = vmatprep.subr.bf16.mxu0 %v3076
    %4213 = vmatpush1.bf16.msra.mxu0 %v3075
    %4214 = vmatprep.subr.bf16.mxu0 %v3151
    %4215 = vmatpush1.bf16.msra.mxu0 %v3150
    %4216 = vmatprep.subr.bf16.mxu0 %v3226
    %4217 = vmatpush1.bf16.msra.mxu0 %v3225
    %4218 = vmatprep.subr.bf16.mxu0 %v3301
    %4219 = vmatpush1.bf16.msra.mxu0 %v3300
    %4220 = vmatprep.subr.bf16.mxu0 %v3376
    %4221 = vmatpush1.bf16.msra.mxu0 %v3375
    %4222 = vmatprep.subr.bf16.mxu0 0
    %4223 = vmatpush1.bf16.msra.mxu0 0
    %4224 = vmatprep.subr.bf16.mxu0 0
    %4225 = vmatpush1.bf16.msra.mxu0 0
    %4226 = vmatprep.subr.bf16.mxu0 0
    %4227 = vmatpush1.bf16.msra.mxu0 0
    %4228 = vmatprep.subr.bf16.mxu0 0
    %4229 = vmatpush1.bf16.msra.mxu0 0
    %4230 = vmatprep.subr.bf16.mxu0 0
    %4231 = vmatpush1.bf16.msra.mxu0 0
    %4232 = vmatprep.subr.bf16.mxu0 0
    %4233 = vmatpush1.bf16.msra.mxu0 0
    %4234 = vmatprep.subr.bf16.mxu0 0
    %4235 = vmatpush1.bf16.msra.mxu0 0
    %4236 = vmatprep.subr.bf16.mxu0 0
    %4237 = vmatpush1.bf16.msra.mxu0 0
    %4238 = vmatprep.mubr.bf16.mxu0 0
    %4239 = vmatmul.mubr.bf16.gmra.mrb[0].mxu0 %v30
    %v4240 = vpop.f32.mrb[0].mxu0
    %v4241 = vadd.f32 %v694, %v4240
    %v4242 = vpop.f32.mrb[0].mxu0
    %v4243 = vadd.f32 %v698, %v4242
    %v4244 = vpop.f32.mrb[0].mxu0
    %v4245 = vpop.f32.mrb[0].mxu0
    %4246 = vdwg.mxu0
    %4247 = vmatprep.subr.bf16.mxu0 %v2853
    %4248 = vmatpush1.bf16.msra.mxu0 %v2852
    %4249 = vmatprep.subr.bf16.mxu0 %v2928
    %4250 = vmatpush1.bf16.msra.mxu0 %v2927
    %4251 = vmatprep.subr.bf16.mxu0 %v3003
    %4252 = vmatpush1.bf16.msra.mxu0 %v3002
    %4253 = vmatprep.subr.bf16.mxu0 %v3078
    %4254 = vmatpush1.bf16.msra.mxu0 %v3077
    %4255 = vmatprep.subr.bf16.mxu0 %v3153
    %4256 = vmatpush1.bf16.msra.mxu0 %v3152
    %4257 = vmatprep.subr.bf16.mxu0 %v3228
    %4258 = vmatpush1.bf16.msra.mxu0 %v3227
    %4259 = vmatprep.subr.bf16.mxu0 %v3303
    %4260 = vmatpush1.bf16.msra.mxu0 %v3302
    %4261 = vmatprep.subr.bf16.mxu0 %v3378
    %4262 = vmatpush1.bf16.msra.mxu0 %v3377
    %4263 = vmatprep.subr.bf16.mxu0 0
    %4264 = vmatpush1.bf16.msra.mxu0 0
    %4265 = vmatprep.subr.bf16.mxu0 0
    %4266 = vmatpush1.bf16.msra.mxu0 0
    %4267 = vmatprep.subr.bf16.mxu0 0
    %4268 = vmatpush1.bf16.msra.mxu0 0
    %4269 = vmatprep.subr.bf16.mxu0 0
    %4270 = vmatpush1.bf16.msra.mxu0 0
    %4271 = vmatprep.subr.bf16.mxu0 0
    %4272 = vmatpush1.bf16.msra.mxu0 0
    %4273 = vmatprep.subr.bf16.mxu0 0
    %4274 = vmatpush1.bf16.msra.mxu0 0
    %4275 = vmatprep.subr.bf16.mxu0 0
    %4276 = vmatpush1.bf16.msra.mxu0 0
    %4277 = vmatprep.subr.bf16.mxu0 0
    %4278 = vmatpush1.bf16.msra.mxu0 0
    %4279 = vmatprep.mubr.bf16.mxu0 0
    %4280 = vmatmul.mubr.bf16.gmra.mrb[0].mxu0 %v30
    %v4281 = vpop.f32.mrb[0].mxu0
    %v4282 = vadd.f32 %v702, %v4281
    %v4283 = vpop.f32.mrb[0].mxu0
    %v4284 = vadd.f32 %v706, %v4283
    %v4285 = vpop.f32.mrb[0].mxu0
    %v4286 = vpop.f32.mrb[0].mxu0
    %4287 = vdwg.mxu0
    %4288 = vmatprep.subr.bf16.mxu0 %v2855
    %4289 = vmatpush1.bf16.msra.mxu0 %v2854
    %4290 = vmatprep.subr.bf16.mxu0 %v2930
    %4291 = vmatpush1.bf16.msra.mxu0 %v2929
    %4292 = vmatprep.subr.bf16.mxu0 %v3005
    %4293 = vmatpush1.bf16.msra.mxu0 %v3004
    %4294 = vmatprep.subr.bf16.mxu0 %v3080
    %4295 = vmatpush1.bf16.msra.mxu0 %v3079
    %4296 = vmatprep.subr.bf16.mxu0 %v3155
    %4297 = vmatpush1.bf16.msra.mxu0 %v3154
    %4298 = vmatprep.subr.bf16.mxu0 %v3230
    %4299 = vmatpush1.bf16.msra.mxu0 %v3229
    %4300 = vmatprep.subr.bf16.mxu0 %v3305
    %4301 = vmatpush1.bf16.msra.mxu0 %v3304
    %4302 = vmatprep.subr.bf16.mxu0 %v3380
    %4303 = vmatpush1.bf16.msra.mxu0 %v3379
    %4304 = vmatprep.subr.bf16.mxu0 0
    %4305 = vmatpush1.bf16.msra.mxu0 0
    %4306 = vmatprep.subr.bf16.mxu0 0
    %4307 = vmatpush1.bf16.msra.mxu0 0
    %4308 = vmatprep.subr.bf16.mxu0 0
    %4309 = vmatpush1.bf16.msra.mxu0 0
    %4310 = vmatprep.subr.bf16.mxu0 0
    %4311 = vmatpush1.bf16.msra.mxu0 0
    %4312 = vmatprep.subr.bf16.mxu0 0
    %4313 = vmatpush1.bf16.msra.mxu0 0
    %4314 = vmatprep.subr.bf16.mxu0 0
    %4315 = vmatpush1.bf16.msra.mxu0 0
    %4316 = vmatprep.subr.bf16.mxu0 0
    %4317 = vmatpush1.bf16.msra.mxu0 0
    %4318 = vmatprep.subr.bf16.mxu0 0
    %4319 = vmatpush1.bf16.msra.mxu0 0
    %4320 = vmatprep.mubr.bf16.mxu0 0
    %4321 = vmatmul.mubr.bf16.gmra.mrb[0].mxu0 %v30
    %v4322 = vpop.f32.mrb[0].mxu0
    %v4323 = vadd.f32 %v710, %v4322
    %v4324 = vpop.f32.mrb[0].mxu0
    %v4325 = vadd.f32 %v714, %v4324
    %v4326 = vpop.f32.mrb[0].mxu0
    %v4327 = vpop.f32.mrb[0].mxu0
    %4328 = vdwg.mxu0
    %4329 = vmatprep.subr.bf16.mxu0 %v2857
    %4330 = vmatpush1.bf16.msra.mxu0 %v2856
    %4331 = vmatprep.subr.bf16.mxu0 %v2932
    %4332 = vmatpush1.bf16.msra.mxu0 %v2931
    %4333 = vmatprep.subr.bf16.mxu0 %v3007
    %4334 = vmatpush1.bf16.msra.mxu0 %v3006
    %4335 = vmatprep.subr.bf16.mxu0 %v3082
    %4336 = vmatpush1.bf16.msra.mxu0 %v3081
    %4337 = vmatprep.subr.bf16.mxu0 %v3157
    %4338 = vmatpush1.bf16.msra.mxu0 %v3156
    %4339 = vmatprep.subr.bf16.mxu0 %v3232
    %4340 = vmatpush1.bf16.msra.mxu0 %v3231
    %4341 = vmatprep.subr.bf16.mxu0 %v3307
    %4342 = vmatpush1.bf16.msra.mxu0 %v3306
    %4343 = vmatprep.subr.bf16.mxu0 %v3382
    %4344 = vmatpush1.bf16.msra.mxu0 %v3381
    %4345 = vmatprep.subr.bf16.mxu0 0
    %4346 = vmatpush1.bf16.msra.mxu0 0
    %4347 = vmatprep.subr.bf16.mxu0 0
    %4348 = vmatpush1.bf16.msra.mxu0 0
    %4349 = vmatprep.subr.bf16.mxu0 0
    %4350 = vmatpush1.bf16.msra.mxu0 0
    %4351 = vmatprep.subr.bf16.mxu0 0
    %4352 = vmatpush1.bf16.msra.mxu0 0
    %4353 = vmatprep.subr.bf16.mxu0 0
    %4354 = vmatpush1.bf16.msra.mxu0 0
    %4355 = vmatprep.subr.bf16.mxu0 0
    %4356 = vmatpush1.bf16.msra.mxu0 0
    %4357 = vmatprep.subr.bf16.mxu0 0
    %4358 = vmatpush1.bf16.msra.mxu0 0
    %4359 = vmatprep.subr.bf16.mxu0 0
    %4360 = vmatpush1.bf16.msra.mxu0 0
    %4361 = vmatprep.mubr.bf16.mxu0 0
    %4362 = vmatmul.mubr.bf16.gmra.mrb[0].mxu0 %v30
    %v4363 = vpop.f32.mrb[0].mxu0
    %v4364 = vadd.f32 %v718, %v4363
    %v4365 = vpop.f32.mrb[0].mxu0
    %v4366 = vadd.f32 %v722, %v4365
    %v4367 = vpop.f32.mrb[0].mxu0
    %v4368 = vpop.f32.mrb[0].mxu0
    %4369 = vdwg.mxu0
    %4370 = vmatprep.subr.bf16.mxu0 %v2859
    %4371 = vmatpush1.bf16.msra.mxu0 %v2858
    %4372 = vmatprep.subr.bf16.mxu0 %v2934
    %4373 = vmatpush1.bf16.msra.mxu0 %v2933
    %4374 = vmatprep.subr.bf16.mxu0 %v3009
    %4375 = vmatpush1.bf16.msra.mxu0 %v3008
    %4376 = vmatprep.subr.bf16.mxu0 %v3084
    %4377 = vmatpush1.bf16.msra.mxu0 %v3083
    %4378 = vmatprep.subr.bf16.mxu0 %v3159
    %4379 = vmatpush1.bf16.msra.mxu0 %v3158
    %4380 = vmatprep.subr.bf16.mxu0 %v3234
    %4381 = vmatpush1.bf16.msra.mxu0 %v3233
    %4382 = vmatprep.subr.bf16.mxu0 %v3309
    %4383 = vmatpush1.bf16.msra.mxu0 %v3308
    %4384 = vmatprep.subr.bf16.mxu0 %v3384
    %4385 = vmatpush1.bf16.msra.mxu0 %v3383
    %4386 = vmatprep.subr.bf16.mxu0 0
    %4387 = vmatpush1.bf16.msra.mxu0 0
    %4388 = vmatprep.subr.bf16.mxu0 0
    %4389 = vmatpush1.bf16.msra.mxu0 0
    %4390 = vmatprep.subr.bf16.mxu0 0
    %4391 = vmatpush1.bf16.msra.mxu0 0
    %4392 = vmatprep.subr.bf16.mxu0 0
    %4393 = vmatpush1.bf16.msra.mxu0 0
    %4394 = vmatprep.subr.bf16.mxu0 0
    %4395 = vmatpush1.bf16.msra.mxu0 0
    %4396 = vmatprep.subr.bf16.mxu0 0
    %4397 = vmatpush1.bf16.msra.mxu0 0
    %4398 = vmatprep.subr.bf16.mxu0 0
    %4399 = vmatpush1.bf16.msra.mxu0 0
    %4400 = vmatprep.subr.bf16.mxu0 0
    %4401 = vmatpush1.bf16.msra.mxu0 0
    %4402 = vmatprep.mubr.bf16.mxu0 0
    %4403 = vmatmul.mubr.bf16.gmra.mrb[0].mxu0 %v30
    %v4404 = vpop.f32.mrb[0].mxu0
    %v4405 = vadd.f32 %v726, %v4404
    %v4406 = vpop.f32.mrb[0].mxu0
    %v4407 = vadd.f32 %v730, %v4406
    %v4408 = vpop.f32.mrb[0].mxu0
    %v4409 = vpop.f32.mrb[0].mxu0
    %4410 = vdwg.mxu0
    %4411 = vmatprep.subr.bf16.mxu0 %v2861
    %4412 = vmatpush1.bf16.msra.mxu0 %v2860
    %4413 = vmatprep.subr.bf16.mxu0 %v2936
    %4414 = vmatpush1.bf16.msra.mxu0 %v2935
    %4415 = vmatprep.subr.bf16.mxu0 %v3011
    %4416 = vmatpush1.bf16.msra.mxu0 %v3010
    %4417 = vmatprep.subr.bf16.mxu0 %v3086
    %4418 = vmatpush1.bf16.msra.mxu0 %v3085
    %4419 = vmatprep.subr.bf16.mxu0 %v3161
    %4420 = vmatpush1.bf16.msra.mxu0 %v3160
    %4421 = vmatprep.subr.bf16.mxu0 %v3236
    %4422 = vmatpush1.bf16.msra.mxu0 %v3235
    %4423 = vmatprep.subr.bf16.mxu0 %v3311
    %4424 = vmatpush1.bf16.msra.mxu0 %v3310
    %4425 = vmatprep.subr.bf16.mxu0 %v3386
    %4426 = vmatpush1.bf16.msra.mxu0 %v3385
    %4427 = vmatprep.subr.bf16.mxu0 0
    %4428 = vmatpush1.bf16.msra.mxu0 0
    %4429 = vmatprep.subr.bf16.mxu0 0
    %4430 = vmatpush1.bf16.msra.mxu0 0
    %4431 = vmatprep.subr.bf16.mxu0 0
    %4432 = vmatpush1.bf16.msra.mxu0 0
    %4433 = vmatprep.subr.bf16.mxu0 0
    %4434 = vmatpush1.bf16.msra.mxu0 0
    %4435 = vmatprep.subr.bf16.mxu0 0
    %4436 = vmatpush1.bf16.msra.mxu0 0
    %4437 = vmatprep.subr.bf16.mxu0 0
    %4438 = vmatpush1.bf16.msra.mxu0 0
    %4439 = vmatprep.subr.bf16.mxu0 0
    %4440 = vmatpush1.bf16.msra.mxu0 0
    %4441 = vmatprep.subr.bf16.mxu0 0
    %4442 = vmatpush1.bf16.msra.mxu0 0
    %4443 = vmatprep.mubr.bf16.mxu0 0
    %4444 = vmatmul.mubr.bf16.gmra.mrb[0].mxu0 %v30
    %v4445 = vpop.f32.mrb[0].mxu0
    %v4446 = vadd.f32 %v734, %v4445
    %v4447 = vpop.f32.mrb[0].mxu0
    %v4448 = vadd.f32 %v738, %v4447
    %v4449 = vpop.f32.mrb[0].mxu0
    %v4450 = vpop.f32.mrb[0].mxu0
    %4451 = vdwg.mxu0
    %4452 = vmatprep.subr.bf16.mxu0 %v2863
    %4453 = vmatpush1.bf16.msra.mxu0 %v2862
    %4454 = vmatprep.subr.bf16.mxu0 %v2938
    %4455 = vmatpush1.bf16.msra.mxu0 %v2937
    %4456 = vmatprep.subr.bf16.mxu0 %v3013
    %4457 = vmatpush1.bf16.msra.mxu0 %v3012
    %4458 = vmatprep.subr.bf16.mxu0 %v3088
    %4459 = vmatpush1.bf16.msra.mxu0 %v3087
    %4460 = vmatprep.subr.bf16.mxu0 %v3163
    %4461 = vmatpush1.bf16.msra.mxu0 %v3162
    %4462 = vmatprep.subr.bf16.mxu0 %v3238
    %4463 = vmatpush1.bf16.msra.mxu0 %v3237
    %4464 = vmatprep.subr.bf16.mxu0 %v3313
    %4465 = vmatpush1.bf16.msra.mxu0 %v3312
    %4466 = vmatprep.subr.bf16.mxu0 %v3388
    %4467 = vmatpush1.bf16.msra.mxu0 %v3387
    %4468 = vmatprep.subr.bf16.mxu0 0
    %4469 = vmatpush1.bf16.msra.mxu0 0
    %4470 = vmatprep.subr.bf16.mxu0 0
    %4471 = vmatpush1.bf16.msra.mxu0 0
    %4472 = vmatprep.subr.bf16.mxu0 0
    %4473 = vmatpush1.bf16.msra.mxu0 0
    %4474 = vmatprep.subr.bf16.mxu0 0
    %4475 = vmatpush1.bf16.msra.mxu0 0
    %4476 = vmatprep.subr.bf16.mxu0 0
    %4477 = vmatpush1.bf16.msra.mxu0 0
    %4478 = vmatprep.subr.bf16.mxu0 0
    %4479 = vmatpush1.bf16.msra.mxu0 0
    %4480 = vmatprep.subr.bf16.mxu0 0
    %4481 = vmatpush1.bf16.msra.mxu0 0
    %4482 = vmatprep.subr.bf16.mxu0 0
    %4483 = vmatpush1.bf16.msra.mxu0 0
    %4484 = vmatprep.mubr.bf16.mxu0 0
    %4485 = vmatmul.mubr.bf16.gmra.mrb[0].mxu0 %v30
    %v4486 = vpop.f32.mrb[0].mxu0
    %v4487 = vadd.f32 %v742, %v4486
    %v4488 = vpop.f32.mrb[0].mxu0
    %v4489 = vadd.f32 %v746, %v4488
    %v4490 = vpop.f32.mrb[0].mxu0
    %v4491 = vpop.f32.mrb[0].mxu0
    %4492 = vdwg.mxu0
    %4493 = vmatprep.subr.bf16.mxu0 %v2865
    %4494 = vmatpush1.bf16.msra.mxu0 %v2864
    %4495 = vmatprep.subr.bf16.mxu0 %v2940
    %4496 = vmatpush1.bf16.msra.mxu0 %v2939
    %4497 = vmatprep.subr.bf16.mxu0 %v3015
    %4498 = vmatpush1.bf16.msra.mxu0 %v3014
    %4499 = vmatprep.subr.bf16.mxu0 %v3090
    %4500 = vmatpush1.bf16.msra.mxu0 %v3089
    %4501 = vmatprep.subr.bf16.mxu0 %v3165
    %4502 = vmatpush1.bf16.msra.mxu0 %v3164
    %4503 = vmatprep.subr.bf16.mxu0 %v3240
    %4504 = vmatpush1.bf16.msra.mxu0 %v3239
    %4505 = vmatprep.subr.bf16.mxu0 %v3315
    %4506 = vmatpush1.bf16.msra.mxu0 %v3314
    %4507 = vmatprep.subr.bf16.mxu0 %v3390
    %4508 = vmatpush1.bf16.msra.mxu0 %v3389
    %4509 = vmatprep.subr.bf16.mxu0 0
    %4510 = vmatpush1.bf16.msra.mxu0 0
    %4511 = vmatprep.subr.bf16.mxu0 0
    %4512 = vmatpush1.bf16.msra.mxu0 0
    %4513 = vmatprep.subr.bf16.mxu0 0
    %4514 = vmatpush1.bf16.msra.mxu0 0
    %4515 = vmatprep.subr.bf16.mxu0 0
    %4516 = vmatpush1.bf16.msra.mxu0 0
    %4517 = vmatprep.subr.bf16.mxu0 0
    %4518 = vmatpush1.bf16.msra.mxu0 0
    %4519 = vmatprep.subr.bf16.mxu0 0
    %4520 = vmatpush1.bf16.msra.mxu0 0
    %4521 = vmatprep.subr.bf16.mxu0 0
    %4522 = vmatpush1.bf16.msra.mxu0 0
    %4523 = vmatprep.subr.bf16.mxu0 0
    %4524 = vmatpush1.bf16.msra.mxu0 0
    %4525 = vmatprep.mubr.bf16.mxu0 0
    %4526 = vmatmul.mubr.bf16.gmra.mrb[0].mxu0 %v30
    %v4527 = vpop.f32.mrb[0].mxu0
    %v4528 = vadd.f32 %v750, %v4527
    %v4529 = vpop.f32.mrb[0].mxu0
    %v4530 = vadd.f32 %v754, %v4529
    %v4531 = vpop.f32.mrb[0].mxu0
    %v4532 = vpop.f32.mrb[0].mxu0
    %4533 = vdwg.mxu0
    %4534 = vmatprep.subr.bf16.mxu0 %v2867
    %4535 = vmatpush1.bf16.msra.mxu0 %v2866
    %4536 = vmatprep.subr.bf16.mxu0 %v2942
    %4537 = vmatpush1.bf16.msra.mxu0 %v2941
    %4538 = vmatprep.subr.bf16.mxu0 %v3017
    %4539 = vmatpush1.bf16.msra.mxu0 %v3016
    %4540 = vmatprep.subr.bf16.mxu0 %v3092
    %4541 = vmatpush1.bf16.msra.mxu0 %v3091
    %4542 = vmatprep.subr.bf16.mxu0 %v3167
    %4543 = vmatpush1.bf16.msra.mxu0 %v3166
    %4544 = vmatprep.subr.bf16.mxu0 %v3242
    %4545 = vmatpush1.bf16.msra.mxu0 %v3241
    %4546 = vmatprep.subr.bf16.mxu0 %v3317
    %4547 = vmatpush1.bf16.msra.mxu0 %v3316
    %4548 = vmatprep.subr.bf16.mxu0 %v3392
    %4549 = vmatpush1.bf16.msra.mxu0 %v3391
    %4550 = vmatprep.subr.bf16.mxu0 0
    %4551 = vmatpush1.bf16.msra.mxu0 0
    %4552 = vmatprep.subr.bf16.mxu0 0
    %4553 = vmatpush1.bf16.msra.mxu0 0
    %4554 = vmatprep.subr.bf16.mxu0 0
    %4555 = vmatpush1.bf16.msra.mxu0 0
    %4556 = vmatprep.subr.bf16.mxu0 0
    %4557 = vmatpush1.bf16.msra.mxu0 0
    %4558 = vmatprep.subr.bf16.mxu0 0
    %4559 = vmatpush1.bf16.msra.mxu0 0
    %4560 = vmatprep.subr.bf16.mxu0 0
    %4561 = vmatpush1.bf16.msra.mxu0 0
    %4562 = vmatprep.subr.bf16.mxu0 0
    %4563 = vmatpush1.bf16.msra.mxu0 0
    %4564 = vmatprep.subr.bf16.mxu0 0
    %4565 = vmatpush1.bf16.msra.mxu0 0
    %4566 = vmatprep.mubr.bf16.mxu0 0
    %4567 = vmatmul.mubr.bf16.gmra.mrb[0].mxu0 %v30
    %v4568 = vpop.f32.mrb[0].mxu0
    %v4569 = vadd.f32 %v758, %v4568
    %v4570 = vpop.f32.mrb[0].mxu0
    %v4571 = vadd.f32 %v762, %v4570
    %v4572 = vpop.f32.mrb[0].mxu0
    %v4573 = vpop.f32.mrb[0].mxu0
    %4574 = vdwg.mxu0
    %4575 = vmatprep.subr.bf16.mxu0 %v2869
    %4576 = vmatpush1.bf16.msra.mxu0 %v2868
    %4577 = vmatprep.subr.bf16.mxu0 %v2944
    %4578 = vmatpush1.bf16.msra.mxu0 %v2943
    %4579 = vmatprep.subr.bf16.mxu0 %v3019
    %4580 = vmatpush1.bf16.msra.mxu0 %v3018
    %4581 = vmatprep.subr.bf16.mxu0 %v3094
    %4582 = vmatpush1.bf16.msra.mxu0 %v3093
    %4583 = vmatprep.subr.bf16.mxu0 %v3169
    %4584 = vmatpush1.bf16.msra.mxu0 %v3168
    %4585 = vmatprep.subr.bf16.mxu0 %v3244
    %4586 = vmatpush1.bf16.msra.mxu0 %v3243
    %4587 = vmatprep.subr.bf16.mxu0 %v3319
    %4588 = vmatpush1.bf16.msra.mxu0 %v3318
    %4589 = vmatprep.subr.bf16.mxu0 %v3394
    %4590 = vmatpush1.bf16.msra.mxu0 %v3393
    %4591 = vmatprep.subr.bf16.mxu0 0
    %4592 = vmatpush1.bf16.msra.mxu0 0
    %4593 = vmatprep.subr.bf16.mxu0 0
    %4594 = vmatpush1.bf16.msra.mxu0 0
    %4595 = vmatprep.subr.bf16.mxu0 0
    %4596 = vmatpush1.bf16.msra.mxu0 0
    %4597 = vmatprep.subr.bf16.mxu0 0
    %4598 = vmatpush1.bf16.msra.mxu0 0
    %4599 = vmatprep.subr.bf16.mxu0 0
    %4600 = vmatpush1.bf16.msra.mxu0 0
    %4601 = vmatprep.subr.bf16.mxu0 0
    %4602 = vmatpush1.bf16.msra.mxu0 0
    %4603 = vmatprep.subr.bf16.mxu0 0
    %4604 = vmatpush1.bf16.msra.mxu0 0
    %4605 = vmatprep.subr.bf16.mxu0 0
    %4606 = vmatpush1.bf16.msra.mxu0 0
    %4607 = vmatprep.mubr.bf16.mxu0 0
    %4608 = vmatmul.mubr.bf16.gmra.mrb[0].mxu0 %v30
    %v4609 = vpop.f32.mrb[0].mxu0
    %v4610 = vadd.f32 %v766, %v4609
    %v4611 = vpop.f32.mrb[0].mxu0
    %v4612 = vadd.f32 %v770, %v4611
    %v4613 = vpop.f32.mrb[0].mxu0
    %v4614 = vpop.f32.mrb[0].mxu0
    %4615 = vdwg.mxu0
    %4616 = vmatprep.subr.bf16.mxu0 %v2871
    %4617 = vmatpush1.bf16.msra.mxu0 %v2870
    %4618 = vmatprep.subr.bf16.mxu0 %v2946
    %4619 = vmatpush1.bf16.msra.mxu0 %v2945
    %4620 = vmatprep.subr.bf16.mxu0 %v3021
    %4621 = vmatpush1.bf16.msra.mxu0 %v3020
    %4622 = vmatprep.subr.bf16.mxu0 %v3096
    %4623 = vmatpush1.bf16.msra.mxu0 %v3095
    %4624 = vmatprep.subr.bf16.mxu0 %v3171
    %4625 = vmatpush1.bf16.msra.mxu0 %v3170
    %4626 = vmatprep.subr.bf16.mxu0 %v3246
    %4627 = vmatpush1.bf16.msra.mxu0 %v3245
    %4628 = vmatprep.subr.bf16.mxu0 %v3321
    %4629 = vmatpush1.bf16.msra.mxu0 %v3320
    %4630 = vmatprep.subr.bf16.mxu0 %v3396
    %4631 = vmatpush1.bf16.msra.mxu0 %v3395
    %4632 = vmatprep.subr.bf16.mxu0 0
    %4633 = vmatpush1.bf16.msra.mxu0 0
    %4634 = vmatprep.subr.bf16.mxu0 0
    %4635 = vmatpush1.bf16.msra.mxu0 0
    %4636 = vmatprep.subr.bf16.mxu0 0
    %4637 = vmatpush1.bf16.msra.mxu0 0
    %4638 = vmatprep.subr.bf16.mxu0 0
    %4639 = vmatpush1.bf16.msra.mxu0 0
    %4640 = vmatprep.subr.bf16.mxu0 0
    %4641 = vmatpush1.bf16.msra.mxu0 0
    %4642 = vmatprep.subr.bf16.mxu0 0
    %4643 = vmatpush1.bf16.msra.mxu0 0
    %4644 = vmatprep.subr.bf16.mxu0 0
    %4645 = vmatpush1.bf16.msra.mxu0 0
    %4646 = vmatprep.subr.bf16.mxu0 0
    %4647 = vmatpush1.bf16.msra.mxu0 0
    %4648 = vmatprep.mubr.bf16.mxu0 0
    %4649 = vmatmul.mubr.bf16.gmra.mrb[0].mxu0 %v30
    %v4650 = vpop.f32.mrb[0].mxu0
    %v4651 = vadd.f32 %v774, %v4650
    %v4652 = vpop.f32.mrb[0].mxu0
    %v4653 = vadd.f32 %v778, %v4652
    %v4654 = vpop.f32.mrb[0].mxu0
    %v4655 = vpop.f32.mrb[0].mxu0
    %4656 = vdwg.mxu0
    %4657 = vmatprep.subr.bf16.mxu0 %v2873
    %4658 = vmatpush1.bf16.msra.mxu0 %v2872
    %4659 = vmatprep.subr.bf16.mxu0 %v2948
    %4660 = vmatpush1.bf16.msra.mxu0 %v2947
    %4661 = vmatprep.subr.bf16.mxu0 %v3023
    %4662 = vmatpush1.bf16.msra.mxu0 %v3022
    %4663 = vmatprep.subr.bf16.mxu0 %v3098
    %4664 = vmatpush1.bf16.msra.mxu0 %v3097
    %4665 = vmatprep.subr.bf16.mxu0 %v3173
    %4666 = vmatpush1.bf16.msra.mxu0 %v3172
    %4667 = vmatprep.subr.bf16.mxu0 %v3248
    %4668 = vmatpush1.bf16.msra.mxu0 %v3247
    %4669 = vmatprep.subr.bf16.mxu0 %v3323
    %4670 = vmatpush1.bf16.msra.mxu0 %v3322
    %4671 = vmatprep.subr.bf16.mxu0 %v3398
    %4672 = vmatpush1.bf16.msra.mxu0 %v3397
    %4673 = vmatprep.subr.bf16.mxu0 0
    %4674 = vmatpush1.bf16.msra.mxu0 0
    %4675 = vmatprep.subr.bf16.mxu0 0
    %4676 = vmatpush1.bf16.msra.mxu0 0
    %4677 = vmatprep.subr.bf16.mxu0 0
    %4678 = vmatpush1.bf16.msra.mxu0 0
    %4679 = vmatprep.subr.bf16.mxu0 0
    %4680 = vmatpush1.bf16.msra.mxu0 0
    %4681 = vmatprep.subr.bf16.mxu0 0
    %4682 = vmatpush1.bf16.msra.mxu0 0
    %4683 = vmatprep.subr.bf16.mxu0 0
    %4684 = vmatpush1.bf16.msra.mxu0 0
    %4685 = vmatprep.subr.bf16.mxu0 0
    %4686 = vmatpush1.bf16.msra.mxu0 0
    %4687 = vmatprep.subr.bf16.mxu0 0
    %4688 = vmatpush1.bf16.msra.mxu0 0
    %4689 = vmatprep.mubr.bf16.mxu0 0
    %4690 = vmatmul.mubr.bf16.gmra.mrb[0].mxu0 %v30
    %v4691 = vpop.f32.mrb[0].mxu0
    %v4692 = vadd.f32 %v782, %v4691
    %v4693 = vpop.f32.mrb[0].mxu0
    %v4694 = vadd.f32 %v786, %v4693
    %v4695 = vpop.f32.mrb[0].mxu0
    %v4696 = vpop.f32.mrb[0].mxu0
    %4697 = vdwg.mxu0
    %4698 = vmatprep.subr.bf16.mxu0 %v2875
    %4699 = vmatpush1.bf16.msra.mxu0 %v2874
    %4700 = vmatprep.subr.bf16.mxu0 %v2950
    %4701 = vmatpush1.bf16.msra.mxu0 %v2949
    %4702 = vmatprep.subr.bf16.mxu0 %v3025
    %4703 = vmatpush1.bf16.msra.mxu0 %v3024
    %4704 = vmatprep.subr.bf16.mxu0 %v3100
    %4705 = vmatpush1.bf16.msra.mxu0 %v3099
    %4706 = vmatprep.subr.bf16.mxu0 %v3175
    %4707 = vmatpush1.bf16.msra.mxu0 %v3174
    %4708 = vmatprep.subr.bf16.mxu0 %v3250
    %4709 = vmatpush1.bf16.msra.mxu0 %v3249
    %4710 = vmatprep.subr.bf16.mxu0 %v3325
    %4711 = vmatpush1.bf16.msra.mxu0 %v3324
    %4712 = vmatprep.subr.bf16.mxu0 %v3400
    %4713 = vmatpush1.bf16.msra.mxu0 %v3399
    %4714 = vmatprep.subr.bf16.mxu0 0
    %4715 = vmatpush1.bf16.msra.mxu0 0
    %4716 = vmatprep.subr.bf16.mxu0 0
    %4717 = vmatpush1.bf16.msra.mxu0 0
    %4718 = vmatprep.subr.bf16.mxu0 0
    %4719 = vmatpush1.bf16.msra.mxu0 0
    %4720 = vmatprep.subr.bf16.mxu0 0
    %4721 = vmatpush1.bf16.msra.mxu0 0
    %4722 = vmatprep.subr.bf16.mxu0 0
    %4723 = vmatpush1.bf16.msra.mxu0 0
    %4724 = vmatprep.subr.bf16.mxu0 0
    %4725 = vmatpush1.bf16.msra.mxu0 0
    %4726 = vmatprep.subr.bf16.mxu0 0
    %4727 = vmatpush1.bf16.msra.mxu0 0
    %4728 = vmatprep.subr.bf16.mxu0 0
    %4729 = vmatpush1.bf16.msra.mxu0 0
    %4730 = vmatprep.mubr.bf16.mxu0 0
    %4731 = vmatmul.mubr.bf16.gmra.mrb[0].mxu0 %v30
    %v4732 = vpop.f32.mrb[0].mxu0
    %v4733 = vadd.f32 %v790, %v4732
    %v4734 = vpop.f32.mrb[0].mxu0
    %v4735 = vadd.f32 %v794, %v4734
    %v4736 = vpop.f32.mrb[0].mxu0
    %v4737 = vpop.f32.mrb[0].mxu0
    %4738 = vdwg.mxu0
    %4739 = vmatprep.subr.bf16.mxu0 %v2877
    %4740 = vmatpush1.bf16.msra.mxu0 %v2876
    %4741 = vmatprep.subr.bf16.mxu0 %v2952
    %4742 = vmatpush1.bf16.msra.mxu0 %v2951
    %4743 = vmatprep.subr.bf16.mxu0 %v3027
    %4744 = vmatpush1.bf16.msra.mxu0 %v3026
    %4745 = vmatprep.subr.bf16.mxu0 %v3102
    %4746 = vmatpush1.bf16.msra.mxu0 %v3101
    %4747 = vmatprep.subr.bf16.mxu0 %v3177
    %4748 = vmatpush1.bf16.msra.mxu0 %v3176
    %4749 = vmatprep.subr.bf16.mxu0 %v3252
    %4750 = vmatpush1.bf16.msra.mxu0 %v3251
    %4751 = vmatprep.subr.bf16.mxu0 %v3327
    %4752 = vmatpush1.bf16.msra.mxu0 %v3326
    %4753 = vmatprep.subr.bf16.mxu0 %v3402
    %4754 = vmatpush1.bf16.msra.mxu0 %v3401
    %4755 = vmatprep.subr.bf16.mxu0 0
    %4756 = vmatpush1.bf16.msra.mxu0 0
    %4757 = vmatprep.subr.bf16.mxu0 0
    %4758 = vmatpush1.bf16.msra.mxu0 0
    %4759 = vmatprep.subr.bf16.mxu0 0
    %4760 = vmatpush1.bf16.msra.mxu0 0
    %4761 = vmatprep.subr.bf16.mxu0 0
    %4762 = vmatpush1.bf16.msra.mxu0 0
    %4763 = vmatprep.subr.bf16.mxu0 0
    %4764 = vmatpush1.bf16.msra.mxu0 0
    %4765 = vmatprep.subr.bf16.mxu0 0
    %4766 = vmatpush1.bf16.msra.mxu0 0
    %4767 = vmatprep.subr.bf16.mxu0 0
    %4768 = vmatpush1.bf16.msra.mxu0 0
    %4769 = vmatprep.subr.bf16.mxu0 0
    %4770 = vmatpush1.bf16.msra.mxu0 0
    %4771 = vmatprep.mubr.bf16.mxu0 0
    %4772 = vmatmul.mubr.bf16.gmra.mrb[0].mxu0 %v30
    %v4773 = vpop.f32.mrb[0].mxu0
    %v4774 = vadd.f32 %v798, %v4773
    %v4775 = vpop.f32.mrb[0].mxu0
    %v4776 = vadd.f32 %v802, %v4775
    %v4777 = vpop.f32.mrb[0].mxu0
    %v4778 = vpop.f32.mrb[0].mxu0
    %4779 = vdwg.mxu0
    %4780 = vmatprep.subr.bf16.mxu0 %v2879
    %4781 = vmatpush1.bf16.msra.mxu0 %v2878
    %4782 = vmatprep.subr.bf16.mxu0 %v2954
    %4783 = vmatpush1.bf16.msra.mxu0 %v2953
    %4784 = vmatprep.subr.bf16.mxu0 %v3029
    %4785 = vmatpush1.bf16.msra.mxu0 %v3028
    %4786 = vmatprep.subr.bf16.mxu0 %v3104
    %4787 = vmatpush1.bf16.msra.mxu0 %v3103
    %4788 = vmatprep.subr.bf16.mxu0 %v3179
    %4789 = vmatpush1.bf16.msra.mxu0 %v3178
    %4790 = vmatprep.subr.bf16.mxu0 %v3254
    %4791 = vmatpush1.bf16.msra.mxu0 %v3253
    %4792 = vmatprep.subr.bf16.mxu0 %v3329
    %4793 = vmatpush1.bf16.msra.mxu0 %v3328
    %4794 = vmatprep.subr.bf16.mxu0 %v3404
    %4795 = vmatpush1.bf16.msra.mxu0 %v3403
    %4796 = vmatprep.subr.bf16.mxu0 0
    %4797 = vmatpush1.bf16.msra.mxu0 0
    %4798 = vmatprep.subr.bf16.mxu0 0
    %4799 = vmatpush1.bf16.msra.mxu0 0
    %4800 = vmatprep.subr.bf16.mxu0 0
    %4801 = vmatpush1.bf16.msra.mxu0 0
    %4802 = vmatprep.subr.bf16.mxu0 0
    %4803 = vmatpush1.bf16.msra.mxu0 0
    %4804 = vmatprep.subr.bf16.mxu0 0
    %4805 = vmatpush1.bf16.msra.mxu0 0
    %4806 = vmatprep.subr.bf16.mxu0 0
    %4807 = vmatpush1.bf16.msra.mxu0 0
    %4808 = vmatprep.subr.bf16.mxu0 0
    %4809 = vmatpush1.bf16.msra.mxu0 0
    %4810 = vmatprep.subr.bf16.mxu0 0
    %4811 = vmatpush1.bf16.msra.mxu0 0
    %4812 = vmatprep.mubr.bf16.mxu0 0
    %4813 = vmatmul.mubr.bf16.gmra.mrb[0].mxu0 %v30
    %v4814 = vpop.f32.mrb[0].mxu0
    %v4815 = vadd.f32 %v806, %v4814
    %v4816 = vpop.f32.mrb[0].mxu0
    %v4817 = vadd.f32 %v810, %v4816
    %v4818 = vpop.f32.mrb[0].mxu0
    %v4819 = vpop.f32.mrb[0].mxu0
    %4820 = vdwg.mxu0
    %4821 = vmatprep.subr.bf16.mxu0 %v2881
    %4822 = vmatpush1.bf16.msra.mxu0 %v2880
    %4823 = vmatprep.subr.bf16.mxu0 %v2956
    %4824 = vmatpush1.bf16.msra.mxu0 %v2955
    %4825 = vmatprep.subr.bf16.mxu0 %v3031
    %4826 = vmatpush1.bf16.msra.mxu0 %v3030
    %4827 = vmatprep.subr.bf16.mxu0 %v3106
    %4828 = vmatpush1.bf16.msra.mxu0 %v3105
    %4829 = vmatprep.subr.bf16.mxu0 %v3181
    %4830 = vmatpush1.bf16.msra.mxu0 %v3180
    %4831 = vmatprep.subr.bf16.mxu0 %v3256
    %4832 = vmatpush1.bf16.msra.mxu0 %v3255
    %4833 = vmatprep.subr.bf16.mxu0 %v3331
    %4834 = vmatpush1.bf16.msra.mxu0 %v3330
    %4835 = vmatprep.subr.bf16.mxu0 %v3406
    %4836 = vmatpush1.bf16.msra.mxu0 %v3405
    %4837 = vmatprep.subr.bf16.mxu0 0
    %4838 = vmatpush1.bf16.msra.mxu0 0
    %4839 = vmatprep.subr.bf16.mxu0 0
    %4840 = vmatpush1.bf16.msra.mxu0 0
    %4841 = vmatprep.subr.bf16.mxu0 0
    %4842 = vmatpush1.bf16.msra.mxu0 0
    %4843 = vmatprep.subr.bf16.mxu0 0
    %4844 = vmatpush1.bf16.msra.mxu0 0
    %4845 = vmatprep.subr.bf16.mxu0 0
    %4846 = vmatpush1.bf16.msra.mxu0 0
    %4847 = vmatprep.subr.bf16.mxu0 0
    %4848 = vmatpush1.bf16.msra.mxu0 0
    %4849 = vmatprep.subr.bf16.mxu0 0
    %4850 = vmatpush1.bf16.msra.mxu0 0
    %4851 = vmatprep.subr.bf16.mxu0 0
    %4852 = vmatpush1.bf16.msra.mxu0 0
    %4853 = vmatprep.mubr.bf16.mxu0 0
    %4854 = vmatmul.mubr.bf16.gmra.mrb[0].mxu0 %v30
    %v4855 = vpop.f32.mrb[0].mxu0
    %v4856 = vadd.f32 %v814, %v4855
    %v4857 = vpop.f32.mrb[0].mxu0
    %v4858 = vadd.f32 %v818, %v4857
    %v4859 = vpop.f32.mrb[0].mxu0
    %v4860 = vpop.f32.mrb[0].mxu0
    %4861 = vdwg.mxu0
    %4862 = vmatprep.subr.bf16.mxu0 %v2883
    %4863 = vmatpush1.bf16.msra.mxu0 %v2882
    %4864 = vmatprep.subr.bf16.mxu0 %v2958
    %4865 = vmatpush1.bf16.msra.mxu0 %v2957
    %4866 = vmatprep.subr.bf16.mxu0 %v3033
    %4867 = vmatpush1.bf16.msra.mxu0 %v3032
    %4868 = vmatprep.subr.bf16.mxu0 %v3108
    %4869 = vmatpush1.bf16.msra.mxu0 %v3107
    %4870 = vmatprep.subr.bf16.mxu0 %v3183
    %4871 = vmatpush1.bf16.msra.mxu0 %v3182
    %4872 = vmatprep.subr.bf16.mxu0 %v3258
    %4873 = vmatpush1.bf16.msra.mxu0 %v3257
    %4874 = vmatprep.subr.bf16.mxu0 %v3333
    %4875 = vmatpush1.bf16.msra.mxu0 %v3332
    %4876 = vmatprep.subr.bf16.mxu0 %v3408
    %4877 = vmatpush1.bf16.msra.mxu0 %v3407
    %4878 = vmatprep.subr.bf16.mxu0 0
    %4879 = vmatpush1.bf16.msra.mxu0 0
    %4880 = vmatprep.subr.bf16.mxu0 0
    %4881 = vmatpush1.bf16.msra.mxu0 0
    %4882 = vmatprep.subr.bf16.mxu0 0
    %4883 = vmatpush1.bf16.msra.mxu0 0
    %4884 = vmatprep.subr.bf16.mxu0 0
    %4885 = vmatpush1.bf16.msra.mxu0 0
    %4886 = vmatprep.subr.bf16.mxu0 0
    %4887 = vmatpush1.bf16.msra.mxu0 0
    %4888 = vmatprep.subr.bf16.mxu0 0
    %4889 = vmatpush1.bf16.msra.mxu0 0
    %4890 = vmatprep.subr.bf16.mxu0 0
    %4891 = vmatpush1.bf16.msra.mxu0 0
    %4892 = vmatprep.subr.bf16.mxu0 0
    %4893 = vmatpush1.bf16.msra.mxu0 0
    %4894 = vmatprep.mubr.bf16.mxu0 0
    %4895 = vmatmul.mubr.bf16.gmra.mrb[0].mxu0 %v30
    %v4896 = vpop.f32.mrb[0].mxu0
    %v4897 = vadd.f32 %v822, %v4896
    %v4898 = vpop.f32.mrb[0].mxu0
    %v4899 = vadd.f32 %v826, %v4898
    %v4900 = vpop.f32.mrb[0].mxu0
    %v4901 = vpop.f32.mrb[0].mxu0
    %4902 = vdwg.mxu0
    %4903 = vmatprep.subr.bf16.mxu0 %v2885
    %4904 = vmatpush1.bf16.msra.mxu0 %v2884
    %4905 = vmatprep.subr.bf16.mxu0 %v2960
    %4906 = vmatpush1.bf16.msra.mxu0 %v2959
    %4907 = vmatprep.subr.bf16.mxu0 %v3035
    %4908 = vmatpush1.bf16.msra.mxu0 %v3034
    %4909 = vmatprep.subr.bf16.mxu0 %v3110
    %4910 = vmatpush1.bf16.msra.mxu0 %v3109
    %4911 = vmatprep.subr.bf16.mxu0 %v3185
    %4912 = vmatpush1.bf16.msra.mxu0 %v3184
    %4913 = vmatprep.subr.bf16.mxu0 %v3260
    %4914 = vmatpush1.bf16.msra.mxu0 %v3259
    %4915 = vmatprep.subr.bf16.mxu0 %v3335
    %4916 = vmatpush1.bf16.msra.mxu0 %v3334
    %4917 = vmatprep.subr.bf16.mxu0 %v3410
    %4918 = vmatpush1.bf16.msra.mxu0 %v3409
    %4919 = vmatprep.subr.bf16.mxu0 0
    %4920 = vmatpush1.bf16.msra.mxu0 0
    %4921 = vmatprep.subr.bf16.mxu0 0
    %4922 = vmatpush1.bf16.msra.mxu0 0
    %4923 = vmatprep.subr.bf16.mxu0 0
    %4924 = vmatpush1.bf16.msra.mxu0 0
    %4925 = vmatprep.subr.bf16.mxu0 0
    %4926 = vmatpush1.bf16.msra.mxu0 0
    %4927 = vmatprep.subr.bf16.mxu0 0
    %4928 = vmatpush1.bf16.msra.mxu0 0
    %4929 = vmatprep.subr.bf16.mxu0 0
    %4930 = vmatpush1.bf16.msra.mxu0 0
    %4931 = vmatprep.subr.bf16.mxu0 0
    %4932 = vmatpush1.bf16.msra.mxu0 0
    %4933 = vmatprep.subr.bf16.mxu0 0
    %4934 = vmatpush1.bf16.msra.mxu0 0
    %4935 = vmatprep.mubr.bf16.mxu0 0
    %4936 = vmatmul.mubr.bf16.gmra.mrb[0].mxu0 %v30
    %v4937 = vpop.f32.mrb[0].mxu0
    %v4938 = vadd.f32 %v830, %v4937
    %v4939 = vpop.f32.mrb[0].mxu0
    %v4940 = vadd.f32 %v834, %v4939
    %v4941 = vpop.f32.mrb[0].mxu0
    %v4942 = vpop.f32.mrb[0].mxu0
    %4943 = vdwg.mxu0
    %4944 = vmatprep.subr.bf16.mxu0 %v2887
    %4945 = vmatpush1.bf16.msra.mxu0 %v2886
    %4946 = vmatprep.subr.bf16.mxu0 %v2962
    %4947 = vmatpush1.bf16.msra.mxu0 %v2961
    %4948 = vmatprep.subr.bf16.mxu0 %v3037
    %4949 = vmatpush1.bf16.msra.mxu0 %v3036
    %4950 = vmatprep.subr.bf16.mxu0 %v3112
    %4951 = vmatpush1.bf16.msra.mxu0 %v3111
    %4952 = vmatprep.subr.bf16.mxu0 %v3187
    %4953 = vmatpush1.bf16.msra.mxu0 %v3186
    %4954 = vmatprep.subr.bf16.mxu0 %v3262
    %4955 = vmatpush1.bf16.msra.mxu0 %v3261
    %4956 = vmatprep.subr.bf16.mxu0 %v3337
    %4957 = vmatpush1.bf16.msra.mxu0 %v3336
    %4958 = vmatprep.subr.bf16.mxu0 %v3412
    %4959 = vmatpush1.bf16.msra.mxu0 %v3411
    %4960 = vmatprep.subr.bf16.mxu0 0
    %4961 = vmatpush1.bf16.msra.mxu0 0
    %4962 = vmatprep.subr.bf16.mxu0 0
    %4963 = vmatpush1.bf16.msra.mxu0 0
    %4964 = vmatprep.subr.bf16.mxu0 0
    %4965 = vmatpush1.bf16.msra.mxu0 0
    %4966 = vmatprep.subr.bf16.mxu0 0
    %4967 = vmatpush1.bf16.msra.mxu0 0
    %4968 = vmatprep.subr.bf16.mxu0 0
    %4969 = vmatpush1.bf16.msra.mxu0 0
    %4970 = vmatprep.subr.bf16.mxu0 0
    %4971 = vmatpush1.bf16.msra.mxu0 0
    %4972 = vmatprep.subr.bf16.mxu0 0
    %4973 = vmatpush1.bf16.msra.mxu0 0
    %4974 = vmatprep.subr.bf16.mxu0 0
    %4975 = vmatpush1.bf16.msra.mxu0 0
    %4976 = vmatprep.mubr.bf16.mxu0 0
    %4977 = vmatmul.mubr.bf16.gmra.mrb[0].mxu0 %v30
    %v4978 = vpop.f32.mrb[0].mxu0
    %v4979 = vadd.f32 %v838, %v4978
    %v4980 = vpop.f32.mrb[0].mxu0
    %v4981 = vadd.f32 %v842, %v4980
    %v4982 = vpop.f32.mrb[0].mxu0
    %v4983 = vpop.f32.mrb[0].mxu0
    %4984 = vdwg.mxu0
    %4985 = vmatprep.subr.bf16.mxu0 %v2889
    %4986 = vmatpush1.bf16.msra.mxu0 %v2888
    %4987 = vmatprep.subr.bf16.mxu0 %v2964
    %4988 = vmatpush1.bf16.msra.mxu0 %v2963
    %4989 = vmatprep.subr.bf16.mxu0 %v3039
    %4990 = vmatpush1.bf16.msra.mxu0 %v3038
    %4991 = vmatprep.subr.bf16.mxu0 %v3114
    %4992 = vmatpush1.bf16.msra.mxu0 %v3113
    %4993 = vmatprep.subr.bf16.mxu0 %v3189
    %4994 = vmatpush1.bf16.msra.mxu0 %v3188
    %4995 = vmatprep.subr.bf16.mxu0 %v3264
    %4996 = vmatpush1.bf16.msra.mxu0 %v3263
    %4997 = vmatprep.subr.bf16.mxu0 %v3339
    %4998 = vmatpush1.bf16.msra.mxu0 %v3338
    %4999 = vmatprep.subr.bf16.mxu0 %v3414
    %5000 = vmatpush1.bf16.msra.mxu0 %v3413
    %5001 = vmatprep.subr.bf16.mxu0 0
    %5002 = vmatpush1.bf16.msra.mxu0 0
    %5003 = vmatprep.subr.bf16.mxu0 0
    %5004 = vmatpush1.bf16.msra.mxu0 0
    %5005 = vmatprep.subr.bf16.mxu0 0
    %5006 = vmatpush1.bf16.msra.mxu0 0
    %5007 = vmatprep.subr.bf16.mxu0 0
    %5008 = vmatpush1.bf16.msra.mxu0 0
    %5009 = vmatprep.subr.bf16.mxu0 0
    %5010 = vmatpush1.bf16.msra.mxu0 0
    %5011 = vmatprep.subr.bf16.mxu0 0
    %5012 = vmatpush1.bf16.msra.mxu0 0
    %5013 = vmatprep.subr.bf16.mxu0 0
    %5014 = vmatpush1.bf16.msra.mxu0 0
    %5015 = vmatprep.subr.bf16.mxu0 0
    %5016 = vmatpush1.bf16.msra.mxu0 0
    %5017 = vmatprep.mubr.bf16.mxu0 0
    %5018 = vmatmul.mubr.bf16.gmra.mrb[0].mxu0 %v30
    %v5019 = vpop.f32.mrb[0].mxu0
    %v5020 = vadd.f32 %v846, %v5019
    %v5021 = vpop.f32.mrb[0].mxu0
    %v5022 = vadd.f32 %v850, %v5021
    %v5023 = vpop.f32.mrb[0].mxu0
    %v5024 = vpop.f32.mrb[0].mxu0
    %5025 = vdwg.mxu0
    %5026 = vmatprep.subr.bf16.mxu0 %v2891
    %5027 = vmatpush1.bf16.msra.mxu0 %v2890
    %5028 = vmatprep.subr.bf16.mxu0 %v2966
    %5029 = vmatpush1.bf16.msra.mxu0 %v2965
    %5030 = vmatprep.subr.bf16.mxu0 %v3041
    %5031 = vmatpush1.bf16.msra.mxu0 %v3040
    %5032 = vmatprep.subr.bf16.mxu0 %v3116
    %5033 = vmatpush1.bf16.msra.mxu0 %v3115
    %5034 = vmatprep.subr.bf16.mxu0 %v3191
    %5035 = vmatpush1.bf16.msra.mxu0 %v3190
    %5036 = vmatprep.subr.bf16.mxu0 %v3266
    %5037 = vmatpush1.bf16.msra.mxu0 %v3265
    %5038 = vmatprep.subr.bf16.mxu0 %v3341
    %5039 = vmatpush1.bf16.msra.mxu0 %v3340
    %5040 = vmatprep.subr.bf16.mxu0 %v3416
    %5041 = vmatpush1.bf16.msra.mxu0 %v3415
    %5042 = vmatprep.subr.bf16.mxu0 0
    %5043 = vmatpush1.bf16.msra.mxu0 0
    %5044 = vmatprep.subr.bf16.mxu0 0
    %5045 = vmatpush1.bf16.msra.mxu0 0
    %5046 = vmatprep.subr.bf16.mxu0 0
    %5047 = vmatpush1.bf16.msra.mxu0 0
    %5048 = vmatprep.subr.bf16.mxu0 0
    %5049 = vmatpush1.bf16.msra.mxu0 0
    %5050 = vmatprep.subr.bf16.mxu0 0
    %5051 = vmatpush1.bf16.msra.mxu0 0
    %5052 = vmatprep.subr.bf16.mxu0 0
    %5053 = vmatpush1.bf16.msra.mxu0 0
    %5054 = vmatprep.subr.bf16.mxu0 0
    %5055 = vmatpush1.bf16.msra.mxu0 0
    %5056 = vmatprep.subr.bf16.mxu0 0
    %5057 = vmatpush1.bf16.msra.mxu0 0
    %5058 = vmatprep.mubr.bf16.mxu0 0
    %5059 = vmatmul.mubr.bf16.gmra.mrb[0].mxu0 %v30
    %v5060 = vpop.f32.mrb[0].mxu0
    %v5061 = vadd.f32 %v854, %v5060
    %v5062 = vpop.f32.mrb[0].mxu0
    %v5063 = vadd.f32 %v858, %v5062
    %v5064 = vpop.f32.mrb[0].mxu0
    %v5065 = vpop.f32.mrb[0].mxu0
    %5066 = vdwg.mxu0
    %5067 = vmatprep.subr.bf16.mxu0 %v2893
    %5068 = vmatpush1.bf16.msra.mxu0 %v2892
    %5069 = vmatprep.subr.bf16.mxu0 %v2968
    %5070 = vmatpush1.bf16.msra.mxu0 %v2967
    %5071 = vmatprep.subr.bf16.mxu0 %v3043
    %5072 = vmatpush1.bf16.msra.mxu0 %v3042
    %5073 = vmatprep.subr.bf16.mxu0 %v3118
    %5074 = vmatpush1.bf16.msra.mxu0 %v3117
    %5075 = vmatprep.subr.bf16.mxu0 %v3193
    %5076 = vmatpush1.bf16.msra.mxu0 %v3192
    %5077 = vmatprep.subr.bf16.mxu0 %v3268
    %5078 = vmatpush1.bf16.msra.mxu0 %v3267
    %5079 = vmatprep.subr.bf16.mxu0 %v3343
    %5080 = vmatpush1.bf16.msra.mxu0 %v3342
    %5081 = vmatprep.subr.bf16.mxu0 %v3418
    %5082 = vmatpush1.bf16.msra.mxu0 %v3417
    %5083 = vmatprep.subr.bf16.mxu0 0
    %5084 = vmatpush1.bf16.msra.mxu0 0
    %5085 = vmatprep.subr.bf16.mxu0 0
    %5086 = vmatpush1.bf16.msra.mxu0 0
    %5087 = vmatprep.subr.bf16.mxu0 0
    %5088 = vmatpush1.bf16.msra.mxu0 0
    %5089 = vmatprep.subr.bf16.mxu0 0
    %5090 = vmatpush1.bf16.msra.mxu0 0
    %5091 = vmatprep.subr.bf16.mxu0 0
    %5092 = vmatpush1.bf16.msra.mxu0 0
    %5093 = vmatprep.subr.bf16.mxu0 0
    %5094 = vmatpush1.bf16.msra.mxu0 0
    %5095 = vmatprep.subr.bf16.mxu0 0
    %5096 = vmatpush1.bf16.msra.mxu0 0
    %5097 = vmatprep.subr.bf16.mxu0 0
    %5098 = vmatpush1.bf16.msra.mxu0 0
    %5099 = vmatprep.mubr.bf16.mxu0 0
    %5100 = vmatmul.mubr.bf16.gmra.mrb[0].mxu0 %v30
    %v5101 = vpop.f32.mrb[0].mxu0
    %v5102 = vadd.f32 %v862, %v5101
    %v5103 = vpop.f32.mrb[0].mxu0
    %v5104 = vadd.f32 %v866, %v5103
    %v5105 = vpop.f32.mrb[0].mxu0
    %v5106 = vpop.f32.mrb[0].mxu0
    %5107 = vdwg.mxu0
    %5108 = vmatprep.subr.bf16.mxu0 %v2895
    %5109 = vmatpush1.bf16.msra.mxu0 %v2894
    %5110 = vmatprep.subr.bf16.mxu0 %v2970
    %5111 = vmatpush1.bf16.msra.mxu0 %v2969
    %5112 = vmatprep.subr.bf16.mxu0 %v3045
    %5113 = vmatpush1.bf16.msra.mxu0 %v3044
    %5114 = vmatprep.subr.bf16.mxu0 %v3120
    %5115 = vmatpush1.bf16.msra.mxu0 %v3119
    %5116 = vmatprep.subr.bf16.mxu0 %v3195
    %5117 = vmatpush1.bf16.msra.mxu0 %v3194
    %5118 = vmatprep.subr.bf16.mxu0 %v3270
    %5119 = vmatpush1.bf16.msra.mxu0 %v3269
    %5120 = vmatprep.subr.bf16.mxu0 %v3345
    %5121 = vmatpush1.bf16.msra.mxu0 %v3344
    %5122 = vmatprep.subr.bf16.mxu0 %v3420
    %5123 = vmatpush1.bf16.msra.mxu0 %v3419
    %5124 = vmatprep.subr.bf16.mxu0 0
    %5125 = vmatpush1.bf16.msra.mxu0 0
    %5126 = vmatprep.subr.bf16.mxu0 0
    %5127 = vmatpush1.bf16.msra.mxu0 0
    %5128 = vmatprep.subr.bf16.mxu0 0
    %5129 = vmatpush1.bf16.msra.mxu0 0
    %5130 = vmatprep.subr.bf16.mxu0 0
    %5131 = vmatpush1.bf16.msra.mxu0 0
    %5132 = vmatprep.subr.bf16.mxu0 0
    %5133 = vmatpush1.bf16.msra.mxu0 0
    %5134 = vmatprep.subr.bf16.mxu0 0
    %5135 = vmatpush1.bf16.msra.mxu0 0
    %5136 = vmatprep.subr.bf16.mxu0 0
    %5137 = vmatpush1.bf16.msra.mxu0 0
    %5138 = vmatprep.subr.bf16.mxu0 0
    %5139 = vmatpush1.bf16.msra.mxu0 0
    %5140 = vmatprep.mubr.bf16.mxu0 0
    %5141 = vmatmul.mubr.bf16.gmra.mrb[0].mxu0 %v30
    %v5142 = vpop.f32.mrb[0].mxu0
    %v5143 = vadd.f32 %v870, %v5142
    %v5144 = vpop.f32.mrb[0].mxu0
    %v5145 = vadd.f32 %v874, %v5144
    %v5146 = vpop.f32.mrb[0].mxu0
    %v5147 = vpop.f32.mrb[0].mxu0
    %5148 = vdwg.mxu0
    %5149 = vmatprep.subr.bf16.mxu0 %v2897
    %5150 = vmatpush1.bf16.msra.mxu0 %v2896
    %5151 = vmatprep.subr.bf16.mxu0 %v2972
    %5152 = vmatpush1.bf16.msra.mxu0 %v2971
    %5153 = vmatprep.subr.bf16.mxu0 %v3047
    %5154 = vmatpush1.bf16.msra.mxu0 %v3046
    %5155 = vmatprep.subr.bf16.mxu0 %v3122
    %5156 = vmatpush1.bf16.msra.mxu0 %v3121
    %5157 = vmatprep.subr.bf16.mxu0 %v3197
    %5158 = vmatpush1.bf16.msra.mxu0 %v3196
    %5159 = vmatprep.subr.bf16.mxu0 %v3272
    %5160 = vmatpush1.bf16.msra.mxu0 %v3271
    %5161 = vmatprep.subr.bf16.mxu0 %v3347
    %5162 = vmatpush1.bf16.msra.mxu0 %v3346
    %5163 = vmatprep.subr.bf16.mxu0 %v3422
    %5164 = vmatpush1.bf16.msra.mxu0 %v3421
    %5165 = vmatprep.subr.bf16.mxu0 0
    %5166 = vmatpush1.bf16.msra.mxu0 0
    %5167 = vmatprep.subr.bf16.mxu0 0
    %5168 = vmatpush1.bf16.msra.mxu0 0
    %5169 = vmatprep.subr.bf16.mxu0 0
    %5170 = vmatpush1.bf16.msra.mxu0 0
    %5171 = vmatprep.subr.bf16.mxu0 0
    %5172 = vmatpush1.bf16.msra.mxu0 0
    %5173 = vmatprep.subr.bf16.mxu0 0
    %5174 = vmatpush1.bf16.msra.mxu0 0
    %5175 = vmatprep.subr.bf16.mxu0 0
    %5176 = vmatpush1.bf16.msra.mxu0 0
    %5177 = vmatprep.subr.bf16.mxu0 0
    %5178 = vmatpush1.bf16.msra.mxu0 0
    %5179 = vmatprep.subr.bf16.mxu0 0
    %5180 = vmatpush1.bf16.msra.mxu0 0
    %5181 = vmatprep.mubr.bf16.mxu0 0
    %5182 = vmatmul.mubr.bf16.gmra.mrb[0].mxu0 %v30
    %v5183 = vpop.f32.mrb[0].mxu0
    %v5184 = vadd.f32 %v878, %v5183
    %v5185 = vpop.f32.mrb[0].mxu0
    %v5186 = vadd.f32 %v882, %v5185
    %v5187 = vpop.f32.mrb[0].mxu0
    %v5188 = vpop.f32.mrb[0].mxu0
    %5189 = vdwg.mxu0
    %5190 = vmatprep.subr.bf16.mxu0 %v2899
    %5191 = vmatpush1.bf16.msra.mxu0 %v2898
    %5192 = vmatprep.subr.bf16.mxu0 %v2974
    %5193 = vmatpush1.bf16.msra.mxu0 %v2973
    %5194 = vmatprep.subr.bf16.mxu0 %v3049
    %5195 = vmatpush1.bf16.msra.mxu0 %v3048
    %5196 = vmatprep.subr.bf16.mxu0 %v3124
    %5197 = vmatpush1.bf16.msra.mxu0 %v3123
    %5198 = vmatprep.subr.bf16.mxu0 %v3199
    %5199 = vmatpush1.bf16.msra.mxu0 %v3198
    %5200 = vmatprep.subr.bf16.mxu0 %v3274
    %5201 = vmatpush1.bf16.msra.mxu0 %v3273
    %5202 = vmatprep.subr.bf16.mxu0 %v3349
    %5203 = vmatpush1.bf16.msra.mxu0 %v3348
    %5204 = vmatprep.subr.bf16.mxu0 %v3424
    %5205 = vmatpush1.bf16.msra.mxu0 %v3423
    %5206 = vmatprep.subr.bf16.mxu0 0
    %5207 = vmatpush1.bf16.msra.mxu0 0
    %5208 = vmatprep.subr.bf16.mxu0 0
    %5209 = vmatpush1.bf16.msra.mxu0 0
    %5210 = vmatprep.subr.bf16.mxu0 0
    %5211 = vmatpush1.bf16.msra.mxu0 0
    %5212 = vmatprep.subr.bf16.mxu0 0
    %5213 = vmatpush1.bf16.msra.mxu0 0
    %5214 = vmatprep.subr.bf16.mxu0 0
    %5215 = vmatpush1.bf16.msra.mxu0 0
    %5216 = vmatprep.subr.bf16.mxu0 0
    %5217 = vmatpush1.bf16.msra.mxu0 0
    %5218 = vmatprep.subr.bf16.mxu0 0
    %5219 = vmatpush1.bf16.msra.mxu0 0
    %5220 = vmatprep.subr.bf16.mxu0 0
    %5221 = vmatpush1.bf16.msra.mxu0 0
    %5222 = vmatprep.mubr.bf16.mxu0 0
    %5223 = vmatmul.mubr.bf16.gmra.mrb[0].mxu0 %v30
    %v5224 = vpop.f32.mrb[0].mxu0
    %v5225 = vadd.f32 %v886, %v5224
    %v5226 = vpop.f32.mrb[0].mxu0
    %v5227 = vadd.f32 %v890, %v5226
    %v5228 = vpop.f32.mrb[0].mxu0
    %v5229 = vpop.f32.mrb[0].mxu0
    %5230 = vdwg.mxu0
    %5231 = vmatprep.subr.bf16.mxu0 %v2901
    %5232 = vmatpush1.bf16.msra.mxu0 %v2900
    %5233 = vmatprep.subr.bf16.mxu0 %v2976
    %5234 = vmatpush1.bf16.msra.mxu0 %v2975
    %5235 = vmatprep.subr.bf16.mxu0 %v3051
    %5236 = vmatpush1.bf16.msra.mxu0 %v3050
    %5237 = vmatprep.subr.bf16.mxu0 %v3126
    %5238 = vmatpush1.bf16.msra.mxu0 %v3125
    %5239 = vmatprep.subr.bf16.mxu0 %v3201
    %5240 = vmatpush1.bf16.msra.mxu0 %v3200
    %5241 = vmatprep.subr.bf16.mxu0 %v3276
    %5242 = vmatpush1.bf16.msra.mxu0 %v3275
    %5243 = vmatprep.subr.bf16.mxu0 %v3351
    %5244 = vmatpush1.bf16.msra.mxu0 %v3350
    %5245 = vmatprep.subr.bf16.mxu0 %v3426
    %5246 = vmatpush1.bf16.msra.mxu0 %v3425
    %5247 = vmatprep.subr.bf16.mxu0 0
    %5248 = vmatpush1.bf16.msra.mxu0 0
    %5249 = vmatprep.subr.bf16.mxu0 0
    %5250 = vmatpush1.bf16.msra.mxu0 0
    %5251 = vmatprep.subr.bf16.mxu0 0
    %5252 = vmatpush1.bf16.msra.mxu0 0
    %5253 = vmatprep.subr.bf16.mxu0 0
    %5254 = vmatpush1.bf16.msra.mxu0 0
    %5255 = vmatprep.subr.bf16.mxu0 0
    %5256 = vmatpush1.bf16.msra.mxu0 0
    %5257 = vmatprep.subr.bf16.mxu0 0
    %5258 = vmatpush1.bf16.msra.mxu0 0
    %5259 = vmatprep.subr.bf16.mxu0 0
    %5260 = vmatpush1.bf16.msra.mxu0 0
    %5261 = vmatprep.subr.bf16.mxu0 0
    %5262 = vmatpush1.bf16.msra.mxu0 0
    %5263 = vmatprep.mubr.bf16.mxu0 0
    %5264 = vmatmul.mubr.bf16.gmra.mrb[0].mxu0 %v30
    %v5265 = vpop.f32.mrb[0].mxu0
    %v5266 = vadd.f32 %v894, %v5265
    %v5267 = vpop.f32.mrb[0].mxu0
    %v5268 = vadd.f32 %v898, %v5267
    %v5269 = vpop.f32.mrb[0].mxu0
    %v5270 = vpop.f32.mrb[0].mxu0
    %5271 = vdwg.mxu0
    %5272 = vmatprep.subr.bf16.mxu0 %v2903
    %5273 = vmatpush1.bf16.msra.mxu0 %v2902
    %5274 = vmatprep.subr.bf16.mxu0 %v2978
    %5275 = vmatpush1.bf16.msra.mxu0 %v2977
    %5276 = vmatprep.subr.bf16.mxu0 %v3053
    %5277 = vmatpush1.bf16.msra.mxu0 %v3052
    %5278 = vmatprep.subr.bf16.mxu0 %v3128
    %5279 = vmatpush1.bf16.msra.mxu0 %v3127
    %5280 = vmatprep.subr.bf16.mxu0 %v3203
    %5281 = vmatpush1.bf16.msra.mxu0 %v3202
    %5282 = vmatprep.subr.bf16.mxu0 %v3278
    %5283 = vmatpush1.bf16.msra.mxu0 %v3277
    %5284 = vmatprep.subr.bf16.mxu0 %v3353
    %5285 = vmatpush1.bf16.msra.mxu0 %v3352
    %5286 = vmatprep.subr.bf16.mxu0 %v3428
    %5287 = vmatpush1.bf16.msra.mxu0 %v3427
    %5288 = vmatprep.subr.bf16.mxu0 0
    %5289 = vmatpush1.bf16.msra.mxu0 0
    %5290 = vmatprep.subr.bf16.mxu0 0
    %5291 = vmatpush1.bf16.msra.mxu0 0
    %5292 = vmatprep.subr.bf16.mxu0 0
    %5293 = vmatpush1.bf16.msra.mxu0 0
    %5294 = vmatprep.subr.bf16.mxu0 0
    %5295 = vmatpush1.bf16.msra.mxu0 0
    %5296 = vmatprep.subr.bf16.mxu0 0
    %5297 = vmatpush1.bf16.msra.mxu0 0
    %5298 = vmatprep.subr.bf16.mxu0 0
    %5299 = vmatpush1.bf16.msra.mxu0 0
    %5300 = vmatprep.subr.bf16.mxu0 0
    %5301 = vmatpush1.bf16.msra.mxu0 0
    %5302 = vmatprep.subr.bf16.mxu0 0
    %5303 = vmatpush1.bf16.msra.mxu0 0
    %5304 = vmatprep.mubr.bf16.mxu0 0
    %5305 = vmatmul.mubr.bf16.gmra.mrb[0].mxu0 %v30
    %v5306 = vpop.f32.mrb[0].mxu0
    %v5307 = vadd.f32 %v902, %v5306
    %v5308 = vpop.f32.mrb[0].mxu0
    %v5309 = vadd.f32 %v906, %v5308
    %v5310 = vpop.f32.mrb[0].mxu0
    %v5311 = vpop.f32.mrb[0].mxu0
    %5312 = vdwg.mxu0
    %5313 = vmatprep.subr.bf16.mxu0 %v2905
    %5314 = vmatpush1.bf16.msra.mxu0 %v2904
    %5315 = vmatprep.subr.bf16.mxu0 %v2980
    %5316 = vmatpush1.bf16.msra.mxu0 %v2979
    %5317 = vmatprep.subr.bf16.mxu0 %v3055
    %5318 = vmatpush1.bf16.msra.mxu0 %v3054
    %5319 = vmatprep.subr.bf16.mxu0 %v3130
    %5320 = vmatpush1.bf16.msra.mxu0 %v3129
    %5321 = vmatprep.subr.bf16.mxu0 %v3205
    %5322 = vmatpush1.bf16.msra.mxu0 %v3204
    %5323 = vmatprep.subr.bf16.mxu0 %v3280
    %5324 = vmatpush1.bf16.msra.mxu0 %v3279
    %5325 = vmatprep.subr.bf16.mxu0 %v3355
    %5326 = vmatpush1.bf16.msra.mxu0 %v3354
    %5327 = vmatprep.subr.bf16.mxu0 %v3430
    %5328 = vmatpush1.bf16.msra.mxu0 %v3429
    %5329 = vmatprep.subr.bf16.mxu0 0
    %5330 = vmatpush1.bf16.msra.mxu0 0
    %5331 = vmatprep.subr.bf16.mxu0 0
    %5332 = vmatpush1.bf16.msra.mxu0 0
    %5333 = vmatprep.subr.bf16.mxu0 0
    %5334 = vmatpush1.bf16.msra.mxu0 0
    %5335 = vmatprep.subr.bf16.mxu0 0
    %5336 = vmatpush1.bf16.msra.mxu0 0
    %5337 = vmatprep.subr.bf16.mxu0 0
    %5338 = vmatpush1.bf16.msra.mxu0 0
    %5339 = vmatprep.subr.bf16.mxu0 0
    %5340 = vmatpush1.bf16.msra.mxu0 0
    %5341 = vmatprep.subr.bf16.mxu0 0
    %5342 = vmatpush1.bf16.msra.mxu0 0
    %5343 = vmatprep.subr.bf16.mxu0 0
    %5344 = vmatpush1.bf16.msra.mxu0 0
    %5345 = vmatprep.mubr.bf16.mxu0 0
    %5346 = vmatmul.mubr.bf16.gmra.mrb[0].mxu0 %v30
    %v5347 = vpop.f32.mrb[0].mxu0
    %v5348 = vadd.f32 %v910, %v5347
    %v5349 = vpop.f32.mrb[0].mxu0
    %v5350 = vadd.f32 %v914, %v5349
    %v5351 = vpop.f32.mrb[0].mxu0
    %v5352 = vpop.f32.mrb[0].mxu0
    %5353 = vdwg.mxu0
    %5354 = vmatprep.subr.bf16.mxu0 %v2907
    %5355 = vmatpush1.bf16.msra.mxu0 %v2906
    %5356 = vmatprep.subr.bf16.mxu0 %v2982
    %5357 = vmatpush1.bf16.msra.mxu0 %v2981
    %5358 = vmatprep.subr.bf16.mxu0 %v3057
    %5359 = vmatpush1.bf16.msra.mxu0 %v3056
    %5360 = vmatprep.subr.bf16.mxu0 %v3132
    %5361 = vmatpush1.bf16.msra.mxu0 %v3131
    %5362 = vmatprep.subr.bf16.mxu0 %v3207
    %5363 = vmatpush1.bf16.msra.mxu0 %v3206
    %5364 = vmatprep.subr.bf16.mxu0 %v3282
    %5365 = vmatpush1.bf16.msra.mxu0 %v3281
    %5366 = vmatprep.subr.bf16.mxu0 %v3357
    %5367 = vmatpush1.bf16.msra.mxu0 %v3356
    %5368 = vmatprep.subr.bf16.mxu0 %v3432
    %5369 = vmatpush1.bf16.msra.mxu0 %v3431
    %5370 = vmatprep.subr.bf16.mxu0 0
    %5371 = vmatpush1.bf16.msra.mxu0 0
    %5372 = vmatprep.subr.bf16.mxu0 0
    %5373 = vmatpush1.bf16.msra.mxu0 0
    %5374 = vmatprep.subr.bf16.mxu0 0
    %5375 = vmatpush1.bf16.msra.mxu0 0
    %5376 = vmatprep.subr.bf16.mxu0 0
    %5377 = vmatpush1.bf16.msra.mxu0 0
    %5378 = vmatprep.subr.bf16.mxu0 0
    %5379 = vmatpush1.bf16.msra.mxu0 0
    %5380 = vmatprep.subr.bf16.mxu0 0
    %5381 = vmatpush1.bf16.msra.mxu0 0
    %5382 = vmatprep.subr.bf16.mxu0 0
    %5383 = vmatpush1.bf16.msra.mxu0 0
    %5384 = vmatprep.subr.bf16.mxu0 0
    %5385 = vmatpush1.bf16.msra.mxu0 0
    %5386 = vmatprep.mubr.bf16.mxu0 0
    %5387 = vmatmul.mubr.bf16.gmra.mrb[0].mxu0 %v30
    %v5388 = vpop.f32.mrb[0].mxu0
    %v5389 = vadd.f32 %v918, %v5388
    %v5390 = vpop.f32.mrb[0].mxu0
    %v5391 = vadd.f32 %v922, %v5390
    %v5392 = vpop.f32.mrb[0].mxu0
    %v5393 = vpop.f32.mrb[0].mxu0
    %5394 = vdwg.mxu0
    %5395 = vmatprep.subr.bf16.mxu0 %v2909
    %5396 = vmatpush1.bf16.msra.mxu0 %v2908
    %5397 = vmatprep.subr.bf16.mxu0 %v2984
    %5398 = vmatpush1.bf16.msra.mxu0 %v2983
    %5399 = vmatprep.subr.bf16.mxu0 %v3059
    %5400 = vmatpush1.bf16.msra.mxu0 %v3058
    %5401 = vmatprep.subr.bf16.mxu0 %v3134
    %5402 = vmatpush1.bf16.msra.mxu0 %v3133
    %5403 = vmatprep.subr.bf16.mxu0 %v3209
    %5404 = vmatpush1.bf16.msra.mxu0 %v3208
    %5405 = vmatprep.subr.bf16.mxu0 %v3284
    %5406 = vmatpush1.bf16.msra.mxu0 %v3283
    %5407 = vmatprep.subr.bf16.mxu0 %v3359
    %5408 = vmatpush1.bf16.msra.mxu0 %v3358
    %5409 = vmatprep.subr.bf16.mxu0 %v3434
    %5410 = vmatpush1.bf16.msra.mxu0 %v3433
    %5411 = vmatprep.subr.bf16.mxu0 0
    %5412 = vmatpush1.bf16.msra.mxu0 0
    %5413 = vmatprep.subr.bf16.mxu0 0
    %5414 = vmatpush1.bf16.msra.mxu0 0
    %5415 = vmatprep.subr.bf16.mxu0 0
    %5416 = vmatpush1.bf16.msra.mxu0 0
    %5417 = vmatprep.subr.bf16.mxu0 0
    %5418 = vmatpush1.bf16.msra.mxu0 0
    %5419 = vmatprep.subr.bf16.mxu0 0
    %5420 = vmatpush1.bf16.msra.mxu0 0
    %5421 = vmatprep.subr.bf16.mxu0 0
    %5422 = vmatpush1.bf16.msra.mxu0 0
    %5423 = vmatprep.subr.bf16.mxu0 0
    %5424 = vmatpush1.bf16.msra.mxu0 0
    %5425 = vmatprep.subr.bf16.mxu0 0
    %5426 = vmatpush1.bf16.msra.mxu0 0
    %5427 = vmatprep.mubr.bf16.mxu0 0
    %5428 = vmatmul.mubr.bf16.gmra.mrb[0].mxu0 %v30
    %v5429 = vpop.f32.mrb[0].mxu0
    %v5430 = vadd.f32 %v926, %v5429
    %v5431 = vpop.f32.mrb[0].mxu0
    %v5432 = vadd.f32 %v930, %v5431
    %v5433 = vpop.f32.mrb[0].mxu0
    %v5434 = vpop.f32.mrb[0].mxu0
    %5435 = vdwg.mxu0
    %5436 = vmatprep.subr.bf16.mxu0 %v2911
    %5437 = vmatpush1.bf16.msra.mxu0 %v2910
    %5438 = vmatprep.subr.bf16.mxu0 %v2986
    %5439 = vmatpush1.bf16.msra.mxu0 %v2985
    %5440 = vmatprep.subr.bf16.mxu0 %v3061
    %5441 = vmatpush1.bf16.msra.mxu0 %v3060
    %5442 = vmatprep.subr.bf16.mxu0 %v3136
    %5443 = vmatpush1.bf16.msra.mxu0 %v3135
    %5444 = vmatprep.subr.bf16.mxu0 %v3211
    %5445 = vmatpush1.bf16.msra.mxu0 %v3210
    %5446 = vmatprep.subr.bf16.mxu0 %v3286
    %5447 = vmatpush1.bf16.msra.mxu0 %v3285
    %5448 = vmatprep.subr.bf16.mxu0 %v3361
    %5449 = vmatpush1.bf16.msra.mxu0 %v3360
    %5450 = vmatprep.subr.bf16.mxu0 %v3436
    %5451 = vmatpush1.bf16.msra.mxu0 %v3435
    %5452 = vmatprep.subr.bf16.mxu0 0
    %5453 = vmatpush1.bf16.msra.mxu0 0
    %5454 = vmatprep.subr.bf16.mxu0 0
    %5455 = vmatpush1.bf16.msra.mxu0 0
    %5456 = vmatprep.subr.bf16.mxu0 0
    %5457 = vmatpush1.bf16.msra.mxu0 0
    %5458 = vmatprep.subr.bf16.mxu0 0
    %5459 = vmatpush1.bf16.msra.mxu0 0
    %5460 = vmatprep.subr.bf16.mxu0 0
    %5461 = vmatpush1.bf16.msra.mxu0 0
    %5462 = vmatprep.subr.bf16.mxu0 0
    %5463 = vmatpush1.bf16.msra.mxu0 0
    %5464 = vmatprep.subr.bf16.mxu0 0
    %5465 = vmatpush1.bf16.msra.mxu0 0
    %5466 = vmatprep.subr.bf16.mxu0 0
    %5467 = vmatpush1.bf16.msra.mxu0 0
    %5468 = vmatprep.mubr.bf16.mxu0 0
    %5469 = vmatmul.mubr.bf16.gmra.mrb[0].mxu0 %v30
    %v5470 = vpop.f32.mrb[0].mxu0
    %v5471 = vadd.f32 %v934, %v5470
    %v5472 = vpop.f32.mrb[0].mxu0
    %v5473 = vadd.f32 %v938, %v5472
    %v5474 = vpop.f32.mrb[0].mxu0
    %v5475 = vpop.f32.mrb[0].mxu0
    %5476 = vdwg.mxu0
    %5477 = vmatprep.subr.bf16.mxu0 %v2913
    %5478 = vmatpush1.bf16.msra.mxu0 %v2912
    %5479 = vmatprep.subr.bf16.mxu0 %v2988
    %5480 = vmatpush1.bf16.msra.mxu0 %v2987
    %5481 = vmatprep.subr.bf16.mxu0 %v3063
    %5482 = vmatpush1.bf16.msra.mxu0 %v3062
    %5483 = vmatprep.subr.bf16.mxu0 %v3138
    %5484 = vmatpush1.bf16.msra.mxu0 %v3137
    %5485 = vmatprep.subr.bf16.mxu0 %v3213
    %5486 = vmatpush1.bf16.msra.mxu0 %v3212
    %5487 = vmatprep.subr.bf16.mxu0 %v3288
    %5488 = vmatpush1.bf16.msra.mxu0 %v3287
    %5489 = vmatprep.subr.bf16.mxu0 %v3363
    %5490 = vmatpush1.bf16.msra.mxu0 %v3362
    %5491 = vmatprep.subr.bf16.mxu0 %v3438
    %5492 = vmatpush1.bf16.msra.mxu0 %v3437
    %5493 = vmatprep.subr.bf16.mxu0 0
    %5494 = vmatpush1.bf16.msra.mxu0 0
    %5495 = vmatprep.subr.bf16.mxu0 0
    %5496 = vmatpush1.bf16.msra.mxu0 0
    %5497 = vmatprep.subr.bf16.mxu0 0
    %5498 = vmatpush1.bf16.msra.mxu0 0
    %5499 = vmatprep.subr.bf16.mxu0 0
    %5500 = vmatpush1.bf16.msra.mxu0 0
    %5501 = vmatprep.subr.bf16.mxu0 0
    %5502 = vmatpush1.bf16.msra.mxu0 0
    %5503 = vmatprep.subr.bf16.mxu0 0
    %5504 = vmatpush1.bf16.msra.mxu0 0
    %5505 = vmatprep.subr.bf16.mxu0 0
    %5506 = vmatpush1.bf16.msra.mxu0 0
    %5507 = vmatprep.subr.bf16.mxu0 0
    %5508 = vmatpush1.bf16.msra.mxu0 0
    %5509 = vmatprep.mubr.bf16.mxu0 0
    %5510 = vmatmul.mubr.bf16.gmra.mrb[0].mxu0 %v30
    %v5511 = vpop.f32.mrb[0].mxu0
    %v5512 = vadd.f32 %v942, %v5511
    %v5513 = vpop.f32.mrb[0].mxu0
    %v5514 = vadd.f32 %v946, %v5513
    %v5515 = vpop.f32.mrb[0].mxu0
    %v5516 = vpop.f32.mrb[0].mxu0
    %5517 = vdwg.mxu0
    %5518 = vmatprep.subr.bf16.mxu0 %v2915
    %5519 = vmatpush1.bf16.msra.mxu0 %v2914
    %5520 = vmatprep.subr.bf16.mxu0 %v2990
    %5521 = vmatpush1.bf16.msra.mxu0 %v2989
    %5522 = vmatprep.subr.bf16.mxu0 %v3065
    %5523 = vmatpush1.bf16.msra.mxu0 %v3064
    %5524 = vmatprep.subr.bf16.mxu0 %v3140
    %5525 = vmatpush1.bf16.msra.mxu0 %v3139
    %5526 = vmatprep.subr.bf16.mxu0 %v3215
    %5527 = vmatpush1.bf16.msra.mxu0 %v3214
    %5528 = vmatprep.subr.bf16.mxu0 %v3290
    %5529 = vmatpush1.bf16.msra.mxu0 %v3289
    %5530 = vmatprep.subr.bf16.mxu0 %v3365
    %5531 = vmatpush1.bf16.msra.mxu0 %v3364
    %5532 = vmatprep.subr.bf16.mxu0 %v3440
    %5533 = vmatpush1.bf16.msra.mxu0 %v3439
    %5534 = vmatprep.subr.bf16.mxu0 0
    %5535 = vmatpush1.bf16.msra.mxu0 0
    %5536 = vmatprep.subr.bf16.mxu0 0
    %5537 = vmatpush1.bf16.msra.mxu0 0
    %5538 = vmatprep.subr.bf16.mxu0 0
    %5539 = vmatpush1.bf16.msra.mxu0 0
    %5540 = vmatprep.subr.bf16.mxu0 0
    %5541 = vmatpush1.bf16.msra.mxu0 0
    %5542 = vmatprep.subr.bf16.mxu0 0
    %5543 = vmatpush1.bf16.msra.mxu0 0
    %5544 = vmatprep.subr.bf16.mxu0 0
    %5545 = vmatpush1.bf16.msra.mxu0 0
    %5546 = vmatprep.subr.bf16.mxu0 0
    %5547 = vmatpush1.bf16.msra.mxu0 0
    %5548 = vmatprep.subr.bf16.mxu0 0
    %5549 = vmatpush1.bf16.msra.mxu0 0
    %5550 = vmatprep.mubr.bf16.mxu0 0
    %5551 = vmatmul.mubr.bf16.gmra.mrb[0].mxu0 %v30
    %v5552 = vpop.f32.mrb[0].mxu0
    %v5553 = vadd.f32 %v950, %v5552
    %v5554 = vpop.f32.mrb[0].mxu0
    %v5555 = vadd.f32 %v954, %v5554
    %v5556 = vpop.f32.mrb[0].mxu0
    %v5557 = vpop.f32.mrb[0].mxu0
    %5558 = vdwg.mxu0
    %5559 = vmatprep.subr.bf16.mxu0 0
    %5560 = vmatpush1.bf16.msra.mxu0 %v2916
    %5561 = vmatprep.subr.bf16.mxu0 0
    %5562 = vmatpush1.bf16.msra.mxu0 %v2991
    %5563 = vmatprep.subr.bf16.mxu0 0
    %5564 = vmatpush1.bf16.msra.mxu0 %v3066
    %5565 = vmatprep.subr.bf16.mxu0 0
    %5566 = vmatpush1.bf16.msra.mxu0 %v3141
    %5567 = vmatprep.subr.bf16.mxu0 0
    %5568 = vmatpush1.bf16.msra.mxu0 %v3216
    %5569 = vmatprep.subr.bf16.mxu0 0
    %5570 = vmatpush1.bf16.msra.mxu0 %v3291
    %5571 = vmatprep.subr.bf16.mxu0 0
    %5572 = vmatpush1.bf16.msra.mxu0 %v3366
    %5573 = vmatprep.subr.bf16.mxu0 0
    %5574 = vmatpush1.bf16.msra.mxu0 %v3441
    %5575 = vmatprep.subr.bf16.mxu0 0
    %5576 = vmatpush1.bf16.msra.mxu0 0
    %5577 = vmatprep.subr.bf16.mxu0 0
    %5578 = vmatpush1.bf16.msra.mxu0 0
    %5579 = vmatprep.subr.bf16.mxu0 0
    %5580 = vmatpush1.bf16.msra.mxu0 0
    %5581 = vmatprep.subr.bf16.mxu0 0
    %5582 = vmatpush1.bf16.msra.mxu0 0
    %5583 = vmatprep.subr.bf16.mxu0 0
    %5584 = vmatpush1.bf16.msra.mxu0 0
    %5585 = vmatprep.subr.bf16.mxu0 0
    %5586 = vmatpush1.bf16.msra.mxu0 0
    %5587 = vmatprep.subr.bf16.mxu0 0
    %5588 = vmatpush1.bf16.msra.mxu0 0
    %5589 = vmatprep.subr.bf16.mxu0 0
    %5590 = vmatpush1.bf16.msra.mxu0 0
    %5591 = vmatprep.mubr.bf16.mxu0 0
    %5592 = vmatmul.mubr.bf16.gmra.mrb[0].mxu0 %v30
    %v5593 = vpop.f32.mrb[0].mxu0
    %v5594 = vadd.f32 %v958, %v5593
    %v5595 = vpop.f32.mrb[0].mxu0
    %v5596 = vpop.f32.mrb[0].mxu0
    %v5597 = vpop.f32.mrb[0].mxu0
    %5598 = vdwg.mxu0
    %5599 = vst [vmem:[%s3] sm:$0xff] %v4077
    %5600 = vst [vmem:[%s3 + $0x8] sm:$0xff] %v4079
    %5601 = vst [vmem:[%s3 + $0x10] sm:$0xff] %v4118
    %5602 = vst [vmem:[%s3 + $0x18] sm:$0xff] %v4120
    %5603 = vst [vmem:[%s3 + $0x20] sm:$0xff] %v4159
    %5604 = vst [vmem:[%s3 + $0x28] sm:$0xff] %v4161
    %5605 = vst [vmem:[%s3 + $0x30] sm:$0xff] %v4200
    %5606 = vst [vmem:[%s3 + $0x38] sm:$0xff] %v4202
    %5607 = vst [vmem:[%s3 + $0x40] sm:$0xff] %v4241
    %5608 = vst [vmem:[%s3 + $0x48] sm:$0xff] %v4243
    %5609 = vst [vmem:[%s3 + $0x50] sm:$0xff] %v4282
    %5610 = vst [vmem:[%s3 + $0x58] sm:$0xff] %v4284
    %5611 = vst [vmem:[%s3 + $0x60] sm:$0xff] %v4323
    %5612 = vst [vmem:[%s3 + $0x68] sm:$0xff] %v4325
    %5613 = vst [vmem:[%s3 + $0x70] sm:$0xff] %v4364
    %5614 = vst [vmem:[%s3 + $0x78] sm:$0xff] %v4366
    %5615 = vst [vmem:[%s3 + $0x80] sm:$0xff] %v4405
    %5616 = vst [vmem:[%s3 + $0x88] sm:$0xff] %v4407
    %5617 = vst [vmem:[%s3 + $0x90] sm:$0xff] %v4446
    %5618 = vst [vmem:[%s3 + $0x98] sm:$0xff] %v4448
    %5619 = vst [vmem:[%s3 + $0xa0] sm:$0xff] %v4487
    %5620 = vst [vmem:[%s3 + $0xa8] sm:$0xff] %v4489
    %5621 = vst [vmem:[%s3 + $0xb0] sm:$0xff] %v4528
    %5622 = vst [vmem:[%s3 + $0xb8] sm:$0xff] %v4530
    %5623 = vst [vmem:[%s3 + $0xc0] sm:$0xff] %v4569
    %5624 = vst [vmem:[%s3 + $0xc8] sm:$0xff] %v4571
    %5625 = vst [vmem:[%s3 + $0xd0] sm:$0xff] %v4610
    %5626 = vst [vmem:[%s3 + $0xd8] sm:$0xff] %v4612
    %5627 = vst [vmem:[%s3 + $0xe0] sm:$0xff] %v4651
    %5628 = vst [vmem:[%s3 + $0xe8] sm:$0xff] %v4653
    %5629 = vst [vmem:[%s3 + $0xf0] sm:$0xff] %v4692
    %5630 = vst [vmem:[%s3 + $0xf8] sm:$0xff] %v4694
    %5631 = vst [vmem:[%s3 + $0x100] sm:$0xff] %v4733
    %5632 = vst [vmem:[%s3 + $0x108] sm:$0xff] %v4735
    %5633 = vst [vmem:[%s3 + $0x110] sm:$0xff] %v4774
    %5634 = vst [vmem:[%s3 + $0x118] sm:$0xff] %v4776
    %5635 = vst [vmem:[%s3 + $0x120] sm:$0xff] %v4815
    %5636 = vst [vmem:[%s3 + $0x128] sm:$0xff] %v4817
    %5637 = vst [vmem:[%s3 + $0x130] sm:$0xff] %v4856
    %5638 = vst [vmem:[%s3 + $0x138] sm:$0xff] %v4858
    %5639 = vst [vmem:[%s3 + $0x140] sm:$0xff] %v4897
    %5640 = vst [vmem:[%s3 + $0x148] sm:$0xff] %v4899
    %5641 = vst [vmem:[%s3 + $0x150] sm:$0xff] %v4938
    %5642 = vst [vmem:[%s3 + $0x158] sm:$0xff] %v4940
    %5643 = vst [vmem:[%s3 + $0x160] sm:$0xff] %v4979
    %5644 = vst [vmem:[%s3 + $0x168] sm:$0xff] %v4981
    %5645 = vst [vmem:[%s3 + $0x170] sm:$0xff] %v5020
    %5646 = vst [vmem:[%s3 + $0x178] sm:$0xff] %v5022
    %5647 = vst [vmem:[%s3 + $0x180] sm:$0xff] %v5061
    %5648 = vst [vmem:[%s3 + $0x188] sm:$0xff] %v5063
    %5649 = vst [vmem:[%s3 + $0x190] sm:$0xff] %v5102
    %5650 = vst [vmem:[%s3 + $0x198] sm:$0xff] %v5104
    %5651 = vst [vmem:[%s3 + $0x1a0] sm:$0xff] %v5143
    %5652 = vst [vmem:[%s3 + $0x1a8] sm:$0xff] %v5145
    %5653 = vst [vmem:[%s3 + $0x1b0] sm:$0xff] %v5184
    %5654 = vst [vmem:[%s3 + $0x1b8] sm:$0xff] %v5186
    %5655 = vst [vmem:[%s3 + $0x1c0] sm:$0xff] %v5225
    %5656 = vst [vmem:[%s3 + $0x1c8] sm:$0xff] %v5227
    %5657 = vst [vmem:[%s3 + $0x1d0] sm:$0xff] %v5266
    %5658 = vst [vmem:[%s3 + $0x1d8] sm:$0xff] %v5268
    %5659 = vst [vmem:[%s3 + $0x1e0] sm:$0xff] %v5307
    %5660 = vst [vmem:[%s3 + $0x1e8] sm:$0xff] %v5309
    %5661 = vst [vmem:[%s3 + $0x1f0] sm:$0xff] %v5348
    %5662 = vst [vmem:[%s3 + $0x1f8] sm:$0xff] %v5350
    %5663 = vst [vmem:[%s3 + $0x200] sm:$0xff] %v5389
    %5664 = vst [vmem:[%s3 + $0x208] sm:$0xff] %v5391
    %5665 = vst [vmem:[%s3 + $0x210] sm:$0xff] %v5430
    %5666 = vst [vmem:[%s3 + $0x218] sm:$0xff] %v5432
    %5667 = vst [vmem:[%s3 + $0x220] sm:$0xff] %v5471
    %5668 = vst [vmem:[%s3 + $0x228] sm:$0xff] %v5473
    %5669 = vst [vmem:[%s3 + $0x230] sm:$0xff] %v5512
    %5670 = vst [vmem:[%s3 + $0x238] sm:$0xff] %v5514
    %5671 = vst [vmem:[%s3 + $0x240] sm:$0xff] %v5553
    %5672 = vst [vmem:[%s3 + $0x248] sm:$0xff] %v5555
    %5673 = vst [vmem:[%s3 + $0x250] sm:$0xff] %v5594
    // Predicated region
    $region18: #{generator_forward.1} parent=1 // pred_check
      _
    $region19: #{generator_forward.1} parent=1 // pred_check_branch
      %5675 = sbr.rel (0) target = $region21
    $region20: #{generator_forward.1} parent=1 // pred_region
      _
    $region21: #{generator_forward.1} parent=1 // pred_fallthru
      _
    // Predicated region
    $region22: #{generator_forward.1} parent=1 // pred_check
      _
    $region23: #{generator_forward.1} parent=1 // pred_check_branch
      %5677 = sbr.rel (0) target = $region25
    $region24: #{generator_forward.1} parent=1 // pred_region
      _
    $region25: #{generator_forward.1} parent=1 // pred_fallthru
      _
    %5678 = vsyncpa [#allocation3], 1

</llo_original>
